<compile_context>
chip_gen: v7x
topology: tpu7x:2x2x1
jax: 0.10.0
libtpu: 0.0.40
codegen_flags: <defaults>
</compile_context>

<pallas_src>
import jax
import jax.numpy as jnp
from jax.experimental import pallas as pl
from jax.experimental.pallas import tpu as pltpu


# ----------------------------------------------------------------------------
# Fused model kernel builder.  All shapes are static and the time loop is
# fully unrolled (T is tiny), so every slice/store uses static indices.
#
# Activation layout inside the kernel: time-major flattened (T*B, F), i.e.
# row index = t*B + b.  This keeps every per-step access a contiguous block of
# B rows and every bulk projection a plain 2-D matmul.
# ----------------------------------------------------------------------------
def build_model_kernel(B, T, H):
    def kernel(x_ref,
               wih0f, whh0f, b0f, wih0b, whh0b, b0b,
               wih1f, whh1f, b1f, wih1b, whh1b, b1b,
               w1, b1h, w2p, b2p,
               out_ref, scr0, scr1):

        def run_layer(x2d, wih_f, whh_f, bias_f, wih_b, whh_b, bias_b, scr):
            # Bulk input projection for all timesteps, one 2-D MXU matmul
            # per direction: (T*B, Din) x (Din, 4H).
            xp_f = (jnp.dot(x2d, wih_f[...],
                            preferred_element_type=jnp.float32) + bias_f[...])
            xp_b = (jnp.dot(x2d, wih_b[...],
                            preferred_element_type=jnp.float32) + bias_b[...])

            def run_dir(xp, whh_ref, reverse, col0):
                whh = whh_ref[...]                       # (H, 4H), hoisted
                h = jnp.zeros((B, H), jnp.float32)       # carried in vregs
                c = jnp.zeros((B, H), jnp.float32)
                for step in range(T):                    # fully unrolled
                    t = (T - 1 - step) if reverse else step
                    gates = (xp[t * B:(t + 1) * B, :]
                             + jnp.dot(h, whh,
                                       preferred_element_type=jnp.float32))
                    i = jax.nn.sigmoid(gates[:, 0 * H:1 * H])
                    f = jax.nn.sigmoid(gates[:, 1 * H:2 * H])
                    g = jnp.tanh(gates[:, 2 * H:3 * H])
                    o = jax.nn.sigmoid(gates[:, 3 * H:4 * H])
                    c = f * c + i * g
                    h = o * jnp.tanh(c)
                    # each direction owns its half of the (T*B, 2H) scratch
                    scr[t * B:(t + 1) * B, col0:col0 + H] = h

            run_dir(xp_f, whh_f, reverse=False, col0=0)
            run_dir(xp_b, whh_b, reverse=True, col0=H)

        # Layer 0: input = embedded tokens (time-major flattened).
        run_layer(x_ref[...], wih0f, whh0f, b0f, wih0b, whh0b, b0b, scr0)
        # Layer 1: input = bidirectional output of layer 0 (VMEM resident).
        run_layer(scr0[...], wih1f, whh1f, b1f, wih1b, whh1b, b1b, scr1)

        # Head: fc1 + ReLU (single 2-D matmul), mean-pool over time, fc2.
        y = jnp.maximum(
            jnp.dot(scr1[...], w1[...],
                    preferred_element_type=jnp.float32) + b1h[...],
            0.0)                                         # (T*B, H)
        acc = y[0:B, :]
        for t in range(1, T):
            acc = acc + y[t * B:(t + 1) * B, :]
        pooled = acc * (1.0 / T)                         # (B, H)
        # lane-dense padded logits (B, 128); wrapper slices to (B, 2)
        out_ref[...] = (jnp.dot(pooled, w2p[...],
                                preferred_element_type=jnp.float32)
                        + b2p[...])

    return kernel


# ----------------------------------------------------------------------------
# Full forward pass (matches Model_Imdb.forward, eval-mode dropout).
# ----------------------------------------------------------------------------
def model_forward(params, x_ids, hid_size):
    B, T = x_ids.shape
    H = hid_size

    # Embedding lookup (glue, XLA gather).
    x = jnp.take(params["embedding"], x_ids, axis=0)          # (B, T, E)
    E = x.shape[-1]
    # time-major flattened layout for the kernel: row = t*B + b
    x2d = jnp.transpose(x, (1, 0, 2)).reshape(T * B, E)

    kernel = build_model_kernel(B, T, H)
    out_pad = pl.pallas_call(
        kernel,
        out_shape=jax.ShapeDtypeStruct((B, 128), jnp.float32),
        scratch_shapes=[
            pltpu.VMEM((T * B, 2 * H), jnp.float32),   # layer-0 bidir output
            pltpu.VMEM((T * B, 2 * H), jnp.float32),   # layer-1 bidir output
        ],
    )(x2d,
      params["wih_l0"], params["whh_l0"], params["b_l0"],
      params["wih_l0_rev"], params["whh_l0_rev"], params["b_l0_rev"],
      params["wih_l1"], params["whh_l1"], params["b_l1"],
      params["wih_l1_rev"], params["whh_l1_rev"], params["b_l1_rev"],
      params["w1"], params["b1"], params["w2_pad"], params["b2_pad"])

    return out_pad[:, :2]                                      # (B, 2)


# ----------------------------------------------------------------------------
# Deterministic parameter init (shapes follow nn.Embedding / nn.LSTM / nn.Linear).
# ----------------------------------------------------------------------------
def init_params(key, max_words, emb_size, hid_size):
    H = hid_size
    k = 1.0 / jnp.sqrt(jnp.float32(H))
    params = {}
    keys = iter(jax.random.split(key, 64))

    def u(shape, scale=k):
        return jax.random.uniform(next(keys), shape, jnp.float32, -scale, scale)

    params["embedding"] = jax.random.normal(next(keys),
                                            (max_words, emb_size), jnp.float32)

    for layer in range(2):
        din = emb_size if layer == 0 else 2 * H
        for rev in (False, True):
            tag = f"l{layer}" + ("_rev" if rev else "")
            w_ih = u((4 * H, din))                 # PyTorch: (4H, Din)
            w_hh = u((4 * H, H))                   # PyTorch: (4H, H)
            b_ih = u((4 * H,))
            b_hh = u((4 * H,))
            params[f"wih_{tag}"] = w_ih.T          # (Din, 4H)
            params[f"whh_{tag}"] = w_hh.T          # (H, 4H)
            params[f"b_{tag}"] = (b_ih + b_hh).reshape(1, 4 * H)

    # fc1: Linear(2H -> H), fc2: Linear(H -> 2) (lane-padded to 128 for output)
    params["w1"] = u((H, 2 * H), 1.0 / jnp.sqrt(jnp.float32(2 * H))).T  # (2H, H)
    params["b1"] = u((1, H), 1.0 / jnp.sqrt(jnp.float32(2 * H)))
    w2 = u((2, H)).T                                                    # (H, 2)
    b2 = u((1, 2))
    params["w2_pad"] = jnp.zeros((H, 128), jnp.float32).at[:, :2].set(w2)
    params["b2_pad"] = jnp.zeros((1, 128), jnp.float32).at[:, :2].set(b2)
    return params


if __name__ == "__main__":
    max_words, emb_size, hid_size, dropout = 100, 16, 32, 0.5
    bs, maxlen = 2, 8

    root = jax.random.PRNGKey(0)
    pkey, xkey = jax.random.split(root)
    params = init_params(pkey, max_words, emb_size, hid_size)
    x_ids = jax.random.randint(xkey, (bs, maxlen), 0, max_words, dtype=jnp.int32)

    out = model_forward(params, x_ids, hid_size)
    out = jax.block_until_ready(out)
    assert out.shape == (bs, 2), out.shape
    print("KERNEL_OK")
</pallas_src>

<mosaic_0001>
module attributes {stable_mosaic.version = 11 : i64} {
  func.func @kernel(%arg0: memref<16x16xf32, #tpu.memory_space<vmem>>, %arg1: memref<16x128xf32, #tpu.memory_space<vmem>>, %arg2: memref<32x128xf32, #tpu.memory_space<vmem>>, %arg3: memref<1x128xf32, #tpu.memory_space<vmem>>, %arg4: memref<16x128xf32, #tpu.memory_space<vmem>>, %arg5: memref<32x128xf32, #tpu.memory_space<vmem>>, %arg6: memref<1x128xf32, #tpu.memory_space<vmem>>, %arg7: memref<64x128xf32, #tpu.memory_space<vmem>>, %arg8: memref<32x128xf32, #tpu.memory_space<vmem>>, %arg9: memref<1x128xf32, #tpu.memory_space<vmem>>, %arg10: memref<64x128xf32, #tpu.memory_space<vmem>>, %arg11: memref<32x128xf32, #tpu.memory_space<vmem>>, %arg12: memref<1x128xf32, #tpu.memory_space<vmem>>, %arg13: memref<64x32xf32, #tpu.memory_space<vmem>>, %arg14: memref<1x32xf32, #tpu.memory_space<vmem>>, %arg15: memref<32x128xf32, #tpu.memory_space<vmem>>, %arg16: memref<1x128xf32, #tpu.memory_space<vmem>>, %arg17: memref<2x128xf32, #tpu.memory_space<vmem>>, %arg18: memref<16x64xf32, #tpu.memory_space<vmem>>, %arg19: memref<16x64xf32, #tpu.memory_space<vmem>>) attributes {dimension_semantics = [], scalar_prefetch = 0 : i64, scratch_operands = 2 : i64, tpu.core_type = #tpu.core_type<tc>} {
    %c0 = arith.constant 0 : index
    %c0_0 = arith.constant 0 : index
    %0 = vector.load %arg0[%c0, %c0_0] : memref<16x16xf32, #tpu.memory_space<vmem>>, vector<16x16xf32>
    %c0_1 = arith.constant 0 : index
    %c0_2 = arith.constant 0 : index
    %1 = vector.load %arg1[%c0_1, %c0_2] : memref<16x128xf32, #tpu.memory_space<vmem>>, vector<16x128xf32>
    %cst = arith.constant dense<0.000000e+00> : vector<16x128xf32>
    %2 = tpu.matmul %0, %1, %cst {dimension_numbers = #tpu.dot_dimension_numbers<[1], [0], [0], [1], [0, 0, 1, 1], [], []>} : vector<16x16xf32>, vector<16x128xf32>, vector<16x128xf32> -> vector<16x128xf32>
    %c0_3 = arith.constant 0 : index
    %c0_4 = arith.constant 0 : index
    %3 = vector.load %arg3[%c0_3, %c0_4] : memref<1x128xf32, #tpu.memory_space<vmem>>, vector<1x128xf32>
    %4 = vector.broadcast %3 : vector<1x128xf32> to vector<16x128xf32>
    %5 = arith.addf %2, %4 : vector<16x128xf32>
    %c0_5 = arith.constant 0 : index
    %c0_6 = arith.constant 0 : index
    %6 = vector.load %arg4[%c0_5, %c0_6] : memref<16x128xf32, #tpu.memory_space<vmem>>, vector<16x128xf32>
    %cst_7 = arith.constant dense<0.000000e+00> : vector<16x128xf32>
    %7 = tpu.matmul %0, %6, %cst_7 {dimension_numbers = #tpu.dot_dimension_numbers<[1], [0], [0], [1], [0, 0, 1, 1], [], []>} : vector<16x16xf32>, vector<16x128xf32>, vector<16x128xf32> -> vector<16x128xf32>
    %c0_8 = arith.constant 0 : index
    %c0_9 = arith.constant 0 : index
    %8 = vector.load %arg6[%c0_8, %c0_9] : memref<1x128xf32, #tpu.memory_space<vmem>>, vector<1x128xf32>
    %9 = vector.broadcast %8 : vector<1x128xf32> to vector<16x128xf32>
    %10 = arith.addf %7, %9 : vector<16x128xf32>
    %c0_10 = arith.constant 0 : index
    %c0_11 = arith.constant 0 : index
    %11 = vector.load %arg2[%c0_10, %c0_11] : memref<32x128xf32, #tpu.memory_space<vmem>>, vector<32x128xf32>
    %cst_12 = arith.constant 0.000000e+00 : f32
    %12 = vector.broadcast %cst_12 : f32 to vector<2x32xf32>
    %cst_13 = arith.constant 0.000000e+00 : f32
    %13 = vector.broadcast %cst_13 : f32 to vector<2x32xf32>
    %14 = vector.extract_strided_slice %5 {offsets = [0, 0], sizes = [2, 128], strides = [1, 1]} : vector<16x128xf32> to vector<2x128xf32>
    %cst_14 = arith.constant dense<0.000000e+00> : vector<2x128xf32>
    %15 = tpu.matmul %12, %11, %cst_14 {dimension_numbers = #tpu.dot_dimension_numbers<[1], [0], [0], [1], [0, 0, 1, 1], [], []>} : vector<2x32xf32>, vector<32x128xf32>, vector<2x128xf32> -> vector<2x128xf32>
    %16 = arith.addf %14, %15 : vector<2x128xf32>
    %17 = vector.extract_strided_slice %16 {offsets = [0, 0], sizes = [2, 32], strides = [1, 1]} : vector<2x128xf32> to vector<2x32xf32>
    %18 = arith.negf %17 : vector<2x32xf32>
    %19 = math.exp %18 : vector<2x32xf32>
    %cst_15 = arith.constant 1.000000e+00 : f32
    %20 = vector.broadcast %cst_15 : f32 to vector<2x32xf32>
    %21 = arith.addf %20, %19 : vector<2x32xf32>
    %22 = arith.divf %20, %21 : vector<2x32xf32>
    %23 = vector.extract_strided_slice %16 {offsets = [0, 32], sizes = [2, 32], strides = [1, 1]} : vector<2x128xf32> to vector<2x32xf32>
    %24 = arith.negf %23 : vector<2x32xf32>
    %25 = math.exp %24 : vector<2x32xf32>
    %cst_16 = arith.constant 1.000000e+00 : f32
    %26 = vector.broadcast %cst_16 : f32 to vector<2x32xf32>
    %27 = arith.addf %26, %25 : vector<2x32xf32>
    %28 = arith.divf %26, %27 : vector<2x32xf32>
    %29 = vector.extract_strided_slice %16 {offsets = [0, 64], sizes = [2, 32], strides = [1, 1]} : vector<2x128xf32> to vector<2x32xf32>
    %30 = math.tanh %29 : vector<2x32xf32>
    %31 = vector.extract_strided_slice %16 {offsets = [0, 96], sizes = [2, 32], strides = [1, 1]} : vector<2x128xf32> to vector<2x32xf32>
    %32 = arith.negf %31 : vector<2x32xf32>
    %33 = math.exp %32 : vector<2x32xf32>
    %cst_17 = arith.constant 1.000000e+00 : f32
    %34 = vector.broadcast %cst_17 : f32 to vector<2x32xf32>
    %35 = arith.addf %34, %33 : vector<2x32xf32>
    %36 = arith.divf %34, %35 : vector<2x32xf32>
    %37 = arith.mulf %28, %13 : vector<2x32xf32>
    %38 = arith.mulf %22, %30 : vector<2x32xf32>
    %39 = arith.addf %37, %38 : vector<2x32xf32>
    %40 = math.tanh %39 : vector<2x32xf32>
    %41 = arith.mulf %36, %40 : vector<2x32xf32>
    %c0_18 = arith.constant 0 : index
    %c0_19 = arith.constant 0 : index
    %42 = vector.load %arg18[%c0_18, %c0_19] : memref<16x64xf32, #tpu.memory_space<vmem>>, vector<2x32xf32>
    tpu.vector_store %arg18[%c0_18, %c0_19], %41 {strides = array<i32>} : memref<16x64xf32, #tpu.memory_space<vmem>>, vector<2x32xf32>,
    %43 = vector.extract_strided_slice %5 {offsets = [2, 0], sizes = [2, 128], strides = [1, 1]} : vector<16x128xf32> to vector<2x128xf32>
    %cst_20 = arith.constant dense<0.000000e+00> : vector<2x128xf32>
    %44 = tpu.matmul %41, %11, %cst_20 {dimension_numbers = #tpu.dot_dimension_numbers<[1], [0], [0], [1], [0, 0, 1, 1], [], []>} : vector<2x32xf32>, vector<32x128xf32>, vector<2x128xf32> -> vector<2x128xf32>
    %45 = arith.addf %43, %44 : vector<2x128xf32>
    %46 = vector.extract_strided_slice %45 {offsets = [0, 0], sizes = [2, 32], strides = [1, 1]} : vector<2x128xf32> to vector<2x32xf32>
    %47 = arith.negf %46 : vector<2x32xf32>
    %48 = math.exp %47 : vector<2x32xf32>
    %cst_21 = arith.constant 1.000000e+00 : f32
    %49 = vector.broadcast %cst_21 : f32 to vector<2x32xf32>
    %50 = arith.addf %49, %48 : vector<2x32xf32>
    %51 = arith.divf %49, %50 : vector<2x32xf32>
    %52 = vector.extract_strided_slice %45 {offsets = [0, 32], sizes = [2, 32], strides = [1, 1]} : vector<2x128xf32> to vector<2x32xf32>
    %53 = arith.negf %52 : vector<2x32xf32>
    %54 = math.exp %53 : vector<2x32xf32>
    %cst_22 = arith.constant 1.000000e+00 : f32
    %55 = vector.broadcast %cst_22 : f32 to vector<2x32xf32>
    %56 = arith.addf %55, %54 : vector<2x32xf32>
    %57 = arith.divf %55, %56 : vector<2x32xf32>
    %58 = vector.extract_strided_slice %45 {offsets = [0, 64], sizes = [2, 32], strides = [1, 1]} : vector<2x128xf32> to vector<2x32xf32>
    %59 = math.tanh %58 : vector<2x32xf32>
    %60 = vector.extract_strided_slice %45 {offsets = [0, 96], sizes = [2, 32], strides = [1, 1]} : vector<2x128xf32> to vector<2x32xf32>
    %61 = arith.negf %60 : vector<2x32xf32>
    %62 = math.exp %61 : vector<2x32xf32>
    %cst_23 = arith.constant 1.000000e+00 : f32
    %63 = vector.broadcast %cst_23 : f32 to vector<2x32xf32>
    %64 = arith.addf %63, %62 : vector<2x32xf32>
    %65 = arith.divf %63, %64 : vector<2x32xf32>
    %66 = arith.mulf %57, %39 : vector<2x32xf32>
    %67 = arith.mulf %51, %59 : vector<2x32xf32>
    %68 = arith.addf %66, %67 : vector<2x32xf32>
    %69 = math.tanh %68 : vector<2x32xf32>
    %70 = arith.mulf %65, %69 : vector<2x32xf32>
    %c2 = arith.constant 2 : index
    %c0_24 = arith.constant 0 : index
    %71 = vector.load %arg18[%c2, %c0_24] : memref<16x64xf32, #tpu.memory_space<vmem>>, vector<2x32xf32>
    tpu.vector_store %arg18[%c2, %c0_24], %70 {strides = array<i32>} : memref<16x64xf32, #tpu.memory_space<vmem>>, vector<2x32xf32>,
    %72 = vector.extract_strided_slice %5 {offsets = [4, 0], sizes = [2, 128], strides = [1, 1]} : vector<16x128xf32> to vector<2x128xf32>
    %cst_25 = arith.constant dense<0.000000e+00> : vector<2x128xf32>
    %73 = tpu.matmul %70, %11, %cst_25 {dimension_numbers = #tpu.dot_dimension_numbers<[1], [0], [0], [1], [0, 0, 1, 1], [], []>} : vector<2x32xf32>, vector<32x128xf32>, vector<2x128xf32> -> vector<2x128xf32>
    %74 = arith.addf %72, %73 : vector<2x128xf32>
    %75 = vector.extract_strided_slice %74 {offsets = [0, 0], sizes = [2, 32], strides = [1, 1]} : vector<2x128xf32> to vector<2x32xf32>
    %76 = arith.negf %75 : vector<2x32xf32>
    %77 = math.exp %76 : vector<2x32xf32>
    %cst_26 = arith.constant 1.000000e+00 : f32
    %78 = vector.broadcast %cst_26 : f32 to vector<2x32xf32>
    %79 = arith.addf %78, %77 : vector<2x32xf32>
    %80 = arith.divf %78, %79 : vector<2x32xf32>
    %81 = vector.extract_strided_slice %74 {offsets = [0, 32], sizes = [2, 32], strides = [1, 1]} : vector<2x128xf32> to vector<2x32xf32>
    %82 = arith.negf %81 : vector<2x32xf32>
    %83 = math.exp %82 : vector<2x32xf32>
    %cst_27 = arith.constant 1.000000e+00 : f32
    %84 = vector.broadcast %cst_27 : f32 to vector<2x32xf32>
    %85 = arith.addf %84, %83 : vector<2x32xf32>
    %86 = arith.divf %84, %85 : vector<2x32xf32>
    %87 = vector.extract_strided_slice %74 {offsets = [0, 64], sizes = [2, 32], strides = [1, 1]} : vector<2x128xf32> to vector<2x32xf32>
    %88 = math.tanh %87 : vector<2x32xf32>
    %89 = vector.extract_strided_slice %74 {offsets = [0, 96], sizes = [2, 32], strides = [1, 1]} : vector<2x128xf32> to vector<2x32xf32>
    %90 = arith.negf %89 : vector<2x32xf32>
    %91 = math.exp %90 : vector<2x32xf32>
    %cst_28 = arith.constant 1.000000e+00 : f32
    %92 = vector.broadcast %cst_28 : f32 to vector<2x32xf32>
    %93 = arith.addf %92, %91 : vector<2x32xf32>
    %94 = arith.divf %92, %93 : vector<2x32xf32>
    %95 = arith.mulf %86, %68 : vector<2x32xf32>
    %96 = arith.mulf %80, %88 : vector<2x32xf32>
    %97 = arith.addf %95, %96 : vector<2x32xf32>
    %98 = math.tanh %97 : vector<2x32xf32>
    %99 = arith.mulf %94, %98 : vector<2x32xf32>
    %c4 = arith.constant 4 : index
    %c0_29 = arith.constant 0 : index
    %100 = vector.load %arg18[%c4, %c0_29] : memref<16x64xf32, #tpu.memory_space<vmem>>, vector<2x32xf32>
    tpu.vector_store %arg18[%c4, %c0_29], %99 {strides = array<i32>} : memref<16x64xf32, #tpu.memory_space<vmem>>, vector<2x32xf32>,
    %101 = vector.extract_strided_slice %5 {offsets = [6, 0], sizes = [2, 128], strides = [1, 1]} : vector<16x128xf32> to vector<2x128xf32>
    %cst_30 = arith.constant dense<0.000000e+00> : vector<2x128xf32>
    %102 = tpu.matmul %99, %11, %cst_30 {dimension_numbers = #tpu.dot_dimension_numbers<[1], [0], [0], [1], [0, 0, 1, 1], [], []>} : vector<2x32xf32>, vector<32x128xf32>, vector<2x128xf32> -> vector<2x128xf32>
    %103 = arith.addf %101, %102 : vector<2x128xf32>
    %104 = vector.extract_strided_slice %103 {offsets = [0, 0], sizes = [2, 32], strides = [1, 1]} : vector<2x128xf32> to vector<2x32xf32>
    %105 = arith.negf %104 : vector<2x32xf32>
    %106 = math.exp %105 : vector<2x32xf32>
    %cst_31 = arith.constant 1.000000e+00 : f32
    %107 = vector.broadcast %cst_31 : f32 to vector<2x32xf32>
    %108 = arith.addf %107, %106 : vector<2x32xf32>
    %109 = arith.divf %107, %108 : vector<2x32xf32>
    %110 = vector.extract_strided_slice %103 {offsets = [0, 32], sizes = [2, 32], strides = [1, 1]} : vector<2x128xf32> to vector<2x32xf32>
    %111 = arith.negf %110 : vector<2x32xf32>
    %112 = math.exp %111 : vector<2x32xf32>
    %cst_32 = arith.constant 1.000000e+00 : f32
    %113 = vector.broadcast %cst_32 : f32 to vector<2x32xf32>
    %114 = arith.addf %113, %112 : vector<2x32xf32>
    %115 = arith.divf %113, %114 : vector<2x32xf32>
    %116 = vector.extract_strided_slice %103 {offsets = [0, 64], sizes = [2, 32], strides = [1, 1]} : vector<2x128xf32> to vector<2x32xf32>
    %117 = math.tanh %116 : vector<2x32xf32>
    %118 = vector.extract_strided_slice %103 {offsets = [0, 96], sizes = [2, 32], strides = [1, 1]} : vector<2x128xf32> to vector<2x32xf32>
    %119 = arith.negf %118 : vector<2x32xf32>
    %120 = math.exp %119 : vector<2x32xf32>
    %cst_33 = arith.constant 1.000000e+00 : f32
    %121 = vector.broadcast %cst_33 : f32 to vector<2x32xf32>
    %122 = arith.addf %121, %120 : vector<2x32xf32>
    %123 = arith.divf %121, %122 : vector<2x32xf32>
    %124 = arith.mulf %115, %97 : vector<2x32xf32>
    %125 = arith.mulf %109, %117 : vector<2x32xf32>
    %126 = arith.addf %124, %125 : vector<2x32xf32>
    %127 = math.tanh %126 : vector<2x32xf32>
    %128 = arith.mulf %123, %127 : vector<2x32xf32>
    %c6 = arith.constant 6 : index
    %c0_34 = arith.constant 0 : index
    %129 = vector.load %arg18[%c6, %c0_34] : memref<16x64xf32, #tpu.memory_space<vmem>>, vector<2x32xf32>
    tpu.vector_store %arg18[%c6, %c0_34], %128 {strides = array<i32>} : memref<16x64xf32, #tpu.memory_space<vmem>>, vector<2x32xf32>,
    %130 = vector.extract_strided_slice %5 {offsets = [8, 0], sizes = [2, 128], strides = [1, 1]} : vector<16x128xf32> to vector<2x128xf32>
    %cst_35 = arith.constant dense<0.000000e+00> : vector<2x128xf32>
    %131 = tpu.matmul %128, %11, %cst_35 {dimension_numbers = #tpu.dot_dimension_numbers<[1], [0], [0], [1], [0, 0, 1, 1], [], []>} : vector<2x32xf32>, vector<32x128xf32>, vector<2x128xf32> -> vector<2x128xf32>
    %132 = arith.addf %130, %131 : vector<2x128xf32>
    %133 = vector.extract_strided_slice %132 {offsets = [0, 0], sizes = [2, 32], strides = [1, 1]} : vector<2x128xf32> to vector<2x32xf32>
    %134 = arith.negf %133 : vector<2x32xf32>
    %135 = math.exp %134 : vector<2x32xf32>
    %cst_36 = arith.constant 1.000000e+00 : f32
    %136 = vector.broadcast %cst_36 : f32 to vector<2x32xf32>
    %137 = arith.addf %136, %135 : vector<2x32xf32>
    %138 = arith.divf %136, %137 : vector<2x32xf32>
    %139 = vector.extract_strided_slice %132 {offsets = [0, 32], sizes = [2, 32], strides = [1, 1]} : vector<2x128xf32> to vector<2x32xf32>
    %140 = arith.negf %139 : vector<2x32xf32>
    %141 = math.exp %140 : vector<2x32xf32>
    %cst_37 = arith.constant 1.000000e+00 : f32
    %142 = vector.broadcast %cst_37 : f32 to vector<2x32xf32>
    %143 = arith.addf %142, %141 : vector<2x32xf32>
    %144 = arith.divf %142, %143 : vector<2x32xf32>
    %145 = vector.extract_strided_slice %132 {offsets = [0, 64], sizes = [2, 32], strides = [1, 1]} : vector<2x128xf32> to vector<2x32xf32>
    %146 = math.tanh %145 : vector<2x32xf32>
    %147 = vector.extract_strided_slice %132 {offsets = [0, 96], sizes = [2, 32], strides = [1, 1]} : vector<2x128xf32> to vector<2x32xf32>
    %148 = arith.negf %147 : vector<2x32xf32>
    %149 = math.exp %148 : vector<2x32xf32>
    %cst_38 = arith.constant 1.000000e+00 : f32
    %150 = vector.broadcast %cst_38 : f32 to vector<2x32xf32>
    %151 = arith.addf %150, %149 : vector<2x32xf32>
    %152 = arith.divf %150, %151 : vector<2x32xf32>
    %153 = arith.mulf %144, %126 : vector<2x32xf32>
    %154 = arith.mulf %138, %146 : vector<2x32xf32>
    %155 = arith.addf %153, %154 : vector<2x32xf32>
    %156 = math.tanh %155 : vector<2x32xf32>
    %157 = arith.mulf %152, %156 : vector<2x32xf32>
    %c8 = arith.constant 8 : index
    %c0_39 = arith.constant 0 : index
    %158 = vector.load %arg18[%c8, %c0_39] : memref<16x64xf32, #tpu.memory_space<vmem>>, vector<2x32xf32>
    tpu.vector_store %arg18[%c8, %c0_39], %157 {strides = array<i32>} : memref<16x64xf32, #tpu.memory_space<vmem>>, vector<2x32xf32>,
    %159 = vector.extract_strided_slice %5 {offsets = [10, 0], sizes = [2, 128], strides = [1, 1]} : vector<16x128xf32> to vector<2x128xf32>
    %cst_40 = arith.constant dense<0.000000e+00> : vector<2x128xf32>
    %160 = tpu.matmul %157, %11, %cst_40 {dimension_numbers = #tpu.dot_dimension_numbers<[1], [0], [0], [1], [0, 0, 1, 1], [], []>} : vector<2x32xf32>, vector<32x128xf32>, vector<2x128xf32> -> vector<2x128xf32>
    %161 = arith.addf %159, %160 : vector<2x128xf32>
    %162 = vector.extract_strided_slice %161 {offsets = [0, 0], sizes = [2, 32], strides = [1, 1]} : vector<2x128xf32> to vector<2x32xf32>
    %163 = arith.negf %162 : vector<2x32xf32>
    %164 = math.exp %163 : vector<2x32xf32>
    %cst_41 = arith.constant 1.000000e+00 : f32
    %165 = vector.broadcast %cst_41 : f32 to vector<2x32xf32>
    %166 = arith.addf %165, %164 : vector<2x32xf32>
    %167 = arith.divf %165, %166 : vector<2x32xf32>
    %168 = vector.extract_strided_slice %161 {offsets = [0, 32], sizes = [2, 32], strides = [1, 1]} : vector<2x128xf32> to vector<2x32xf32>
    %169 = arith.negf %168 : vector<2x32xf32>
    %170 = math.exp %169 : vector<2x32xf32>
    %cst_42 = arith.constant 1.000000e+00 : f32
    %171 = vector.broadcast %cst_42 : f32 to vector<2x32xf32>
    %172 = arith.addf %171, %170 : vector<2x32xf32>
    %173 = arith.divf %171, %172 : vector<2x32xf32>
    %174 = vector.extract_strided_slice %161 {offsets = [0, 64], sizes = [2, 32], strides = [1, 1]} : vector<2x128xf32> to vector<2x32xf32>
    %175 = math.tanh %174 : vector<2x32xf32>
    %176 = vector.extract_strided_slice %161 {offsets = [0, 96], sizes = [2, 32], strides = [1, 1]} : vector<2x128xf32> to vector<2x32xf32>
    %177 = arith.negf %176 : vector<2x32xf32>
    %178 = math.exp %177 : vector<2x32xf32>
    %cst_43 = arith.constant 1.000000e+00 : f32
    %179 = vector.broadcast %cst_43 : f32 to vector<2x32xf32>
    %180 = arith.addf %179, %178 : vector<2x32xf32>
    %181 = arith.divf %179, %180 : vector<2x32xf32>
    %182 = arith.mulf %173, %155 : vector<2x32xf32>
    %183 = arith.mulf %167, %175 : vector<2x32xf32>
    %184 = arith.addf %182, %183 : vector<2x32xf32>
    %185 = math.tanh %184 : vector<2x32xf32>
    %186 = arith.mulf %181, %185 : vector<2x32xf32>
    %c10 = arith.constant 10 : index
    %c0_44 = arith.constant 0 : index
    %187 = vector.load %arg18[%c10, %c0_44] : memref<16x64xf32, #tpu.memory_space<vmem>>, vector<2x32xf32>
    tpu.vector_store %arg18[%c10, %c0_44], %186 {strides = array<i32>} : memref<16x64xf32, #tpu.memory_space<vmem>>, vector<2x32xf32>,
    %188 = vector.extract_strided_slice %5 {offsets = [12, 0], sizes = [2, 128], strides = [1, 1]} : vector<16x128xf32> to vector<2x128xf32>
    %cst_45 = arith.constant dense<0.000000e+00> : vector<2x128xf32>
    %189 = tpu.matmul %186, %11, %cst_45 {dimension_numbers = #tpu.dot_dimension_numbers<[1], [0], [0], [1], [0, 0, 1, 1], [], []>} : vector<2x32xf32>, vector<32x128xf32>, vector<2x128xf32> -> vector<2x128xf32>
    %190 = arith.addf %188, %189 : vector<2x128xf32>
    %191 = vector.extract_strided_slice %190 {offsets = [0, 0], sizes = [2, 32], strides = [1, 1]} : vector<2x128xf32> to vector<2x32xf32>
    %192 = arith.negf %191 : vector<2x32xf32>
    %193 = math.exp %192 : vector<2x32xf32>
    %cst_46 = arith.constant 1.000000e+00 : f32
    %194 = vector.broadcast %cst_46 : f32 to vector<2x32xf32>
    %195 = arith.addf %194, %193 : vector<2x32xf32>
    %196 = arith.divf %194, %195 : vector<2x32xf32>
    %197 = vector.extract_strided_slice %190 {offsets = [0, 32], sizes = [2, 32], strides = [1, 1]} : vector<2x128xf32> to vector<2x32xf32>
    %198 = arith.negf %197 : vector<2x32xf32>
    %199 = math.exp %198 : vector<2x32xf32>
    %cst_47 = arith.constant 1.000000e+00 : f32
    %200 = vector.broadcast %cst_47 : f32 to vector<2x32xf32>
    %201 = arith.addf %200, %199 : vector<2x32xf32>
    %202 = arith.divf %200, %201 : vector<2x32xf32>
    %203 = vector.extract_strided_slice %190 {offsets = [0, 64], sizes = [2, 32], strides = [1, 1]} : vector<2x128xf32> to vector<2x32xf32>
    %204 = math.tanh %203 : vector<2x32xf32>
    %205 = vector.extract_strided_slice %190 {offsets = [0, 96], sizes = [2, 32], strides = [1, 1]} : vector<2x128xf32> to vector<2x32xf32>
    %206 = arith.negf %205 : vector<2x32xf32>
    %207 = math.exp %206 : vector<2x32xf32>
    %cst_48 = arith.constant 1.000000e+00 : f32
    %208 = vector.broadcast %cst_48 : f32 to vector<2x32xf32>
    %209 = arith.addf %208, %207 : vector<2x32xf32>
    %210 = arith.divf %208, %209 : vector<2x32xf32>
    %211 = arith.mulf %202, %184 : vector<2x32xf32>
    %212 = arith.mulf %196, %204 : vector<2x32xf32>
    %213 = arith.addf %211, %212 : vector<2x32xf32>
    %214 = math.tanh %213 : vector<2x32xf32>
    %215 = arith.mulf %210, %214 : vector<2x32xf32>
    %c12 = arith.constant 12 : index
    %c0_49 = arith.constant 0 : index
    %216 = vector.load %arg18[%c12, %c0_49] : memref<16x64xf32, #tpu.memory_space<vmem>>, vector<2x32xf32>
    tpu.vector_store %arg18[%c12, %c0_49], %215 {strides = array<i32>} : memref<16x64xf32, #tpu.memory_space<vmem>>, vector<2x32xf32>,
    %217 = vector.extract_strided_slice %5 {offsets = [14, 0], sizes = [2, 128], strides = [1, 1]} : vector<16x128xf32> to vector<2x128xf32>
    %cst_50 = arith.constant dense<0.000000e+00> : vector<2x128xf32>
    %218 = tpu.matmul %215, %11, %cst_50 {dimension_numbers = #tpu.dot_dimension_numbers<[1], [0], [0], [1], [0, 0, 1, 1], [], []>} : vector<2x32xf32>, vector<32x128xf32>, vector<2x128xf32> -> vector<2x128xf32>
    %219 = arith.addf %217, %218 : vector<2x128xf32>
    %220 = vector.extract_strided_slice %219 {offsets = [0, 0], sizes = [2, 32], strides = [1, 1]} : vector<2x128xf32> to vector<2x32xf32>
    %221 = arith.negf %220 : vector<2x32xf32>
    %222 = math.exp %221 : vector<2x32xf32>
    %cst_51 = arith.constant 1.000000e+00 : f32
    %223 = vector.broadcast %cst_51 : f32 to vector<2x32xf32>
    %224 = arith.addf %223, %222 : vector<2x32xf32>
    %225 = arith.divf %223, %224 : vector<2x32xf32>
    %226 = vector.extract_strided_slice %219 {offsets = [0, 32], sizes = [2, 32], strides = [1, 1]} : vector<2x128xf32> to vector<2x32xf32>
    %227 = arith.negf %226 : vector<2x32xf32>
    %228 = math.exp %227 : vector<2x32xf32>
    %cst_52 = arith.constant 1.000000e+00 : f32
    %229 = vector.broadcast %cst_52 : f32 to vector<2x32xf32>
    %230 = arith.addf %229, %228 : vector<2x32xf32>
    %231 = arith.divf %229, %230 : vector<2x32xf32>
    %232 = vector.extract_strided_slice %219 {offsets = [0, 64], sizes = [2, 32], strides = [1, 1]} : vector<2x128xf32> to vector<2x32xf32>
    %233 = math.tanh %232 : vector<2x32xf32>
    %234 = vector.extract_strided_slice %219 {offsets = [0, 96], sizes = [2, 32], strides = [1, 1]} : vector<2x128xf32> to vector<2x32xf32>
    %235 = arith.negf %234 : vector<2x32xf32>
    %236 = math.exp %235 : vector<2x32xf32>
    %cst_53 = arith.constant 1.000000e+00 : f32
    %237 = vector.broadcast %cst_53 : f32 to vector<2x32xf32>
    %238 = arith.addf %237, %236 : vector<2x32xf32>
    %239 = arith.divf %237, %238 : vector<2x32xf32>
    %240 = arith.mulf %231, %213 : vector<2x32xf32>
    %241 = arith.mulf %225, %233 : vector<2x32xf32>
    %242 = arith.addf %240, %241 : vector<2x32xf32>
    %243 = math.tanh %242 : vector<2x32xf32>
    %244 = arith.mulf %239, %243 : vector<2x32xf32>
    %c14 = arith.constant 14 : index
    %c0_54 = arith.constant 0 : index
    %245 = vector.load %arg18[%c14, %c0_54] : memref<16x64xf32, #tpu.memory_space<vmem>>, vector<2x32xf32>
    tpu.vector_store %arg18[%c14, %c0_54], %244 {strides = array<i32>} : memref<16x64xf32, #tpu.memory_space<vmem>>, vector<2x32xf32>,
    %c0_55 = arith.constant 0 : index
    %c0_56 = arith.constant 0 : index
    %246 = vector.load %arg5[%c0_55, %c0_56] : memref<32x128xf32, #tpu.memory_space<vmem>>, vector<32x128xf32>
    %cst_57 = arith.constant 0.000000e+00 : f32
    %247 = vector.broadcast %cst_57 : f32 to vector<2x32xf32>
    %cst_58 = arith.constant 0.000000e+00 : f32
    %248 = vector.broadcast %cst_58 : f32 to vector<2x32xf32>
    %249 = vector.extract_strided_slice %10 {offsets = [14, 0], sizes = [2, 128], strides = [1, 1]} : vector<16x128xf32> to vector<2x128xf32>
    %cst_59 = arith.constant dense<0.000000e+00> : vector<2x128xf32>
    %250 = tpu.matmul %247, %246, %cst_59 {dimension_numbers = #tpu.dot_dimension_numbers<[1], [0], [0], [1], [0, 0, 1, 1], [], []>} : vector<2x32xf32>, vector<32x128xf32>, vector<2x128xf32> -> vector<2x128xf32>
    %251 = arith.addf %249, %250 : vector<2x128xf32>
    %252 = vector.extract_strided_slice %251 {offsets = [0, 0], sizes = [2, 32], strides = [1, 1]} : vector<2x128xf32> to vector<2x32xf32>
    %253 = arith.negf %252 : vector<2x32xf32>
    %254 = math.exp %253 : vector<2x32xf32>
    %cst_60 = arith.constant 1.000000e+00 : f32
    %255 = vector.broadcast %cst_60 : f32 to vector<2x32xf32>
    %256 = arith.addf %255, %254 : vector<2x32xf32>
    %257 = arith.divf %255, %256 : vector<2x32xf32>
    %258 = vector.extract_strided_slice %251 {offsets = [0, 32], sizes = [2, 32], strides = [1, 1]} : vector<2x128xf32> to vector<2x32xf32>
    %259 = arith.negf %258 : vector<2x32xf32>
    %260 = math.exp %259 : vector<2x32xf32>
    %cst_61 = arith.constant 1.000000e+00 : f32
    %261 = vector.broadcast %cst_61 : f32 to vector<2x32xf32>
    %262 = arith.addf %261, %260 : vector<2x32xf32>
    %263 = arith.divf %261, %262 : vector<2x32xf32>
    %264 = vector.extract_strided_slice %251 {offsets = [0, 64], sizes = [2, 32], strides = [1, 1]} : vector<2x128xf32> to vector<2x32xf32>
    %265 = math.tanh %264 : vector<2x32xf32>
    %266 = vector.extract_strided_slice %251 {offsets = [0, 96], sizes = [2, 32], strides = [1, 1]} : vector<2x128xf32> to vector<2x32xf32>
    %267 = arith.negf %266 : vector<2x32xf32>
    %268 = math.exp %267 : vector<2x32xf32>
    %cst_62 = arith.constant 1.000000e+00 : f32
    %269 = vector.broadcast %cst_62 : f32 to vector<2x32xf32>
    %270 = arith.addf %269, %268 : vector<2x32xf32>
    %271 = arith.divf %269, %270 : vector<2x32xf32>
    %272 = arith.mulf %263, %248 : vector<2x32xf32>
    %273 = arith.mulf %257, %265 : vector<2x32xf32>
    %274 = arith.addf %272, %273 : vector<2x32xf32>
    %275 = math.tanh %274 : vector<2x32xf32>
    %276 = arith.mulf %271, %275 : vector<2x32xf32>
    %c14_63 = arith.constant 14 : index
    %c32 = arith.constant 32 : index
    %277 = vector.load %arg18[%c14_63, %c32] : memref<16x64xf32, #tpu.memory_space<vmem>>, vector<2x32xf32>
    tpu.vector_store %arg18[%c14_63, %c32], %276 {strides = array<i32>} : memref<16x64xf32, #tpu.memory_space<vmem>>, vector<2x32xf32>,
    %278 = vector.extract_strided_slice %10 {offsets = [12, 0], sizes = [2, 128], strides = [1, 1]} : vector<16x128xf32> to vector<2x128xf32>
    %cst_64 = arith.constant dense<0.000000e+00> : vector<2x128xf32>
    %279 = tpu.matmul %276, %246, %cst_64 {dimension_numbers = #tpu.dot_dimension_numbers<[1], [0], [0], [1], [0, 0, 1, 1], [], []>} : vector<2x32xf32>, vector<32x128xf32>, vector<2x128xf32> -> vector<2x128xf32>
    %280 = arith.addf %278, %279 : vector<2x128xf32>
    %281 = vector.extract_strided_slice %280 {offsets = [0, 0], sizes = [2, 32], strides = [1, 1]} : vector<2x128xf32> to vector<2x32xf32>
    %282 = arith.negf %281 : vector<2x32xf32>
    %283 = math.exp %282 : vector<2x32xf32>
    %cst_65 = arith.constant 1.000000e+00 : f32
    %284 = vector.broadcast %cst_65 : f32 to vector<2x32xf32>
    %285 = arith.addf %284, %283 : vector<2x32xf32>
    %286 = arith.divf %284, %285 : vector<2x32xf32>
    %287 = vector.extract_strided_slice %280 {offsets = [0, 32], sizes = [2, 32], strides = [1, 1]} : vector<2x128xf32> to vector<2x32xf32>
    %288 = arith.negf %287 : vector<2x32xf32>
    %289 = math.exp %288 : vector<2x32xf32>
    %cst_66 = arith.constant 1.000000e+00 : f32
    %290 = vector.broadcast %cst_66 : f32 to vector<2x32xf32>
    %291 = arith.addf %290, %289 : vector<2x32xf32>
    %292 = arith.divf %290, %291 : vector<2x32xf32>
    %293 = vector.extract_strided_slice %280 {offsets = [0, 64], sizes = [2, 32], strides = [1, 1]} : vector<2x128xf32> to vector<2x32xf32>
    %294 = math.tanh %293 : vector<2x32xf32>
    %295 = vector.extract_strided_slice %280 {offsets = [0, 96], sizes = [2, 32], strides = [1, 1]} : vector<2x128xf32> to vector<2x32xf32>
    %296 = arith.negf %295 : vector<2x32xf32>
    %297 = math.exp %296 : vector<2x32xf32>
    %cst_67 = arith.constant 1.000000e+00 : f32
    %298 = vector.broadcast %cst_67 : f32 to vector<2x32xf32>
    %299 = arith.addf %298, %297 : vector<2x32xf32>
    %300 = arith.divf %298, %299 : vector<2x32xf32>
    %301 = arith.mulf %292, %274 : vector<2x32xf32>
    %302 = arith.mulf %286, %294 : vector<2x32xf32>
    %303 = arith.addf %301, %302 : vector<2x32xf32>
    %304 = math.tanh %303 : vector<2x32xf32>
    %305 = arith.mulf %300, %304 : vector<2x32xf32>
    %c12_68 = arith.constant 12 : index
    %c32_69 = arith.constant 32 : index
    %306 = vector.load %arg18[%c12_68, %c32_69] : memref<16x64xf32, #tpu.memory_space<vmem>>, vector<2x32xf32>
    tpu.vector_store %arg18[%c12_68, %c32_69], %305 {strides = array<i32>} : memref<16x64xf32, #tpu.memory_space<vmem>>, vector<2x32xf32>,
    %307 = vector.extract_strided_slice %10 {offsets = [10, 0], sizes = [2, 128], strides = [1, 1]} : vector<16x128xf32> to vector<2x128xf32>
    %cst_70 = arith.constant dense<0.000000e+00> : vector<2x128xf32>
    %308 = tpu.matmul %305, %246, %cst_70 {dimension_numbers = #tpu.dot_dimension_numbers<[1], [0], [0], [1], [0, 0, 1, 1], [], []>} : vector<2x32xf32>, vector<32x128xf32>, vector<2x128xf32> -> vector<2x128xf32>
    %309 = arith.addf %307, %308 : vector<2x128xf32>
    %310 = vector.extract_strided_slice %309 {offsets = [0, 0], sizes = [2, 32], strides = [1, 1]} : vector<2x128xf32> to vector<2x32xf32>
    %311 = arith.negf %310 : vector<2x32xf32>
    %312 = math.exp %311 : vector<2x32xf32>
    %cst_71 = arith.constant 1.000000e+00 : f32
    %313 = vector.broadcast %cst_71 : f32 to vector<2x32xf32>
    %314 = arith.addf %313, %312 : vector<2x32xf32>
    %315 = arith.divf %313, %314 : vector<2x32xf32>
    %316 = vector.extract_strided_slice %309 {offsets = [0, 32], sizes = [2, 32], strides = [1, 1]} : vector<2x128xf32> to vector<2x32xf32>
    %317 = arith.negf %316 : vector<2x32xf32>
    %318 = math.exp %317 : vector<2x32xf32>
    %cst_72 = arith.constant 1.000000e+00 : f32
    %319 = vector.broadcast %cst_72 : f32 to vector<2x32xf32>
    %320 = arith.addf %319, %318 : vector<2x32xf32>
    %321 = arith.divf %319, %320 : vector<2x32xf32>
    %322 = vector.extract_strided_slice %309 {offsets = [0, 64], sizes = [2, 32], strides = [1, 1]} : vector<2x128xf32> to vector<2x32xf32>
    %323 = math.tanh %322 : vector<2x32xf32>
    %324 = vector.extract_strided_slice %309 {offsets = [0, 96], sizes = [2, 32], strides = [1, 1]} : vector<2x128xf32> to vector<2x32xf32>
    %325 = arith.negf %324 : vector<2x32xf32>
    %326 = math.exp %325 : vector<2x32xf32>
    %cst_73 = arith.constant 1.000000e+00 : f32
    %327 = vector.broadcast %cst_73 : f32 to vector<2x32xf32>
    %328 = arith.addf %327, %326 : vector<2x32xf32>
    %329 = arith.divf %327, %328 : vector<2x32xf32>
    %330 = arith.mulf %321, %303 : vector<2x32xf32>
    %331 = arith.mulf %315, %323 : vector<2x32xf32>
    %332 = arith.addf %330, %331 : vector<2x32xf32>
    %333 = math.tanh %332 : vector<2x32xf32>
    %334 = arith.mulf %329, %333 : vector<2x32xf32>
    %c10_74 = arith.constant 10 : index
    %c32_75 = arith.constant 32 : index
    %335 = vector.load %arg18[%c10_74, %c32_75] : memref<16x64xf32, #tpu.memory_space<vmem>>, vector<2x32xf32>
    tpu.vector_store %arg18[%c10_74, %c32_75], %334 {strides = array<i32>} : memref<16x64xf32, #tpu.memory_space<vmem>>, vector<2x32xf32>,
    %336 = vector.extract_strided_slice %10 {offsets = [8, 0], sizes = [2, 128], strides = [1, 1]} : vector<16x128xf32> to vector<2x128xf32>
    %cst_76 = arith.constant dense<0.000000e+00> : vector<2x128xf32>
    %337 = tpu.matmul %334, %246, %cst_76 {dimension_numbers = #tpu.dot_dimension_numbers<[1], [0], [0], [1], [0, 0, 1, 1], [], []>} : vector<2x32xf32>, vector<32x128xf32>, vector<2x128xf32> -> vector<2x128xf32>
    %338 = arith.addf %336, %337 : vector<2x128xf32>
    %339 = vector.extract_strided_slice %338 {offsets = [0, 0], sizes = [2, 32], strides = [1, 1]} : vector<2x128xf32> to vector<2x32xf32>
    %340 = arith.negf %339 : vector<2x32xf32>
    %341 = math.exp %340 : vector<2x32xf32>
    %cst_77 = arith.constant 1.000000e+00 : f32
    %342 = vector.broadcast %cst_77 : f32 to vector<2x32xf32>
    %343 = arith.addf %342, %341 : vector<2x32xf32>
    %344 = arith.divf %342, %343 : vector<2x32xf32>
    %345 = vector.extract_strided_slice %338 {offsets = [0, 32], sizes = [2, 32], strides = [1, 1]} : vector<2x128xf32> to vector<2x32xf32>
    %346 = arith.negf %345 : vector<2x32xf32>
    %347 = math.exp %346 : vector<2x32xf32>
    %cst_78 = arith.constant 1.000000e+00 : f32
    %348 = vector.broadcast %cst_78 : f32 to vector<2x32xf32>
    %349 = arith.addf %348, %347 : vector<2x32xf32>
    %350 = arith.divf %348, %349 : vector<2x32xf32>
    %351 = vector.extract_strided_slice %338 {offsets = [0, 64], sizes = [2, 32], strides = [1, 1]} : vector<2x128xf32> to vector<2x32xf32>
    %352 = math.tanh %351 : vector<2x32xf32>
    %353 = vector.extract_strided_slice %338 {offsets = [0, 96], sizes = [2, 32], strides = [1, 1]} : vector<2x128xf32> to vector<2x32xf32>
    %354 = arith.negf %353 : vector<2x32xf32>
    %355 = math.exp %354 : vector<2x32xf32>
    %cst_79 = arith.constant 1.000000e+00 : f32
    %356 = vector.broadcast %cst_79 : f32 to vector<2x32xf32>
    %357 = arith.addf %356, %355 : vector<2x32xf32>
    %358 = arith.divf %356, %357 : vector<2x32xf32>
    %359 = arith.mulf %350, %332 : vector<2x32xf32>
    %360 = arith.mulf %344, %352 : vector<2x32xf32>
    %361 = arith.addf %359, %360 : vector<2x32xf32>
    %362 = math.tanh %361 : vector<2x32xf32>
    %363 = arith.mulf %358, %362 : vector<2x32xf32>
    %c8_80 = arith.constant 8 : index
    %c32_81 = arith.constant 32 : index
    %364 = vector.load %arg18[%c8_80, %c32_81] : memref<16x64xf32, #tpu.memory_space<vmem>>, vector<2x32xf32>
    tpu.vector_store %arg18[%c8_80, %c32_81], %363 {strides = array<i32>} : memref<16x64xf32, #tpu.memory_space<vmem>>, vector<2x32xf32>,
    %365 = vector.extract_strided_slice %10 {offsets = [6, 0], sizes = [2, 128], strides = [1, 1]} : vector<16x128xf32> to vector<2x128xf32>
    %cst_82 = arith.constant dense<0.000000e+00> : vector<2x128xf32>
    %366 = tpu.matmul %363, %246, %cst_82 {dimension_numbers = #tpu.dot_dimension_numbers<[1], [0], [0], [1], [0, 0, 1, 1], [], []>} : vector<2x32xf32>, vector<32x128xf32>, vector<2x128xf32> -> vector<2x128xf32>
    %367 = arith.addf %365, %366 : vector<2x128xf32>
    %368 = vector.extract_strided_slice %367 {offsets = [0, 0], sizes = [2, 32], strides = [1, 1]} : vector<2x128xf32> to vector<2x32xf32>
    %369 = arith.negf %368 : vector<2x32xf32>
    %370 = math.exp %369 : vector<2x32xf32>
    %cst_83 = arith.constant 1.000000e+00 : f32
    %371 = vector.broadcast %cst_83 : f32 to vector<2x32xf32>
    %372 = arith.addf %371, %370 : vector<2x32xf32>
    %373 = arith.divf %371, %372 : vector<2x32xf32>
    %374 = vector.extract_strided_slice %367 {offsets = [0, 32], sizes = [2, 32], strides = [1, 1]} : vector<2x128xf32> to vector<2x32xf32>
    %375 = arith.negf %374 : vector<2x32xf32>
    %376 = math.exp %375 : vector<2x32xf32>
    %cst_84 = arith.constant 1.000000e+00 : f32
    %377 = vector.broadcast %cst_84 : f32 to vector<2x32xf32>
    %378 = arith.addf %377, %376 : vector<2x32xf32>
    %379 = arith.divf %377, %378 : vector<2x32xf32>
    %380 = vector.extract_strided_slice %367 {offsets = [0, 64], sizes = [2, 32], strides = [1, 1]} : vector<2x128xf32> to vector<2x32xf32>
    %381 = math.tanh %380 : vector<2x32xf32>
    %382 = vector.extract_strided_slice %367 {offsets = [0, 96], sizes = [2, 32], strides = [1, 1]} : vector<2x128xf32> to vector<2x32xf32>
    %383 = arith.negf %382 : vector<2x32xf32>
    %384 = math.exp %383 : vector<2x32xf32>
    %cst_85 = arith.constant 1.000000e+00 : f32
    %385 = vector.broadcast %cst_85 : f32 to vector<2x32xf32>
    %386 = arith.addf %385, %384 : vector<2x32xf32>
    %387 = arith.divf %385, %386 : vector<2x32xf32>
    %388 = arith.mulf %379, %361 : vector<2x32xf32>
    %389 = arith.mulf %373, %381 : vector<2x32xf32>
    %390 = arith.addf %388, %389 : vector<2x32xf32>
    %391 = math.tanh %390 : vector<2x32xf32>
    %392 = arith.mulf %387, %391 : vector<2x32xf32>
    %c6_86 = arith.constant 6 : index
    %c32_87 = arith.constant 32 : index
    %393 = vector.load %arg18[%c6_86, %c32_87] : memref<16x64xf32, #tpu.memory_space<vmem>>, vector<2x32xf32>
    tpu.vector_store %arg18[%c6_86, %c32_87], %392 {strides = array<i32>} : memref<16x64xf32, #tpu.memory_space<vmem>>, vector<2x32xf32>,
    %394 = vector.extract_strided_slice %10 {offsets = [4, 0], sizes = [2, 128], strides = [1, 1]} : vector<16x128xf32> to vector<2x128xf32>
    %cst_88 = arith.constant dense<0.000000e+00> : vector<2x128xf32>
    %395 = tpu.matmul %392, %246, %cst_88 {dimension_numbers = #tpu.dot_dimension_numbers<[1], [0], [0], [1], [0, 0, 1, 1], [], []>} : vector<2x32xf32>, vector<32x128xf32>, vector<2x128xf32> -> vector<2x128xf32>
    %396 = arith.addf %394, %395 : vector<2x128xf32>
    %397 = vector.extract_strided_slice %396 {offsets = [0, 0], sizes = [2, 32], strides = [1, 1]} : vector<2x128xf32> to vector<2x32xf32>
    %398 = arith.negf %397 : vector<2x32xf32>
    %399 = math.exp %398 : vector<2x32xf32>
    %cst_89 = arith.constant 1.000000e+00 : f32
    %400 = vector.broadcast %cst_89 : f32 to vector<2x32xf32>
    %401 = arith.addf %400, %399 : vector<2x32xf32>
    %402 = arith.divf %400, %401 : vector<2x32xf32>
    %403 = vector.extract_strided_slice %396 {offsets = [0, 32], sizes = [2, 32], strides = [1, 1]} : vector<2x128xf32> to vector<2x32xf32>
    %404 = arith.negf %403 : vector<2x32xf32>
    %405 = math.exp %404 : vector<2x32xf32>
    %cst_90 = arith.constant 1.000000e+00 : f32
    %406 = vector.broadcast %cst_90 : f32 to vector<2x32xf32>
    %407 = arith.addf %406, %405 : vector<2x32xf32>
    %408 = arith.divf %406, %407 : vector<2x32xf32>
    %409 = vector.extract_strided_slice %396 {offsets = [0, 64], sizes = [2, 32], strides = [1, 1]} : vector<2x128xf32> to vector<2x32xf32>
    %410 = math.tanh %409 : vector<2x32xf32>
    %411 = vector.extract_strided_slice %396 {offsets = [0, 96], sizes = [2, 32], strides = [1, 1]} : vector<2x128xf32> to vector<2x32xf32>
    %412 = arith.negf %411 : vector<2x32xf32>
    %413 = math.exp %412 : vector<2x32xf32>
    %cst_91 = arith.constant 1.000000e+00 : f32
    %414 = vector.broadcast %cst_91 : f32 to vector<2x32xf32>
    %415 = arith.addf %414, %413 : vector<2x32xf32>
    %416 = arith.divf %414, %415 : vector<2x32xf32>
    %417 = arith.mulf %408, %390 : vector<2x32xf32>
    %418 = arith.mulf %402, %410 : vector<2x32xf32>
    %419 = arith.addf %417, %418 : vector<2x32xf32>
    %420 = math.tanh %419 : vector<2x32xf32>
    %421 = arith.mulf %416, %420 : vector<2x32xf32>
    %c4_92 = arith.constant 4 : index
    %c32_93 = arith.constant 32 : index
    %422 = vector.load %arg18[%c4_92, %c32_93] : memref<16x64xf32, #tpu.memory_space<vmem>>, vector<2x32xf32>
    tpu.vector_store %arg18[%c4_92, %c32_93], %421 {strides = array<i32>} : memref<16x64xf32, #tpu.memory_space<vmem>>, vector<2x32xf32>,
    %423 = vector.extract_strided_slice %10 {offsets = [2, 0], sizes = [2, 128], strides = [1, 1]} : vector<16x128xf32> to vector<2x128xf32>
    %cst_94 = arith.constant dense<0.000000e+00> : vector<2x128xf32>
    %424 = tpu.matmul %421, %246, %cst_94 {dimension_numbers = #tpu.dot_dimension_numbers<[1], [0], [0], [1], [0, 0, 1, 1], [], []>} : vector<2x32xf32>, vector<32x128xf32>, vector<2x128xf32> -> vector<2x128xf32>
    %425 = arith.addf %423, %424 : vector<2x128xf32>
    %426 = vector.extract_strided_slice %425 {offsets = [0, 0], sizes = [2, 32], strides = [1, 1]} : vector<2x128xf32> to vector<2x32xf32>
    %427 = arith.negf %426 : vector<2x32xf32>
    %428 = math.exp %427 : vector<2x32xf32>
    %cst_95 = arith.constant 1.000000e+00 : f32
    %429 = vector.broadcast %cst_95 : f32 to vector<2x32xf32>
    %430 = arith.addf %429, %428 : vector<2x32xf32>
    %431 = arith.divf %429, %430 : vector<2x32xf32>
    %432 = vector.extract_strided_slice %425 {offsets = [0, 32], sizes = [2, 32], strides = [1, 1]} : vector<2x128xf32> to vector<2x32xf32>
    %433 = arith.negf %432 : vector<2x32xf32>
    %434 = math.exp %433 : vector<2x32xf32>
    %cst_96 = arith.constant 1.000000e+00 : f32
    %435 = vector.broadcast %cst_96 : f32 to vector<2x32xf32>
    %436 = arith.addf %435, %434 : vector<2x32xf32>
    %437 = arith.divf %435, %436 : vector<2x32xf32>
    %438 = vector.extract_strided_slice %425 {offsets = [0, 64], sizes = [2, 32], strides = [1, 1]} : vector<2x128xf32> to vector<2x32xf32>
    %439 = math.tanh %438 : vector<2x32xf32>
    %440 = vector.extract_strided_slice %425 {offsets = [0, 96], sizes = [2, 32], strides = [1, 1]} : vector<2x128xf32> to vector<2x32xf32>
    %441 = arith.negf %440 : vector<2x32xf32>
    %442 = math.exp %441 : vector<2x32xf32>
    %cst_97 = arith.constant 1.000000e+00 : f32
    %443 = vector.broadcast %cst_97 : f32 to vector<2x32xf32>
    %444 = arith.addf %443, %442 : vector<2x32xf32>
    %445 = arith.divf %443, %444 : vector<2x32xf32>
    %446 = arith.mulf %437, %419 : vector<2x32xf32>
    %447 = arith.mulf %431, %439 : vector<2x32xf32>
    %448 = arith.addf %446, %447 : vector<2x32xf32>
    %449 = math.tanh %448 : vector<2x32xf32>
    %450 = arith.mulf %445, %449 : vector<2x32xf32>
    %c2_98 = arith.constant 2 : index
    %c32_99 = arith.constant 32 : index
    %451 = vector.load %arg18[%c2_98, %c32_99] : memref<16x64xf32, #tpu.memory_space<vmem>>, vector<2x32xf32>
    tpu.vector_store %arg18[%c2_98, %c32_99], %450 {strides = array<i32>} : memref<16x64xf32, #tpu.memory_space<vmem>>, vector<2x32xf32>,
    %452 = vector.extract_strided_slice %10 {offsets = [0, 0], sizes = [2, 128], strides = [1, 1]} : vector<16x128xf32> to vector<2x128xf32>
    %cst_100 = arith.constant dense<0.000000e+00> : vector<2x128xf32>
    %453 = tpu.matmul %450, %246, %cst_100 {dimension_numbers = #tpu.dot_dimension_numbers<[1], [0], [0], [1], [0, 0, 1, 1], [], []>} : vector<2x32xf32>, vector<32x128xf32>, vector<2x128xf32> -> vector<2x128xf32>
    %454 = arith.addf %452, %453 : vector<2x128xf32>
    %455 = vector.extract_strided_slice %454 {offsets = [0, 0], sizes = [2, 32], strides = [1, 1]} : vector<2x128xf32> to vector<2x32xf32>
    %456 = arith.negf %455 : vector<2x32xf32>
    %457 = math.exp %456 : vector<2x32xf32>
    %cst_101 = arith.constant 1.000000e+00 : f32
    %458 = vector.broadcast %cst_101 : f32 to vector<2x32xf32>
    %459 = arith.addf %458, %457 : vector<2x32xf32>
    %460 = arith.divf %458, %459 : vector<2x32xf32>
    %461 = vector.extract_strided_slice %454 {offsets = [0, 32], sizes = [2, 32], strides = [1, 1]} : vector<2x128xf32> to vector<2x32xf32>
    %462 = arith.negf %461 : vector<2x32xf32>
    %463 = math.exp %462 : vector<2x32xf32>
    %cst_102 = arith.constant 1.000000e+00 : f32
    %464 = vector.broadcast %cst_102 : f32 to vector<2x32xf32>
    %465 = arith.addf %464, %463 : vector<2x32xf32>
    %466 = arith.divf %464, %465 : vector<2x32xf32>
    %467 = vector.extract_strided_slice %454 {offsets = [0, 64], sizes = [2, 32], strides = [1, 1]} : vector<2x128xf32> to vector<2x32xf32>
    %468 = math.tanh %467 : vector<2x32xf32>
    %469 = vector.extract_strided_slice %454 {offsets = [0, 96], sizes = [2, 32], strides = [1, 1]} : vector<2x128xf32> to vector<2x32xf32>
    %470 = arith.negf %469 : vector<2x32xf32>
    %471 = math.exp %470 : vector<2x32xf32>
    %cst_103 = arith.constant 1.000000e+00 : f32
    %472 = vector.broadcast %cst_103 : f32 to vector<2x32xf32>
    %473 = arith.addf %472, %471 : vector<2x32xf32>
    %474 = arith.divf %472, %473 : vector<2x32xf32>
    %475 = arith.mulf %466, %448 : vector<2x32xf32>
    %476 = arith.mulf %460, %468 : vector<2x32xf32>
    %477 = arith.addf %475, %476 : vector<2x32xf32>
    %478 = math.tanh %477 : vector<2x32xf32>
    %479 = arith.mulf %474, %478 : vector<2x32xf32>
    %c0_104 = arith.constant 0 : index
    %c32_105 = arith.constant 32 : index
    %480 = vector.load %arg18[%c0_104, %c32_105] : memref<16x64xf32, #tpu.memory_space<vmem>>, vector<2x32xf32>
    tpu.vector_store %arg18[%c0_104, %c32_105], %479 {strides = array<i32>} : memref<16x64xf32, #tpu.memory_space<vmem>>, vector<2x32xf32>,
    %c0_106 = arith.constant 0 : index
    %c0_107 = arith.constant 0 : index
    %481 = vector.load %arg18[%c0_106, %c0_107] : memref<16x64xf32, #tpu.memory_space<vmem>>, vector<16x64xf32>
    %c0_108 = arith.constant 0 : index
    %c0_109 = arith.constant 0 : index
    %482 = vector.load %arg7[%c0_108, %c0_109] : memref<64x128xf32, #tpu.memory_space<vmem>>, vector<64x128xf32>
    %cst_110 = arith.constant dense<0.000000e+00> : vector<16x128xf32>
    %483 = tpu.matmul %481, %482, %cst_110 {dimension_numbers = #tpu.dot_dimension_numbers<[1], [0], [0], [1], [0, 0, 1, 1], [], []>} : vector<16x64xf32>, vector<64x128xf32>, vector<16x128xf32> -> vector<16x128xf32>
    %c0_111 = arith.constant 0 : index
    %c0_112 = arith.constant 0 : index
    %484 = vector.load %arg9[%c0_111, %c0_112] : memref<1x128xf32, #tpu.memory_space<vmem>>, vector<1x128xf32>
    %485 = vector.broadcast %484 : vector<1x128xf32> to vector<16x128xf32>
    %486 = arith.addf %483, %485 : vector<16x128xf32>
    %c0_113 = arith.constant 0 : index
    %c0_114 = arith.constant 0 : index
    %487 = vector.load %arg10[%c0_113, %c0_114] : memref<64x128xf32, #tpu.memory_space<vmem>>, vector<64x128xf32>
    %cst_115 = arith.constant dense<0.000000e+00> : vector<16x128xf32>
    %488 = tpu.matmul %481, %487, %cst_115 {dimension_numbers = #tpu.dot_dimension_numbers<[1], [0], [0], [1], [0, 0, 1, 1], [], []>} : vector<16x64xf32>, vector<64x128xf32>, vector<16x128xf32> -> vector<16x128xf32>
    %c0_116 = arith.constant 0 : index
    %c0_117 = arith.constant 0 : index
    %489 = vector.load %arg12[%c0_116, %c0_117] : memref<1x128xf32, #tpu.memory_space<vmem>>, vector<1x128xf32>
    %490 = vector.broadcast %489 : vector<1x128xf32> to vector<16x128xf32>
    %491 = arith.addf %488, %490 : vector<16x128xf32>
    %c0_118 = arith.constant 0 : index
    %c0_119 = arith.constant 0 : index
    %492 = vector.load %arg8[%c0_118, %c0_119] : memref<32x128xf32, #tpu.memory_space<vmem>>, vector<32x128xf32>
    %cst_120 = arith.constant 0.000000e+00 : f32
    %493 = vector.broadcast %cst_120 : f32 to vector<2x32xf32>
    %cst_121 = arith.constant 0.000000e+00 : f32
    %494 = vector.broadcast %cst_121 : f32 to vector<2x32xf32>
    %495 = vector.extract_strided_slice %486 {offsets = [0, 0], sizes = [2, 128], strides = [1, 1]} : vector<16x128xf32> to vector<2x128xf32>
    %cst_122 = arith.constant dense<0.000000e+00> : vector<2x128xf32>
    %496 = tpu.matmul %493, %492, %cst_122 {dimension_numbers = #tpu.dot_dimension_numbers<[1], [0], [0], [1], [0, 0, 1, 1], [], []>} : vector<2x32xf32>, vector<32x128xf32>, vector<2x128xf32> -> vector<2x128xf32>
    %497 = arith.addf %495, %496 : vector<2x128xf32>
    %498 = vector.extract_strided_slice %497 {offsets = [0, 0], sizes = [2, 32], strides = [1, 1]} : vector<2x128xf32> to vector<2x32xf32>
    %499 = arith.negf %498 : vector<2x32xf32>
    %500 = math.exp %499 : vector<2x32xf32>
    %cst_123 = arith.constant 1.000000e+00 : f32
    %501 = vector.broadcast %cst_123 : f32 to vector<2x32xf32>
    %502 = arith.addf %501, %500 : vector<2x32xf32>
    %503 = arith.divf %501, %502 : vector<2x32xf32>
    %504 = vector.extract_strided_slice %497 {offsets = [0, 32], sizes = [2, 32], strides = [1, 1]} : vector<2x128xf32> to vector<2x32xf32>
    %505 = arith.negf %504 : vector<2x32xf32>
    %506 = math.exp %505 : vector<2x32xf32>
    %cst_124 = arith.constant 1.000000e+00 : f32
    %507 = vector.broadcast %cst_124 : f32 to vector<2x32xf32>
    %508 = arith.addf %507, %506 : vector<2x32xf32>
    %509 = arith.divf %507, %508 : vector<2x32xf32>
    %510 = vector.extract_strided_slice %497 {offsets = [0, 64], sizes = [2, 32], strides = [1, 1]} : vector<2x128xf32> to vector<2x32xf32>
    %511 = math.tanh %510 : vector<2x32xf32>
    %512 = vector.extract_strided_slice %497 {offsets = [0, 96], sizes = [2, 32], strides = [1, 1]} : vector<2x128xf32> to vector<2x32xf32>
    %513 = arith.negf %512 : vector<2x32xf32>
    %514 = math.exp %513 : vector<2x32xf32>
    %cst_125 = arith.constant 1.000000e+00 : f32
    %515 = vector.broadcast %cst_125 : f32 to vector<2x32xf32>
    %516 = arith.addf %515, %514 : vector<2x32xf32>
    %517 = arith.divf %515, %516 : vector<2x32xf32>
    %518 = arith.mulf %509, %494 : vector<2x32xf32>
    %519 = arith.mulf %503, %511 : vector<2x32xf32>
    %520 = arith.addf %518, %519 : vector<2x32xf32>
    %521 = math.tanh %520 : vector<2x32xf32>
    %522 = arith.mulf %517, %521 : vector<2x32xf32>
    %c0_126 = arith.constant 0 : index
    %c0_127 = arith.constant 0 : index
    %523 = vector.load %arg19[%c0_126, %c0_127] : memref<16x64xf32, #tpu.memory_space<vmem>>, vector<2x32xf32>
    tpu.vector_store %arg19[%c0_126, %c0_127], %522 {strides = array<i32>} : memref<16x64xf32, #tpu.memory_space<vmem>>, vector<2x32xf32>,
    %524 = vector.extract_strided_slice %486 {offsets = [2, 0], sizes = [2, 128], strides = [1, 1]} : vector<16x128xf32> to vector<2x128xf32>
    %cst_128 = arith.constant dense<0.000000e+00> : vector<2x128xf32>
    %525 = tpu.matmul %522, %492, %cst_128 {dimension_numbers = #tpu.dot_dimension_numbers<[1], [0], [0], [1], [0, 0, 1, 1], [], []>} : vector<2x32xf32>, vector<32x128xf32>, vector<2x128xf32> -> vector<2x128xf32>
    %526 = arith.addf %524, %525 : vector<2x128xf32>
    %527 = vector.extract_strided_slice %526 {offsets = [0, 0], sizes = [2, 32], strides = [1, 1]} : vector<2x128xf32> to vector<2x32xf32>
    %528 = arith.negf %527 : vector<2x32xf32>
    %529 = math.exp %528 : vector<2x32xf32>
    %cst_129 = arith.constant 1.000000e+00 : f32
    %530 = vector.broadcast %cst_129 : f32 to vector<2x32xf32>
    %531 = arith.addf %530, %529 : vector<2x32xf32>
    %532 = arith.divf %530, %531 : vector<2x32xf32>
    %533 = vector.extract_strided_slice %526 {offsets = [0, 32], sizes = [2, 32], strides = [1, 1]} : vector<2x128xf32> to vector<2x32xf32>
    %534 = arith.negf %533 : vector<2x32xf32>
    %535 = math.exp %534 : vector<2x32xf32>
    %cst_130 = arith.constant 1.000000e+00 : f32
    %536 = vector.broadcast %cst_130 : f32 to vector<2x32xf32>
    %537 = arith.addf %536, %535 : vector<2x32xf32>
    %538 = arith.divf %536, %537 : vector<2x32xf32>
    %539 = vector.extract_strided_slice %526 {offsets = [0, 64], sizes = [2, 32], strides = [1, 1]} : vector<2x128xf32> to vector<2x32xf32>
    %540 = math.tanh %539 : vector<2x32xf32>
    %541 = vector.extract_strided_slice %526 {offsets = [0, 96], sizes = [2, 32], strides = [1, 1]} : vector<2x128xf32> to vector<2x32xf32>
    %542 = arith.negf %541 : vector<2x32xf32>
    %543 = math.exp %542 : vector<2x32xf32>
    %cst_131 = arith.constant 1.000000e+00 : f32
    %544 = vector.broadcast %cst_131 : f32 to vector<2x32xf32>
    %545 = arith.addf %544, %543 : vector<2x32xf32>
    %546 = arith.divf %544, %545 : vector<2x32xf32>
    %547 = arith.mulf %538, %520 : vector<2x32xf32>
    %548 = arith.mulf %532, %540 : vector<2x32xf32>
    %549 = arith.addf %547, %548 : vector<2x32xf32>
    %550 = math.tanh %549 : vector<2x32xf32>
    %551 = arith.mulf %546, %550 : vector<2x32xf32>
    %c2_132 = arith.constant 2 : index
    %c0_133 = arith.constant 0 : index
    %552 = vector.load %arg19[%c2_132, %c0_133] : memref<16x64xf32, #tpu.memory_space<vmem>>, vector<2x32xf32>
    tpu.vector_store %arg19[%c2_132, %c0_133], %551 {strides = array<i32>} : memref<16x64xf32, #tpu.memory_space<vmem>>, vector<2x32xf32>,
    %553 = vector.extract_strided_slice %486 {offsets = [4, 0], sizes = [2, 128], strides = [1, 1]} : vector<16x128xf32> to vector<2x128xf32>
    %cst_134 = arith.constant dense<0.000000e+00> : vector<2x128xf32>
    %554 = tpu.matmul %551, %492, %cst_134 {dimension_numbers = #tpu.dot_dimension_numbers<[1], [0], [0], [1], [0, 0, 1, 1], [], []>} : vector<2x32xf32>, vector<32x128xf32>, vector<2x128xf32> -> vector<2x128xf32>
    %555 = arith.addf %553, %554 : vector<2x128xf32>
    %556 = vector.extract_strided_slice %555 {offsets = [0, 0], sizes = [2, 32], strides = [1, 1]} : vector<2x128xf32> to vector<2x32xf32>
    %557 = arith.negf %556 : vector<2x32xf32>
    %558 = math.exp %557 : vector<2x32xf32>
    %cst_135 = arith.constant 1.000000e+00 : f32
    %559 = vector.broadcast %cst_135 : f32 to vector<2x32xf32>
    %560 = arith.addf %559, %558 : vector<2x32xf32>
    %561 = arith.divf %559, %560 : vector<2x32xf32>
    %562 = vector.extract_strided_slice %555 {offsets = [0, 32], sizes = [2, 32], strides = [1, 1]} : vector<2x128xf32> to vector<2x32xf32>
    %563 = arith.negf %562 : vector<2x32xf32>
    %564 = math.exp %563 : vector<2x32xf32>
    %cst_136 = arith.constant 1.000000e+00 : f32
    %565 = vector.broadcast %cst_136 : f32 to vector<2x32xf32>
    %566 = arith.addf %565, %564 : vector<2x32xf32>
    %567 = arith.divf %565, %566 : vector<2x32xf32>
    %568 = vector.extract_strided_slice %555 {offsets = [0, 64], sizes = [2, 32], strides = [1, 1]} : vector<2x128xf32> to vector<2x32xf32>
    %569 = math.tanh %568 : vector<2x32xf32>
    %570 = vector.extract_strided_slice %555 {offsets = [0, 96], sizes = [2, 32], strides = [1, 1]} : vector<2x128xf32> to vector<2x32xf32>
    %571 = arith.negf %570 : vector<2x32xf32>
    %572 = math.exp %571 : vector<2x32xf32>
    %cst_137 = arith.constant 1.000000e+00 : f32
    %573 = vector.broadcast %cst_137 : f32 to vector<2x32xf32>
    %574 = arith.addf %573, %572 : vector<2x32xf32>
    %575 = arith.divf %573, %574 : vector<2x32xf32>
    %576 = arith.mulf %567, %549 : vector<2x32xf32>
    %577 = arith.mulf %561, %569 : vector<2x32xf32>
    %578 = arith.addf %576, %577 : vector<2x32xf32>
    %579 = math.tanh %578 : vector<2x32xf32>
    %580 = arith.mulf %575, %579 : vector<2x32xf32>
    %c4_138 = arith.constant 4 : index
    %c0_139 = arith.constant 0 : index
    %581 = vector.load %arg19[%c4_138, %c0_139] : memref<16x64xf32, #tpu.memory_space<vmem>>, vector<2x32xf32>
    tpu.vector_store %arg19[%c4_138, %c0_139], %580 {strides = array<i32>} : memref<16x64xf32, #tpu.memory_space<vmem>>, vector<2x32xf32>,
    %582 = vector.extract_strided_slice %486 {offsets = [6, 0], sizes = [2, 128], strides = [1, 1]} : vector<16x128xf32> to vector<2x128xf32>
    %cst_140 = arith.constant dense<0.000000e+00> : vector<2x128xf32>
    %583 = tpu.matmul %580, %492, %cst_140 {dimension_numbers = #tpu.dot_dimension_numbers<[1], [0], [0], [1], [0, 0, 1, 1], [], []>} : vector<2x32xf32>, vector<32x128xf32>, vector<2x128xf32> -> vector<2x128xf32>
    %584 = arith.addf %582, %583 : vector<2x128xf32>
    %585 = vector.extract_strided_slice %584 {offsets = [0, 0], sizes = [2, 32], strides = [1, 1]} : vector<2x128xf32> to vector<2x32xf32>
    %586 = arith.negf %585 : vector<2x32xf32>
    %587 = math.exp %586 : vector<2x32xf32>
    %cst_141 = arith.constant 1.000000e+00 : f32
    %588 = vector.broadcast %cst_141 : f32 to vector<2x32xf32>
    %589 = arith.addf %588, %587 : vector<2x32xf32>
    %590 = arith.divf %588, %589 : vector<2x32xf32>
    %591 = vector.extract_strided_slice %584 {offsets = [0, 32], sizes = [2, 32], strides = [1, 1]} : vector<2x128xf32> to vector<2x32xf32>
    %592 = arith.negf %591 : vector<2x32xf32>
    %593 = math.exp %592 : vector<2x32xf32>
    %cst_142 = arith.constant 1.000000e+00 : f32
    %594 = vector.broadcast %cst_142 : f32 to vector<2x32xf32>
    %595 = arith.addf %594, %593 : vector<2x32xf32>
    %596 = arith.divf %594, %595 : vector<2x32xf32>
    %597 = vector.extract_strided_slice %584 {offsets = [0, 64], sizes = [2, 32], strides = [1, 1]} : vector<2x128xf32> to vector<2x32xf32>
    %598 = math.tanh %597 : vector<2x32xf32>
    %599 = vector.extract_strided_slice %584 {offsets = [0, 96], sizes = [2, 32], strides = [1, 1]} : vector<2x128xf32> to vector<2x32xf32>
    %600 = arith.negf %599 : vector<2x32xf32>
    %601 = math.exp %600 : vector<2x32xf32>
    %cst_143 = arith.constant 1.000000e+00 : f32
    %602 = vector.broadcast %cst_143 : f32 to vector<2x32xf32>
    %603 = arith.addf %602, %601 : vector<2x32xf32>
    %604 = arith.divf %602, %603 : vector<2x32xf32>
    %605 = arith.mulf %596, %578 : vector<2x32xf32>
    %606 = arith.mulf %590, %598 : vector<2x32xf32>
    %607 = arith.addf %605, %606 : vector<2x32xf32>
    %608 = math.tanh %607 : vector<2x32xf32>
    %609 = arith.mulf %604, %608 : vector<2x32xf32>
    %c6_144 = arith.constant 6 : index
    %c0_145 = arith.constant 0 : index
    %610 = vector.load %arg19[%c6_144, %c0_145] : memref<16x64xf32, #tpu.memory_space<vmem>>, vector<2x32xf32>
    tpu.vector_store %arg19[%c6_144, %c0_145], %609 {strides = array<i32>} : memref<16x64xf32, #tpu.memory_space<vmem>>, vector<2x32xf32>,
    %611 = vector.extract_strided_slice %486 {offsets = [8, 0], sizes = [2, 128], strides = [1, 1]} : vector<16x128xf32> to vector<2x128xf32>
    %cst_146 = arith.constant dense<0.000000e+00> : vector<2x128xf32>
    %612 = tpu.matmul %609, %492, %cst_146 {dimension_numbers = #tpu.dot_dimension_numbers<[1], [0], [0], [1], [0, 0, 1, 1], [], []>} : vector<2x32xf32>, vector<32x128xf32>, vector<2x128xf32> -> vector<2x128xf32>
    %613 = arith.addf %611, %612 : vector<2x128xf32>
    %614 = vector.extract_strided_slice %613 {offsets = [0, 0], sizes = [2, 32], strides = [1, 1]} : vector<2x128xf32> to vector<2x32xf32>
    %615 = arith.negf %614 : vector<2x32xf32>
    %616 = math.exp %615 : vector<2x32xf32>
    %cst_147 = arith.constant 1.000000e+00 : f32
    %617 = vector.broadcast %cst_147 : f32 to vector<2x32xf32>
    %618 = arith.addf %617, %616 : vector<2x32xf32>
    %619 = arith.divf %617, %618 : vector<2x32xf32>
    %620 = vector.extract_strided_slice %613 {offsets = [0, 32], sizes = [2, 32], strides = [1, 1]} : vector<2x128xf32> to vector<2x32xf32>
    %621 = arith.negf %620 : vector<2x32xf32>
    %622 = math.exp %621 : vector<2x32xf32>
    %cst_148 = arith.constant 1.000000e+00 : f32
    %623 = vector.broadcast %cst_148 : f32 to vector<2x32xf32>
    %624 = arith.addf %623, %622 : vector<2x32xf32>
    %625 = arith.divf %623, %624 : vector<2x32xf32>
    %626 = vector.extract_strided_slice %613 {offsets = [0, 64], sizes = [2, 32], strides = [1, 1]} : vector<2x128xf32> to vector<2x32xf32>
    %627 = math.tanh %626 : vector<2x32xf32>
    %628 = vector.extract_strided_slice %613 {offsets = [0, 96], sizes = [2, 32], strides = [1, 1]} : vector<2x128xf32> to vector<2x32xf32>
    %629 = arith.negf %628 : vector<2x32xf32>
    %630 = math.exp %629 : vector<2x32xf32>
    %cst_149 = arith.constant 1.000000e+00 : f32
    %631 = vector.broadcast %cst_149 : f32 to vector<2x32xf32>
    %632 = arith.addf %631, %630 : vector<2x32xf32>
    %633 = arith.divf %631, %632 : vector<2x32xf32>
    %634 = arith.mulf %625, %607 : vector<2x32xf32>
    %635 = arith.mulf %619, %627 : vector<2x32xf32>
    %636 = arith.addf %634, %635 : vector<2x32xf32>
    %637 = math.tanh %636 : vector<2x32xf32>
    %638 = arith.mulf %633, %637 : vector<2x32xf32>
    %c8_150 = arith.constant 8 : index
    %c0_151 = arith.constant 0 : index
    %639 = vector.load %arg19[%c8_150, %c0_151] : memref<16x64xf32, #tpu.memory_space<vmem>>, vector<2x32xf32>
    tpu.vector_store %arg19[%c8_150, %c0_151], %638 {strides = array<i32>} : memref<16x64xf32, #tpu.memory_space<vmem>>, vector<2x32xf32>,
    %640 = vector.extract_strided_slice %486 {offsets = [10, 0], sizes = [2, 128], strides = [1, 1]} : vector<16x128xf32> to vector<2x128xf32>
    %cst_152 = arith.constant dense<0.000000e+00> : vector<2x128xf32>
    %641 = tpu.matmul %638, %492, %cst_152 {dimension_numbers = #tpu.dot_dimension_numbers<[1], [0], [0], [1], [0, 0, 1, 1], [], []>} : vector<2x32xf32>, vector<32x128xf32>, vector<2x128xf32> -> vector<2x128xf32>
    %642 = arith.addf %640, %641 : vector<2x128xf32>
    %643 = vector.extract_strided_slice %642 {offsets = [0, 0], sizes = [2, 32], strides = [1, 1]} : vector<2x128xf32> to vector<2x32xf32>
    %644 = arith.negf %643 : vector<2x32xf32>
    %645 = math.exp %644 : vector<2x32xf32>
    %cst_153 = arith.constant 1.000000e+00 : f32
    %646 = vector.broadcast %cst_153 : f32 to vector<2x32xf32>
    %647 = arith.addf %646, %645 : vector<2x32xf32>
    %648 = arith.divf %646, %647 : vector<2x32xf32>
    %649 = vector.extract_strided_slice %642 {offsets = [0, 32], sizes = [2, 32], strides = [1, 1]} : vector<2x128xf32> to vector<2x32xf32>
    %650 = arith.negf %649 : vector<2x32xf32>
    %651 = math.exp %650 : vector<2x32xf32>
    %cst_154 = arith.constant 1.000000e+00 : f32
    %652 = vector.broadcast %cst_154 : f32 to vector<2x32xf32>
    %653 = arith.addf %652, %651 : vector<2x32xf32>
    %654 = arith.divf %652, %653 : vector<2x32xf32>
    %655 = vector.extract_strided_slice %642 {offsets = [0, 64], sizes = [2, 32], strides = [1, 1]} : vector<2x128xf32> to vector<2x32xf32>
    %656 = math.tanh %655 : vector<2x32xf32>
    %657 = vector.extract_strided_slice %642 {offsets = [0, 96], sizes = [2, 32], strides = [1, 1]} : vector<2x128xf32> to vector<2x32xf32>
    %658 = arith.negf %657 : vector<2x32xf32>
    %659 = math.exp %658 : vector<2x32xf32>
    %cst_155 = arith.constant 1.000000e+00 : f32
    %660 = vector.broadcast %cst_155 : f32 to vector<2x32xf32>
    %661 = arith.addf %660, %659 : vector<2x32xf32>
    %662 = arith.divf %660, %661 : vector<2x32xf32>
    %663 = arith.mulf %654, %636 : vector<2x32xf32>
    %664 = arith.mulf %648, %656 : vector<2x32xf32>
    %665 = arith.addf %663, %664 : vector<2x32xf32>
    %666 = math.tanh %665 : vector<2x32xf32>
    %667 = arith.mulf %662, %666 : vector<2x32xf32>
    %c10_156 = arith.constant 10 : index
    %c0_157 = arith.constant 0 : index
    %668 = vector.load %arg19[%c10_156, %c0_157] : memref<16x64xf32, #tpu.memory_space<vmem>>, vector<2x32xf32>
    tpu.vector_store %arg19[%c10_156, %c0_157], %667 {strides = array<i32>} : memref<16x64xf32, #tpu.memory_space<vmem>>, vector<2x32xf32>,
    %669 = vector.extract_strided_slice %486 {offsets = [12, 0], sizes = [2, 128], strides = [1, 1]} : vector<16x128xf32> to vector<2x128xf32>
    %cst_158 = arith.constant dense<0.000000e+00> : vector<2x128xf32>
    %670 = tpu.matmul %667, %492, %cst_158 {dimension_numbers = #tpu.dot_dimension_numbers<[1], [0], [0], [1], [0, 0, 1, 1], [], []>} : vector<2x32xf32>, vector<32x128xf32>, vector<2x128xf32> -> vector<2x128xf32>
    %671 = arith.addf %669, %670 : vector<2x128xf32>
    %672 = vector.extract_strided_slice %671 {offsets = [0, 0], sizes = [2, 32], strides = [1, 1]} : vector<2x128xf32> to vector<2x32xf32>
    %673 = arith.negf %672 : vector<2x32xf32>
    %674 = math.exp %673 : vector<2x32xf32>
    %cst_159 = arith.constant 1.000000e+00 : f32
    %675 = vector.broadcast %cst_159 : f32 to vector<2x32xf32>
    %676 = arith.addf %675, %674 : vector<2x32xf32>
    %677 = arith.divf %675, %676 : vector<2x32xf32>
    %678 = vector.extract_strided_slice %671 {offsets = [0, 32], sizes = [2, 32], strides = [1, 1]} : vector<2x128xf32> to vector<2x32xf32>
    %679 = arith.negf %678 : vector<2x32xf32>
    %680 = math.exp %679 : vector<2x32xf32>
    %cst_160 = arith.constant 1.000000e+00 : f32
    %681 = vector.broadcast %cst_160 : f32 to vector<2x32xf32>
    %682 = arith.addf %681, %680 : vector<2x32xf32>
    %683 = arith.divf %681, %682 : vector<2x32xf32>
    %684 = vector.extract_strided_slice %671 {offsets = [0, 64], sizes = [2, 32], strides = [1, 1]} : vector<2x128xf32> to vector<2x32xf32>
    %685 = math.tanh %684 : vector<2x32xf32>
    %686 = vector.extract_strided_slice %671 {offsets = [0, 96], sizes = [2, 32], strides = [1, 1]} : vector<2x128xf32> to vector<2x32xf32>
    %687 = arith.negf %686 : vector<2x32xf32>
    %688 = math.exp %687 : vector<2x32xf32>
    %cst_161 = arith.constant 1.000000e+00 : f32
    %689 = vector.broadcast %cst_161 : f32 to vector<2x32xf32>
    %690 = arith.addf %689, %688 : vector<2x32xf32>
    %691 = arith.divf %689, %690 : vector<2x32xf32>
    %692 = arith.mulf %683, %665 : vector<2x32xf32>
    %693 = arith.mulf %677, %685 : vector<2x32xf32>
    %694 = arith.addf %692, %693 : vector<2x32xf32>
    %695 = math.tanh %694 : vector<2x32xf32>
    %696 = arith.mulf %691, %695 : vector<2x32xf32>
    %c12_162 = arith.constant 12 : index
    %c0_163 = arith.constant 0 : index
    %697 = vector.load %arg19[%c12_162, %c0_163] : memref<16x64xf32, #tpu.memory_space<vmem>>, vector<2x32xf32>
    tpu.vector_store %arg19[%c12_162, %c0_163], %696 {strides = array<i32>} : memref<16x64xf32, #tpu.memory_space<vmem>>, vector<2x32xf32>,
    %698 = vector.extract_strided_slice %486 {offsets = [14, 0], sizes = [2, 128], strides = [1, 1]} : vector<16x128xf32> to vector<2x128xf32>
    %cst_164 = arith.constant dense<0.000000e+00> : vector<2x128xf32>
    %699 = tpu.matmul %696, %492, %cst_164 {dimension_numbers = #tpu.dot_dimension_numbers<[1], [0], [0], [1], [0, 0, 1, 1], [], []>} : vector<2x32xf32>, vector<32x128xf32>, vector<2x128xf32> -> vector<2x128xf32>
    %700 = arith.addf %698, %699 : vector<2x128xf32>
    %701 = vector.extract_strided_slice %700 {offsets = [0, 0], sizes = [2, 32], strides = [1, 1]} : vector<2x128xf32> to vector<2x32xf32>
    %702 = arith.negf %701 : vector<2x32xf32>
    %703 = math.exp %702 : vector<2x32xf32>
    %cst_165 = arith.constant 1.000000e+00 : f32
    %704 = vector.broadcast %cst_165 : f32 to vector<2x32xf32>
    %705 = arith.addf %704, %703 : vector<2x32xf32>
    %706 = arith.divf %704, %705 : vector<2x32xf32>
    %707 = vector.extract_strided_slice %700 {offsets = [0, 32], sizes = [2, 32], strides = [1, 1]} : vector<2x128xf32> to vector<2x32xf32>
    %708 = arith.negf %707 : vector<2x32xf32>
    %709 = math.exp %708 : vector<2x32xf32>
    %cst_166 = arith.constant 1.000000e+00 : f32
    %710 = vector.broadcast %cst_166 : f32 to vector<2x32xf32>
    %711 = arith.addf %710, %709 : vector<2x32xf32>
    %712 = arith.divf %710, %711 : vector<2x32xf32>
    %713 = vector.extract_strided_slice %700 {offsets = [0, 64], sizes = [2, 32], strides = [1, 1]} : vector<2x128xf32> to vector<2x32xf32>
    %714 = math.tanh %713 : vector<2x32xf32>
    %715 = vector.extract_strided_slice %700 {offsets = [0, 96], sizes = [2, 32], strides = [1, 1]} : vector<2x128xf32> to vector<2x32xf32>
    %716 = arith.negf %715 : vector<2x32xf32>
    %717 = math.exp %716 : vector<2x32xf32>
    %cst_167 = arith.constant 1.000000e+00 : f32
    %718 = vector.broadcast %cst_167 : f32 to vector<2x32xf32>
    %719 = arith.addf %718, %717 : vector<2x32xf32>
    %720 = arith.divf %718, %719 : vector<2x32xf32>
    %721 = arith.mulf %712, %694 : vector<2x32xf32>
    %722 = arith.mulf %706, %714 : vector<2x32xf32>
    %723 = arith.addf %721, %722 : vector<2x32xf32>
    %724 = math.tanh %723 : vector<2x32xf32>
    %725 = arith.mulf %720, %724 : vector<2x32xf32>
    %c14_168 = arith.constant 14 : index
    %c0_169 = arith.constant 0 : index
    %726 = vector.load %arg19[%c14_168, %c0_169] : memref<16x64xf32, #tpu.memory_space<vmem>>, vector<2x32xf32>
    tpu.vector_store %arg19[%c14_168, %c0_169], %725 {strides = array<i32>} : memref<16x64xf32, #tpu.memory_space<vmem>>, vector<2x32xf32>,
    %c0_170 = arith.constant 0 : index
    %c0_171 = arith.constant 0 : index
    %727 = vector.load %arg11[%c0_170, %c0_171] : memref<32x128xf32, #tpu.memory_space<vmem>>, vector<32x128xf32>
    %cst_172 = arith.constant 0.000000e+00 : f32
    %728 = vector.broadcast %cst_172 : f32 to vector<2x32xf32>
    %cst_173 = arith.constant 0.000000e+00 : f32
    %729 = vector.broadcast %cst_173 : f32 to vector<2x32xf32>
    %730 = vector.extract_strided_slice %491 {offsets = [14, 0], sizes = [2, 128], strides = [1, 1]} : vector<16x128xf32> to vector<2x128xf32>
    %cst_174 = arith.constant dense<0.000000e+00> : vector<2x128xf32>
    %731 = tpu.matmul %728, %727, %cst_174 {dimension_numbers = #tpu.dot_dimension_numbers<[1], [0], [0], [1], [0, 0, 1, 1], [], []>} : vector<2x32xf32>, vector<32x128xf32>, vector<2x128xf32> -> vector<2x128xf32>
    %732 = arith.addf %730, %731 : vector<2x128xf32>
    %733 = vector.extract_strided_slice %732 {offsets = [0, 0], sizes = [2, 32], strides = [1, 1]} : vector<2x128xf32> to vector<2x32xf32>
    %734 = arith.negf %733 : vector<2x32xf32>
    %735 = math.exp %734 : vector<2x32xf32>
    %cst_175 = arith.constant 1.000000e+00 : f32
    %736 = vector.broadcast %cst_175 : f32 to vector<2x32xf32>
    %737 = arith.addf %736, %735 : vector<2x32xf32>
    %738 = arith.divf %736, %737 : vector<2x32xf32>
    %739 = vector.extract_strided_slice %732 {offsets = [0, 32], sizes = [2, 32], strides = [1, 1]} : vector<2x128xf32> to vector<2x32xf32>
    %740 = arith.negf %739 : vector<2x32xf32>
    %741 = math.exp %740 : vector<2x32xf32>
    %cst_176 = arith.constant 1.000000e+00 : f32
    %742 = vector.broadcast %cst_176 : f32 to vector<2x32xf32>
    %743 = arith.addf %742, %741 : vector<2x32xf32>
    %744 = arith.divf %742, %743 : vector<2x32xf32>
    %745 = vector.extract_strided_slice %732 {offsets = [0, 64], sizes = [2, 32], strides = [1, 1]} : vector<2x128xf32> to vector<2x32xf32>
    %746 = math.tanh %745 : vector<2x32xf32>
    %747 = vector.extract_strided_slice %732 {offsets = [0, 96], sizes = [2, 32], strides = [1, 1]} : vector<2x128xf32> to vector<2x32xf32>
    %748 = arith.negf %747 : vector<2x32xf32>
    %749 = math.exp %748 : vector<2x32xf32>
    %cst_177 = arith.constant 1.000000e+00 : f32
    %750 = vector.broadcast %cst_177 : f32 to vector<2x32xf32>
    %751 = arith.addf %750, %749 : vector<2x32xf32>
    %752 = arith.divf %750, %751 : vector<2x32xf32>
    %753 = arith.mulf %744, %729 : vector<2x32xf32>
    %754 = arith.mulf %738, %746 : vector<2x32xf32>
    %755 = arith.addf %753, %754 : vector<2x32xf32>
    %756 = math.tanh %755 : vector<2x32xf32>
    %757 = arith.mulf %752, %756 : vector<2x32xf32>
    %c14_178 = arith.constant 14 : index
    %c32_179 = arith.constant 32 : index
    %758 = vector.load %arg19[%c14_178, %c32_179] : memref<16x64xf32, #tpu.memory_space<vmem>>, vector<2x32xf32>
    tpu.vector_store %arg19[%c14_178, %c32_179], %757 {strides = array<i32>} : memref<16x64xf32, #tpu.memory_space<vmem>>, vector<2x32xf32>,
    %759 = vector.extract_strided_slice %491 {offsets = [12, 0], sizes = [2, 128], strides = [1, 1]} : vector<16x128xf32> to vector<2x128xf32>
    %cst_180 = arith.constant dense<0.000000e+00> : vector<2x128xf32>
    %760 = tpu.matmul %757, %727, %cst_180 {dimension_numbers = #tpu.dot_dimension_numbers<[1], [0], [0], [1], [0, 0, 1, 1], [], []>} : vector<2x32xf32>, vector<32x128xf32>, vector<2x128xf32> -> vector<2x128xf32>
    %761 = arith.addf %759, %760 : vector<2x128xf32>
    %762 = vector.extract_strided_slice %761 {offsets = [0, 0], sizes = [2, 32], strides = [1, 1]} : vector<2x128xf32> to vector<2x32xf32>
    %763 = arith.negf %762 : vector<2x32xf32>
    %764 = math.exp %763 : vector<2x32xf32>
    %cst_181 = arith.constant 1.000000e+00 : f32
    %765 = vector.broadcast %cst_181 : f32 to vector<2x32xf32>
    %766 = arith.addf %765, %764 : vector<2x32xf32>
    %767 = arith.divf %765, %766 : vector<2x32xf32>
    %768 = vector.extract_strided_slice %761 {offsets = [0, 32], sizes = [2, 32], strides = [1, 1]} : vector<2x128xf32> to vector<2x32xf32>
    %769 = arith.negf %768 : vector<2x32xf32>
    %770 = math.exp %769 : vector<2x32xf32>
    %cst_182 = arith.constant 1.000000e+00 : f32
    %771 = vector.broadcast %cst_182 : f32 to vector<2x32xf32>
    %772 = arith.addf %771, %770 : vector<2x32xf32>
    %773 = arith.divf %771, %772 : vector<2x32xf32>
    %774 = vector.extract_strided_slice %761 {offsets = [0, 64], sizes = [2, 32], strides = [1, 1]} : vector<2x128xf32> to vector<2x32xf32>
    %775 = math.tanh %774 : vector<2x32xf32>
    %776 = vector.extract_strided_slice %761 {offsets = [0, 96], sizes = [2, 32], strides = [1, 1]} : vector<2x128xf32> to vector<2x32xf32>
    %777 = arith.negf %776 : vector<2x32xf32>
    %778 = math.exp %777 : vector<2x32xf32>
    %cst_183 = arith.constant 1.000000e+00 : f32
    %779 = vector.broadcast %cst_183 : f32 to vector<2x32xf32>
    %780 = arith.addf %779, %778 : vector<2x32xf32>
    %781 = arith.divf %779, %780 : vector<2x32xf32>
    %782 = arith.mulf %773, %755 : vector<2x32xf32>
    %783 = arith.mulf %767, %775 : vector<2x32xf32>
    %784 = arith.addf %782, %783 : vector<2x32xf32>
    %785 = math.tanh %784 : vector<2x32xf32>
    %786 = arith.mulf %781, %785 : vector<2x32xf32>
    %c12_184 = arith.constant 12 : index
    %c32_185 = arith.constant 32 : index
    %787 = vector.load %arg19[%c12_184, %c32_185] : memref<16x64xf32, #tpu.memory_space<vmem>>, vector<2x32xf32>
    tpu.vector_store %arg19[%c12_184, %c32_185], %786 {strides = array<i32>} : memref<16x64xf32, #tpu.memory_space<vmem>>, vector<2x32xf32>,
    %788 = vector.extract_strided_slice %491 {offsets = [10, 0], sizes = [2, 128], strides = [1, 1]} : vector<16x128xf32> to vector<2x128xf32>
    %cst_186 = arith.constant dense<0.000000e+00> : vector<2x128xf32>
    %789 = tpu.matmul %786, %727, %cst_186 {dimension_numbers = #tpu.dot_dimension_numbers<[1], [0], [0], [1], [0, 0, 1, 1], [], []>} : vector<2x32xf32>, vector<32x128xf32>, vector<2x128xf32> -> vector<2x128xf32>
    %790 = arith.addf %788, %789 : vector<2x128xf32>
    %791 = vector.extract_strided_slice %790 {offsets = [0, 0], sizes = [2, 32], strides = [1, 1]} : vector<2x128xf32> to vector<2x32xf32>
    %792 = arith.negf %791 : vector<2x32xf32>
    %793 = math.exp %792 : vector<2x32xf32>
    %cst_187 = arith.constant 1.000000e+00 : f32
    %794 = vector.broadcast %cst_187 : f32 to vector<2x32xf32>
    %795 = arith.addf %794, %793 : vector<2x32xf32>
    %796 = arith.divf %794, %795 : vector<2x32xf32>
    %797 = vector.extract_strided_slice %790 {offsets = [0, 32], sizes = [2, 32], strides = [1, 1]} : vector<2x128xf32> to vector<2x32xf32>
    %798 = arith.negf %797 : vector<2x32xf32>
    %799 = math.exp %798 : vector<2x32xf32>
    %cst_188 = arith.constant 1.000000e+00 : f32
    %800 = vector.broadcast %cst_188 : f32 to vector<2x32xf32>
    %801 = arith.addf %800, %799 : vector<2x32xf32>
    %802 = arith.divf %800, %801 : vector<2x32xf32>
    %803 = vector.extract_strided_slice %790 {offsets = [0, 64], sizes = [2, 32], strides = [1, 1]} : vector<2x128xf32> to vector<2x32xf32>
    %804 = math.tanh %803 : vector<2x32xf32>
    %805 = vector.extract_strided_slice %790 {offsets = [0, 96], sizes = [2, 32], strides = [1, 1]} : vector<2x128xf32> to vector<2x32xf32>
    %806 = arith.negf %805 : vector<2x32xf32>
    %807 = math.exp %806 : vector<2x32xf32>
    %cst_189 = arith.constant 1.000000e+00 : f32
    %808 = vector.broadcast %cst_189 : f32 to vector<2x32xf32>
    %809 = arith.addf %808, %807 : vector<2x32xf32>
    %810 = arith.divf %808, %809 : vector<2x32xf32>
    %811 = arith.mulf %802, %784 : vector<2x32xf32>
    %812 = arith.mulf %796, %804 : vector<2x32xf32>
    %813 = arith.addf %811, %812 : vector<2x32xf32>
    %814 = math.tanh %813 : vector<2x32xf32>
    %815 = arith.mulf %810, %814 : vector<2x32xf32>
    %c10_190 = arith.constant 10 : index
    %c32_191 = arith.constant 32 : index
    %816 = vector.load %arg19[%c10_190, %c32_191] : memref<16x64xf32, #tpu.memory_space<vmem>>, vector<2x32xf32>
    tpu.vector_store %arg19[%c10_190, %c32_191], %815 {strides = array<i32>} : memref<16x64xf32, #tpu.memory_space<vmem>>, vector<2x32xf32>,
    %817 = vector.extract_strided_slice %491 {offsets = [8, 0], sizes = [2, 128], strides = [1, 1]} : vector<16x128xf32> to vector<2x128xf32>
    %cst_192 = arith.constant dense<0.000000e+00> : vector<2x128xf32>
    %818 = tpu.matmul %815, %727, %cst_192 {dimension_numbers = #tpu.dot_dimension_numbers<[1], [0], [0], [1], [0, 0, 1, 1], [], []>} : vector<2x32xf32>, vector<32x128xf32>, vector<2x128xf32> -> vector<2x128xf32>
    %819 = arith.addf %817, %818 : vector<2x128xf32>
    %820 = vector.extract_strided_slice %819 {offsets = [0, 0], sizes = [2, 32], strides = [1, 1]} : vector<2x128xf32> to vector<2x32xf32>
    %821 = arith.negf %820 : vector<2x32xf32>
    %822 = math.exp %821 : vector<2x32xf32>
    %cst_193 = arith.constant 1.000000e+00 : f32
    %823 = vector.broadcast %cst_193 : f32 to vector<2x32xf32>
    %824 = arith.addf %823, %822 : vector<2x32xf32>
    %825 = arith.divf %823, %824 : vector<2x32xf32>
    %826 = vector.extract_strided_slice %819 {offsets = [0, 32], sizes = [2, 32], strides = [1, 1]} : vector<2x128xf32> to vector<2x32xf32>
    %827 = arith.negf %826 : vector<2x32xf32>
    %828 = math.exp %827 : vector<2x32xf32>
    %cst_194 = arith.constant 1.000000e+00 : f32
    %829 = vector.broadcast %cst_194 : f32 to vector<2x32xf32>
    %830 = arith.addf %829, %828 : vector<2x32xf32>
    %831 = arith.divf %829, %830 : vector<2x32xf32>
    %832 = vector.extract_strided_slice %819 {offsets = [0, 64], sizes = [2, 32], strides = [1, 1]} : vector<2x128xf32> to vector<2x32xf32>
    %833 = math.tanh %832 : vector<2x32xf32>
    %834 = vector.extract_strided_slice %819 {offsets = [0, 96], sizes = [2, 32], strides = [1, 1]} : vector<2x128xf32> to vector<2x32xf32>
    %835 = arith.negf %834 : vector<2x32xf32>
    %836 = math.exp %835 : vector<2x32xf32>
    %cst_195 = arith.constant 1.000000e+00 : f32
    %837 = vector.broadcast %cst_195 : f32 to vector<2x32xf32>
    %838 = arith.addf %837, %836 : vector<2x32xf32>
    %839 = arith.divf %837, %838 : vector<2x32xf32>
    %840 = arith.mulf %831, %813 : vector<2x32xf32>
    %841 = arith.mulf %825, %833 : vector<2x32xf32>
    %842 = arith.addf %840, %841 : vector<2x32xf32>
    %843 = math.tanh %842 : vector<2x32xf32>
    %844 = arith.mulf %839, %843 : vector<2x32xf32>
    %c8_196 = arith.constant 8 : index
    %c32_197 = arith.constant 32 : index
    %845 = vector.load %arg19[%c8_196, %c32_197] : memref<16x64xf32, #tpu.memory_space<vmem>>, vector<2x32xf32>
    tpu.vector_store %arg19[%c8_196, %c32_197], %844 {strides = array<i32>} : memref<16x64xf32, #tpu.memory_space<vmem>>, vector<2x32xf32>,
    %846 = vector.extract_strided_slice %491 {offsets = [6, 0], sizes = [2, 128], strides = [1, 1]} : vector<16x128xf32> to vector<2x128xf32>
    %cst_198 = arith.constant dense<0.000000e+00> : vector<2x128xf32>
    %847 = tpu.matmul %844, %727, %cst_198 {dimension_numbers = #tpu.dot_dimension_numbers<[1], [0], [0], [1], [0, 0, 1, 1], [], []>} : vector<2x32xf32>, vector<32x128xf32>, vector<2x128xf32> -> vector<2x128xf32>
    %848 = arith.addf %846, %847 : vector<2x128xf32>
    %849 = vector.extract_strided_slice %848 {offsets = [0, 0], sizes = [2, 32], strides = [1, 1]} : vector<2x128xf32> to vector<2x32xf32>
    %850 = arith.negf %849 : vector<2x32xf32>
    %851 = math.exp %850 : vector<2x32xf32>
    %cst_199 = arith.constant 1.000000e+00 : f32
    %852 = vector.broadcast %cst_199 : f32 to vector<2x32xf32>
    %853 = arith.addf %852, %851 : vector<2x32xf32>
    %854 = arith.divf %852, %853 : vector<2x32xf32>
    %855 = vector.extract_strided_slice %848 {offsets = [0, 32], sizes = [2, 32], strides = [1, 1]} : vector<2x128xf32> to vector<2x32xf32>
    %856 = arith.negf %855 : vector<2x32xf32>
    %857 = math.exp %856 : vector<2x32xf32>
    %cst_200 = arith.constant 1.000000e+00 : f32
    %858 = vector.broadcast %cst_200 : f32 to vector<2x32xf32>
    %859 = arith.addf %858, %857 : vector<2x32xf32>
    %860 = arith.divf %858, %859 : vector<2x32xf32>
    %861 = vector.extract_strided_slice %848 {offsets = [0, 64], sizes = [2, 32], strides = [1, 1]} : vector<2x128xf32> to vector<2x32xf32>
    %862 = math.tanh %861 : vector<2x32xf32>
    %863 = vector.extract_strided_slice %848 {offsets = [0, 96], sizes = [2, 32], strides = [1, 1]} : vector<2x128xf32> to vector<2x32xf32>
    %864 = arith.negf %863 : vector<2x32xf32>
    %865 = math.exp %864 : vector<2x32xf32>
    %cst_201 = arith.constant 1.000000e+00 : f32
    %866 = vector.broadcast %cst_201 : f32 to vector<2x32xf32>
    %867 = arith.addf %866, %865 : vector<2x32xf32>
    %868 = arith.divf %866, %867 : vector<2x32xf32>
    %869 = arith.mulf %860, %842 : vector<2x32xf32>
    %870 = arith.mulf %854, %862 : vector<2x32xf32>
    %871 = arith.addf %869, %870 : vector<2x32xf32>
    %872 = math.tanh %871 : vector<2x32xf32>
    %873 = arith.mulf %868, %872 : vector<2x32xf32>
    %c6_202 = arith.constant 6 : index
    %c32_203 = arith.constant 32 : index
    %874 = vector.load %arg19[%c6_202, %c32_203] : memref<16x64xf32, #tpu.memory_space<vmem>>, vector<2x32xf32>
    tpu.vector_store %arg19[%c6_202, %c32_203], %873 {strides = array<i32>} : memref<16x64xf32, #tpu.memory_space<vmem>>, vector<2x32xf32>,
    %875 = vector.extract_strided_slice %491 {offsets = [4, 0], sizes = [2, 128], strides = [1, 1]} : vector<16x128xf32> to vector<2x128xf32>
    %cst_204 = arith.constant dense<0.000000e+00> : vector<2x128xf32>
    %876 = tpu.matmul %873, %727, %cst_204 {dimension_numbers = #tpu.dot_dimension_numbers<[1], [0], [0], [1], [0, 0, 1, 1], [], []>} : vector<2x32xf32>, vector<32x128xf32>, vector<2x128xf32> -> vector<2x128xf32>
    %877 = arith.addf %875, %876 : vector<2x128xf32>
    %878 = vector.extract_strided_slice %877 {offsets = [0, 0], sizes = [2, 32], strides = [1, 1]} : vector<2x128xf32> to vector<2x32xf32>
    %879 = arith.negf %878 : vector<2x32xf32>
    %880 = math.exp %879 : vector<2x32xf32>
    %cst_205 = arith.constant 1.000000e+00 : f32
    %881 = vector.broadcast %cst_205 : f32 to vector<2x32xf32>
    %882 = arith.addf %881, %880 : vector<2x32xf32>
    %883 = arith.divf %881, %882 : vector<2x32xf32>
    %884 = vector.extract_strided_slice %877 {offsets = [0, 32], sizes = [2, 32], strides = [1, 1]} : vector<2x128xf32> to vector<2x32xf32>
    %885 = arith.negf %884 : vector<2x32xf32>
    %886 = math.exp %885 : vector<2x32xf32>
    %cst_206 = arith.constant 1.000000e+00 : f32
    %887 = vector.broadcast %cst_206 : f32 to vector<2x32xf32>
    %888 = arith.addf %887, %886 : vector<2x32xf32>
    %889 = arith.divf %887, %888 : vector<2x32xf32>
    %890 = vector.extract_strided_slice %877 {offsets = [0, 64], sizes = [2, 32], strides = [1, 1]} : vector<2x128xf32> to vector<2x32xf32>
    %891 = math.tanh %890 : vector<2x32xf32>
    %892 = vector.extract_strided_slice %877 {offsets = [0, 96], sizes = [2, 32], strides = [1, 1]} : vector<2x128xf32> to vector<2x32xf32>
    %893 = arith.negf %892 : vector<2x32xf32>
    %894 = math.exp %893 : vector<2x32xf32>
    %cst_207 = arith.constant 1.000000e+00 : f32
    %895 = vector.broadcast %cst_207 : f32 to vector<2x32xf32>
    %896 = arith.addf %895, %894 : vector<2x32xf32>
    %897 = arith.divf %895, %896 : vector<2x32xf32>
    %898 = arith.mulf %889, %871 : vector<2x32xf32>
    %899 = arith.mulf %883, %891 : vector<2x32xf32>
    %900 = arith.addf %898, %899 : vector<2x32xf32>
    %901 = math.tanh %900 : vector<2x32xf32>
    %902 = arith.mulf %897, %901 : vector<2x32xf32>
    %c4_208 = arith.constant 4 : index
    %c32_209 = arith.constant 32 : index
    %903 = vector.load %arg19[%c4_208, %c32_209] : memref<16x64xf32, #tpu.memory_space<vmem>>, vector<2x32xf32>
    tpu.vector_store %arg19[%c4_208, %c32_209], %902 {strides = array<i32>} : memref<16x64xf32, #tpu.memory_space<vmem>>, vector<2x32xf32>,
    %904 = vector.extract_strided_slice %491 {offsets = [2, 0], sizes = [2, 128], strides = [1, 1]} : vector<16x128xf32> to vector<2x128xf32>
    %cst_210 = arith.constant dense<0.000000e+00> : vector<2x128xf32>
    %905 = tpu.matmul %902, %727, %cst_210 {dimension_numbers = #tpu.dot_dimension_numbers<[1], [0], [0], [1], [0, 0, 1, 1], [], []>} : vector<2x32xf32>, vector<32x128xf32>, vector<2x128xf32> -> vector<2x128xf32>
    %906 = arith.addf %904, %905 : vector<2x128xf32>
    %907 = vector.extract_strided_slice %906 {offsets = [0, 0], sizes = [2, 32], strides = [1, 1]} : vector<2x128xf32> to vector<2x32xf32>
    %908 = arith.negf %907 : vector<2x32xf32>
    %909 = math.exp %908 : vector<2x32xf32>
    %cst_211 = arith.constant 1.000000e+00 : f32
    %910 = vector.broadcast %cst_211 : f32 to vector<2x32xf32>
    %911 = arith.addf %910, %909 : vector<2x32xf32>
    %912 = arith.divf %910, %911 : vector<2x32xf32>
    %913 = vector.extract_strided_slice %906 {offsets = [0, 32], sizes = [2, 32], strides = [1, 1]} : vector<2x128xf32> to vector<2x32xf32>
    %914 = arith.negf %913 : vector<2x32xf32>
    %915 = math.exp %914 : vector<2x32xf32>
    %cst_212 = arith.constant 1.000000e+00 : f32
    %916 = vector.broadcast %cst_212 : f32 to vector<2x32xf32>
    %917 = arith.addf %916, %915 : vector<2x32xf32>
    %918 = arith.divf %916, %917 : vector<2x32xf32>
    %919 = vector.extract_strided_slice %906 {offsets = [0, 64], sizes = [2, 32], strides = [1, 1]} : vector<2x128xf32> to vector<2x32xf32>
    %920 = math.tanh %919 : vector<2x32xf32>
    %921 = vector.extract_strided_slice %906 {offsets = [0, 96], sizes = [2, 32], strides = [1, 1]} : vector<2x128xf32> to vector<2x32xf32>
    %922 = arith.negf %921 : vector<2x32xf32>
    %923 = math.exp %922 : vector<2x32xf32>
    %cst_213 = arith.constant 1.000000e+00 : f32
    %924 = vector.broadcast %cst_213 : f32 to vector<2x32xf32>
    %925 = arith.addf %924, %923 : vector<2x32xf32>
    %926 = arith.divf %924, %925 : vector<2x32xf32>
    %927 = arith.mulf %918, %900 : vector<2x32xf32>
    %928 = arith.mulf %912, %920 : vector<2x32xf32>
    %929 = arith.addf %927, %928 : vector<2x32xf32>
    %930 = math.tanh %929 : vector<2x32xf32>
    %931 = arith.mulf %926, %930 : vector<2x32xf32>
    %c2_214 = arith.constant 2 : index
    %c32_215 = arith.constant 32 : index
    %932 = vector.load %arg19[%c2_214, %c32_215] : memref<16x64xf32, #tpu.memory_space<vmem>>, vector<2x32xf32>
    tpu.vector_store %arg19[%c2_214, %c32_215], %931 {strides = array<i32>} : memref<16x64xf32, #tpu.memory_space<vmem>>, vector<2x32xf32>,
    %933 = vector.extract_strided_slice %491 {offsets = [0, 0], sizes = [2, 128], strides = [1, 1]} : vector<16x128xf32> to vector<2x128xf32>
    %cst_216 = arith.constant dense<0.000000e+00> : vector<2x128xf32>
    %934 = tpu.matmul %931, %727, %cst_216 {dimension_numbers = #tpu.dot_dimension_numbers<[1], [0], [0], [1], [0, 0, 1, 1], [], []>} : vector<2x32xf32>, vector<32x128xf32>, vector<2x128xf32> -> vector<2x128xf32>
    %935 = arith.addf %933, %934 : vector<2x128xf32>
    %936 = vector.extract_strided_slice %935 {offsets = [0, 0], sizes = [2, 32], strides = [1, 1]} : vector<2x128xf32> to vector<2x32xf32>
    %937 = arith.negf %936 : vector<2x32xf32>
    %938 = math.exp %937 : vector<2x32xf32>
    %cst_217 = arith.constant 1.000000e+00 : f32
    %939 = vector.broadcast %cst_217 : f32 to vector<2x32xf32>
    %940 = arith.addf %939, %938 : vector<2x32xf32>
    %941 = arith.divf %939, %940 : vector<2x32xf32>
    %942 = vector.extract_strided_slice %935 {offsets = [0, 32], sizes = [2, 32], strides = [1, 1]} : vector<2x128xf32> to vector<2x32xf32>
    %943 = arith.negf %942 : vector<2x32xf32>
    %944 = math.exp %943 : vector<2x32xf32>
    %cst_218 = arith.constant 1.000000e+00 : f32
    %945 = vector.broadcast %cst_218 : f32 to vector<2x32xf32>
    %946 = arith.addf %945, %944 : vector<2x32xf32>
    %947 = arith.divf %945, %946 : vector<2x32xf32>
    %948 = vector.extract_strided_slice %935 {offsets = [0, 64], sizes = [2, 32], strides = [1, 1]} : vector<2x128xf32> to vector<2x32xf32>
    %949 = math.tanh %948 : vector<2x32xf32>
    %950 = vector.extract_strided_slice %935 {offsets = [0, 96], sizes = [2, 32], strides = [1, 1]} : vector<2x128xf32> to vector<2x32xf32>
    %951 = arith.negf %950 : vector<2x32xf32>
    %952 = math.exp %951 : vector<2x32xf32>
    %cst_219 = arith.constant 1.000000e+00 : f32
    %953 = vector.broadcast %cst_219 : f32 to vector<2x32xf32>
    %954 = arith.addf %953, %952 : vector<2x32xf32>
    %955 = arith.divf %953, %954 : vector<2x32xf32>
    %956 = arith.mulf %947, %929 : vector<2x32xf32>
    %957 = arith.mulf %941, %949 : vector<2x32xf32>
    %958 = arith.addf %956, %957 : vector<2x32xf32>
    %959 = math.tanh %958 : vector<2x32xf32>
    %960 = arith.mulf %955, %959 : vector<2x32xf32>
    %c0_220 = arith.constant 0 : index
    %c32_221 = arith.constant 32 : index
    %961 = vector.load %arg19[%c0_220, %c32_221] : memref<16x64xf32, #tpu.memory_space<vmem>>, vector<2x32xf32>
    tpu.vector_store %arg19[%c0_220, %c32_221], %960 {strides = array<i32>} : memref<16x64xf32, #tpu.memory_space<vmem>>, vector<2x32xf32>,
    %c0_222 = arith.constant 0 : index
    %c0_223 = arith.constant 0 : index
    %962 = vector.load %arg19[%c0_222, %c0_223] : memref<16x64xf32, #tpu.memory_space<vmem>>, vector<16x64xf32>
    %c0_224 = arith.constant 0 : index
    %c0_225 = arith.constant 0 : index
    %963 = vector.load %arg13[%c0_224, %c0_225] : memref<64x32xf32, #tpu.memory_space<vmem>>, vector<64x32xf32>
    %cst_226 = arith.constant dense<0.000000e+00> : vector<16x32xf32>
    %964 = tpu.matmul %962, %963, %cst_226 {dimension_numbers = #tpu.dot_dimension_numbers<[1], [0], [0], [1], [0, 0, 1, 1], [], []>} : vector<16x64xf32>, vector<64x32xf32>, vector<16x32xf32> -> vector<16x32xf32>
    %c0_227 = arith.constant 0 : index
    %c0_228 = arith.constant 0 : index
    %965 = vector.load %arg14[%c0_227, %c0_228] : memref<1x32xf32, #tpu.memory_space<vmem>>, vector<1x32xf32>
    %966 = vector.broadcast %965 : vector<1x32xf32> to vector<16x32xf32>
    %967 = arith.addf %964, %966 : vector<16x32xf32>
    %cst_229 = arith.constant 0.000000e+00 : f32
    %968 = vector.broadcast %cst_229 : f32 to vector<16x32xf32>
    %969 = arith.maximumf %967, %968 : vector<16x32xf32>
    %970 = vector.extract_strided_slice %969 {offsets = [0, 0], sizes = [2, 32], strides = [1, 1]} : vector<16x32xf32> to vector<2x32xf32>
    %971 = vector.extract_strided_slice %969 {offsets = [2, 0], sizes = [2, 32], strides = [1, 1]} : vector<16x32xf32> to vector<2x32xf32>
    %972 = arith.addf %970, %971 : vector<2x32xf32>
    %973 = vector.extract_strided_slice %969 {offsets = [4, 0], sizes = [2, 32], strides = [1, 1]} : vector<16x32xf32> to vector<2x32xf32>
    %974 = arith.addf %972, %973 : vector<2x32xf32>
    %975 = vector.extract_strided_slice %969 {offsets = [6, 0], sizes = [2, 32], strides = [1, 1]} : vector<16x32xf32> to vector<2x32xf32>
    %976 = arith.addf %974, %975 : vector<2x32xf32>
    %977 = vector.extract_strided_slice %969 {offsets = [8, 0], sizes = [2, 32], strides = [1, 1]} : vector<16x32xf32> to vector<2x32xf32>
    %978 = arith.addf %976, %977 : vector<2x32xf32>
    %979 = vector.extract_strided_slice %969 {offsets = [10, 0], sizes = [2, 32], strides = [1, 1]} : vector<16x32xf32> to vector<2x32xf32>
    %980 = arith.addf %978, %979 : vector<2x32xf32>
    %981 = vector.extract_strided_slice %969 {offsets = [12, 0], sizes = [2, 32], strides = [1, 1]} : vector<16x32xf32> to vector<2x32xf32>
    %982 = arith.addf %980, %981 : vector<2x32xf32>
    %983 = vector.extract_strided_slice %969 {offsets = [14, 0], sizes = [2, 32], strides = [1, 1]} : vector<16x32xf32> to vector<2x32xf32>
    %984 = arith.addf %982, %983 : vector<2x32xf32>
    %cst_230 = arith.constant 1.250000e-01 : f32
    %985 = vector.broadcast %cst_230 : f32 to vector<2x32xf32>
    %986 = arith.mulf %984, %985 : vector<2x32xf32>
    %c0_231 = arith.constant 0 : index
    %c0_232 = arith.constant 0 : index
    %987 = vector.load %arg15[%c0_231, %c0_232] : memref<32x128xf32, #tpu.memory_space<vmem>>, vector<32x128xf32>
    %cst_233 = arith.constant dense<0.000000e+00> : vector<2x128xf32>
    %988 = tpu.matmul %986, %987, %cst_233 {dimension_numbers = #tpu.dot_dimension_numbers<[1], [0], [0], [1], [0, 0, 1, 1], [], []>} : vector<2x32xf32>, vector<32x128xf32>, vector<2x128xf32> -> vector<2x128xf32>
    %c0_234 = arith.constant 0 : index
    %c0_235 = arith.constant 0 : index
    %989 = vector.load %arg16[%c0_234, %c0_235] : memref<1x128xf32, #tpu.memory_space<vmem>>, vector<1x128xf32>
    %990 = vector.broadcast %989 : vector<1x128xf32> to vector<2x128xf32>
    %991 = arith.addf %988, %990 : vector<2x128xf32>
    %c0_236 = arith.constant 0 : index
    %c0_237 = arith.constant 0 : index
    %992 = vector.load %arg17[%c0_236, %c0_237] : memref<2x128xf32, #tpu.memory_space<vmem>>, vector<2x128xf32>
    tpu.vector_store %arg17[%c0_236, %c0_237], %991 {strides = array<i32>} : memref<2x128xf32, #tpu.memory_space<vmem>>, vector<2x128xf32>,
    return
  }
}

</mosaic_0001>

<llo_original>
// kernel: tpu_custom_call.1
$region0: #{tpu_custom_call.1}
  #allocation0 [shape = 'u32[]', space=smem, size = 0x4, offset = 0x4, fixed_abs, tag = 'smem constant byte address 0x4 - core index']
  #allocation1 [shape = 'u32[144,128]{1,0:T(1,128)}', space=vmem, size = 0x12000, scoped, tag = 'internal scratch']
  #allocation2 [shape = 'f32[16,64]{1,0:T(8,128)}', space=vmem, size = 0x2000, scoped, tag = 'scratch operand']
  #allocation3 [shape = 'f32[16,64]{1,0:T(8,128)}', space=vmem, size = 0x2000, scoped, tag = 'scratch operand']
  %s0 = inlined_call_operand.hbm [shape: f32[16,16], index: 0, kind: input, shape index: {}]
  %s1 = inlined_call_operand.hbm [shape: f32[16,128], index: 1, kind: input, shape index: {}]
  %s2 = inlined_call_operand.hbm [shape: f32[32,128], index: 2, kind: input, shape index: {}]
  %s3 = inlined_call_operand.vmem [shape: f32[1,128], index: 3, kind: input, shape index: {}]
  %s4 = inlined_call_operand.hbm [shape: f32[16,128], index: 4, kind: input, shape index: {}]
  %s5 = inlined_call_operand.hbm [shape: f32[32,128], index: 5, kind: input, shape index: {}]
  %s6 = inlined_call_operand.vmem [shape: f32[1,128], index: 6, kind: input, shape index: {}]
  %s7 = inlined_call_operand.vmem [shape: f32[64,128], index: 7, kind: input, shape index: {}]
  %s8 = inlined_call_operand.hbm [shape: f32[32,128], index: 8, kind: input, shape index: {}]
  %s9 = inlined_call_operand.hbm [shape: f32[1,128], index: 9, kind: input, shape index: {}]
  %s10 = inlined_call_operand.vmem [shape: f32[64,128], index: 10, kind: input, shape index: {}]
  %s11 = inlined_call_operand.hbm [shape: f32[32,128], index: 11, kind: input, shape index: {}]
  %s12 = inlined_call_operand.vmem [shape: f32[1,128], index: 12, kind: input, shape index: {}]
  %s13 = inlined_call_operand.vmem [shape: f32[64,32], index: 13, kind: input, shape index: {}]
  %s14 = inlined_call_operand.vmem [shape: f32[1,32], index: 14, kind: input, shape index: {}]
  %s15 = inlined_call_operand.hbm [shape: f32[32,128], index: 15, kind: input, shape index: {}]
  %s16 = inlined_call_operand.vmem [shape: f32[1,128], index: 16, kind: input, shape index: {}]
  %s17 = inlined_call_operand.hbm [shape: f32[2,128], index: 17, kind: output, shape index: {}]
  %s18 = sld [smem:[#allocation0]]
  $region114: #{tpu_custom_call.1} parent=0
    _
  %s20 = ssub.s32 1, %s18
  %s21 = scalar_select 0, %s20, %s18
  $region1: #{tpu_custom_call.1} parent=0
    #allocation4 [shape = 'u8[8192]{0}', space=vmem, size = 0x2000, scoped, tag = 'input window, operand 0, single buffered']
    #allocation5 [shape = 's32[1]{0}', space=sflag, size = 0x4, scoped, tag = 'scoped memory for tpu_custom_call.1']
    #allocation6 [shape = 's32[1]{0}', space=sflag, size = 0x4, scoped, tag = 'scoped memory for tpu_custom_call.1']
    #allocation7 [shape = 'u8[8192]{0}', space=vmem, size = 0x2000, scoped, tag = 'input window, operand 1, single buffered']
    #allocation8 [shape = 's32[1]{0}', space=sflag, size = 0x4, scoped, tag = 'scoped memory for tpu_custom_call.1']
    #allocation9 [shape = 'u8[16384]{0}', space=vmem, size = 0x4000, scoped, tag = 'input window, operand 2, single buffered']
    #allocation10 [shape = 'u8[8192]{0}', space=vmem, size = 0x2000, scoped, tag = 'input window, operand 4, single buffered']
    #allocation11 [shape = 's32[1]{0}', space=sflag, size = 0x4, scoped, tag = 'scoped memory for tpu_custom_call.1']
    #allocation12 [shape = 'u8[16384]{0}', space=vmem, size = 0x4000, scoped, tag = 'input window, operand 5, single buffered']
    #allocation13 [shape = 'u8[16384]{0}', space=vmem, size = 0x4000, scoped, tag = 'input window, operand 8, single buffered']
    #allocation14 [shape = 's32[1]{0}', space=sflag, size = 0x4, scoped, tag = 'scoped memory for tpu_custom_call.1']
    #allocation15 [shape = 'u8[512]{0}', space=vmem, size = 0x400, scoped, tag = 'input window, operand 9, single buffered']
    #allocation16 [shape = 'u8[16384]{0}', space=vmem, size = 0x4000, scoped, tag = 'input window, operand 11, single buffered']
    #allocation17 [shape = 's32[1]{0}', space=sflag, size = 0x4, scoped, tag = 'scoped memory for tpu_custom_call.1']
    #allocation18 [shape = 'u8[16384]{0}', space=vmem, size = 0x4000, scoped, tag = 'input window, operand 15, single buffered']
    #allocation19 [shape = 'u8[1024]{0}', space=vmem, size = 0x400, scoped, tag = 'output window, operand 0, single buffered']
    %22 = vsyncpa [#allocation5], 0
    %23 = vsyncpa [#allocation8], 0
    %24 = vsyncpa [#allocation11], 0
    %25 = vsyncpa [#allocation14], 0
    %26 = vsyncpa [#allocation17], 0
    %27 = vsyncpa [#allocation6], 0
    // Predicated region
    $region2: #{tpu_custom_call.1} parent=1 // pred_check
      _
    $region3: #{tpu_custom_call.1} parent=1 // pred_check_branch
      %29 = sbr.rel (0) target = $region5
    $region4: #{tpu_custom_call.1} parent=1 // pred_region
      %s31 = ssub.s32 256, 256
      %32 = vsyncadd [#allocation5], %s31
      %s33 = sshll.u32 [#allocation4], 4
      %s34 = int_to_ptr.vmem [resolvable:$true] %s33
      %39 = dma.hbm_to_vmem [thread:$0]  %s0, 256, %s34, [#allocation5], 128, 128, 8
    $region5: #{tpu_custom_call.1} parent=1 // pred_fallthru
      _
    // Predicated region
    $region6: #{tpu_custom_call.1} parent=1 // pred_check
      _
    $region7: #{tpu_custom_call.1} parent=1 // pred_check_branch
      %41 = sbr.rel (0) target = $region9
    $region8: #{tpu_custom_call.1} parent=1 // pred_region
      %s43 = ssub.s32 256, 256
      %44 = vsyncadd [#allocation8], %s43
      %s45 = sshll.u32 [#allocation7], 4
      %s46 = int_to_ptr.vmem [resolvable:$true] %s45
      %51 = dma.hbm_to_vmem [thread:$0]  %s1, 256, %s46, [#allocation8], 128, 128, 8
    $region9: #{tpu_custom_call.1} parent=1 // pred_fallthru
      _
    // Predicated region
    $region10: #{tpu_custom_call.1} parent=1 // pred_check
      _
    $region11: #{tpu_custom_call.1} parent=1 // pred_check_branch
      %53 = sbr.rel (0) target = $region13
    $region12: #{tpu_custom_call.1} parent=1 // pred_region
      %s55 = ssub.s32 512, 512
      %56 = vsyncadd [#allocation8], %s55
      %s57 = sshll.u32 [#allocation9], 4
      %s58 = int_to_ptr.vmem [resolvable:$true] %s57
      %63 = dma.hbm_to_vmem [thread:$0]  %s2, 512, %s58, [#allocation8], 128, 128, 8
    $region13: #{tpu_custom_call.1} parent=1 // pred_fallthru
      _
    // Predicated region
    $region14: #{tpu_custom_call.1} parent=1 // pred_check
      _
    $region15: #{tpu_custom_call.1} parent=1 // pred_check_branch
      %65 = sbr.rel (0) target = $region17
    $region16: #{tpu_custom_call.1} parent=1 // pred_region
      _
    $region17: #{tpu_custom_call.1} parent=1 // pred_fallthru
      _
    // Predicated region
    $region18: #{tpu_custom_call.1} parent=1 // pred_check
      _
    $region19: #{tpu_custom_call.1} parent=1 // pred_check_branch
      %67 = sbr.rel (0) target = $region21
    $region20: #{tpu_custom_call.1} parent=1 // pred_region
      %s69 = ssub.s32 256, 256
      %70 = vsyncadd [#allocation11], %s69
      %s71 = sshll.u32 [#allocation10], 4
      %s72 = int_to_ptr.vmem [resolvable:$true] %s71
      %77 = dma.hbm_to_vmem [thread:$0]  %s4, 256, %s72, [#allocation11], 128, 128, 8
    $region21: #{tpu_custom_call.1} parent=1 // pred_fallthru
      _
    // Predicated region
    $region22: #{tpu_custom_call.1} parent=1 // pred_check
      _
    $region23: #{tpu_custom_call.1} parent=1 // pred_check_branch
      %79 = sbr.rel (0) target = $region25
    $region24: #{tpu_custom_call.1} parent=1 // pred_region
      %s81 = ssub.s32 512, 512
      %82 = vsyncadd [#allocation11], %s81
      %s83 = sshll.u32 [#allocation12], 4
      %s84 = int_to_ptr.vmem [resolvable:$true] %s83
      %89 = dma.hbm_to_vmem [thread:$0]  %s5, 512, %s84, [#allocation11], 128, 128, 8
    $region25: #{tpu_custom_call.1} parent=1 // pred_fallthru
      _
    // Predicated region
    $region26: #{tpu_custom_call.1} parent=1 // pred_check
      _
    $region27: #{tpu_custom_call.1} parent=1 // pred_check_branch
      %91 = sbr.rel (0) target = $region29
    $region28: #{tpu_custom_call.1} parent=1 // pred_region
      _
    $region29: #{tpu_custom_call.1} parent=1 // pred_fallthru
      _
    // Predicated region
    $region30: #{tpu_custom_call.1} parent=1 // pred_check
      _
    $region31: #{tpu_custom_call.1} parent=1 // pred_check_branch
      %93 = sbr.rel (0) target = $region33
    $region32: #{tpu_custom_call.1} parent=1 // pred_region
      _
    $region33: #{tpu_custom_call.1} parent=1 // pred_fallthru
      _
    // Predicated region
    $region34: #{tpu_custom_call.1} parent=1 // pred_check
      _
    $region35: #{tpu_custom_call.1} parent=1 // pred_check_branch
      %95 = sbr.rel (0) target = $region37
    $region36: #{tpu_custom_call.1} parent=1 // pred_region
      %s97 = ssub.s32 512, 512
      %98 = vsyncadd [#allocation14], %s97
      %s99 = sshll.u32 [#allocation13], 4
      %s100 = int_to_ptr.vmem [resolvable:$true] %s99
      %105 = dma.hbm_to_vmem [thread:$0]  %s8, 512, %s100, [#allocation14], 128, 128, 8
    $region37: #{tpu_custom_call.1} parent=1 // pred_fallthru
      _
    // Predicated region
    $region38: #{tpu_custom_call.1} parent=1 // pred_check
      _
    $region39: #{tpu_custom_call.1} parent=1 // pred_check_branch
      %107 = sbr.rel (0) target = $region41
    $region40: #{tpu_custom_call.1} parent=1 // pred_region
      %s109 = ssub.s32 16, 16
      %110 = vsyncadd [#allocation14], %s109
      %s112 = sshll.u32 [#allocation15], 4
      %s113 = int_to_ptr.vmem [resolvable:$true] %s112
      %115 = dma.hbm_to_vmem [thread:$0]  %s9, 16, %s113, [#allocation14]
    $region41: #{tpu_custom_call.1} parent=1 // pred_fallthru
      _
    // Predicated region
    $region42: #{tpu_custom_call.1} parent=1 // pred_check
      _
    $region43: #{tpu_custom_call.1} parent=1 // pred_check_branch
      %117 = sbr.rel (0) target = $region45
    $region44: #{tpu_custom_call.1} parent=1 // pred_region
      _
    $region45: #{tpu_custom_call.1} parent=1 // pred_fallthru
      _
    // Predicated region
    $region46: #{tpu_custom_call.1} parent=1 // pred_check
      _
    $region47: #{tpu_custom_call.1} parent=1 // pred_check_branch
      %119 = sbr.rel (0) target = $region49
    $region48: #{tpu_custom_call.1} parent=1 // pred_region
      %s121 = ssub.s32 512, 512
      %122 = vsyncadd [#allocation17], %s121
      %s123 = sshll.u32 [#allocation16], 4
      %s124 = int_to_ptr.vmem [resolvable:$true] %s123
      %129 = dma.hbm_to_vmem [thread:$0]  %s11, 512, %s124, [#allocation17], 128, 128, 8
    $region49: #{tpu_custom_call.1} parent=1 // pred_fallthru
      _
    // Predicated region
    $region50: #{tpu_custom_call.1} parent=1 // pred_check
      _
    $region51: #{tpu_custom_call.1} parent=1 // pred_check_branch
      %131 = sbr.rel (0) target = $region53
    $region52: #{tpu_custom_call.1} parent=1 // pred_region
      _
    $region53: #{tpu_custom_call.1} parent=1 // pred_fallthru
      _
    // Predicated region
    $region54: #{tpu_custom_call.1} parent=1 // pred_check
      _
    $region55: #{tpu_custom_call.1} parent=1 // pred_check_branch
      %133 = sbr.rel (0) target = $region57
    $region56: #{tpu_custom_call.1} parent=1 // pred_region
      _
    $region57: #{tpu_custom_call.1} parent=1 // pred_fallthru
      _
    // Predicated region
    $region58: #{tpu_custom_call.1} parent=1 // pred_check
      _
    $region59: #{tpu_custom_call.1} parent=1 // pred_check_branch
      %135 = sbr.rel (0) target = $region61
    $region60: #{tpu_custom_call.1} parent=1 // pred_region
      _
    $region61: #{tpu_custom_call.1} parent=1 // pred_fallthru
      _
    // Predicated region
    $region62: #{tpu_custom_call.1} parent=1 // pred_check
      _
    $region63: #{tpu_custom_call.1} parent=1 // pred_check_branch
      %137 = sbr.rel (0) target = $region65
    $region64: #{tpu_custom_call.1} parent=1 // pred_region
      %s139 = ssub.s32 512, 512
      %140 = vsyncadd [#allocation17], %s139
      %s141 = sshll.u32 [#allocation18], 4
      %s142 = int_to_ptr.vmem [resolvable:$true] %s141
      %147 = dma.hbm_to_vmem [thread:$0]  %s15, 512, %s142, [#allocation17], 128, 128, 8
    $region65: #{tpu_custom_call.1} parent=1 // pred_fallthru
      _
    // Predicated region
    $region66: #{tpu_custom_call.1} parent=1 // pred_check
      _
    $region67: #{tpu_custom_call.1} parent=1 // pred_check_branch
      %149 = sbr.rel (0) target = $region69
    $region68: #{tpu_custom_call.1} parent=1 // pred_region
      _
    $region69: #{tpu_custom_call.1} parent=1 // pred_fallthru
      _
    // Predicated region
    $region70: #{tpu_custom_call.1} parent=1 // pred_check
      _
    $region71: #{tpu_custom_call.1} parent=1 // pred_check_branch
      %151 = sbr.rel (0) target = $region73
    $region72: #{tpu_custom_call.1} parent=1 // pred_region
      %152 = dma.done [#allocation5], 256
    $region73: #{tpu_custom_call.1} parent=1 // pred_fallthru
      _
    // Predicated region
    $region74: #{tpu_custom_call.1} parent=1 // pred_check
      _
    $region75: #{tpu_custom_call.1} parent=1 // pred_check_branch
      %154 = sbr.rel (0) target = $region77
    $region76: #{tpu_custom_call.1} parent=1 // pred_region
      %155 = dma.done [#allocation8], 256
    $region77: #{tpu_custom_call.1} parent=1 // pred_fallthru
      _
    // Predicated region
    $region78: #{tpu_custom_call.1} parent=1 // pred_check
      _
    $region79: #{tpu_custom_call.1} parent=1 // pred_check_branch
      %157 = sbr.rel (0) target = $region81
    $region80: #{tpu_custom_call.1} parent=1 // pred_region
      %158 = dma.done [#allocation8], 512
    $region81: #{tpu_custom_call.1} parent=1 // pred_fallthru
      _
    // Predicated region
    $region82: #{tpu_custom_call.1} parent=1 // pred_check
      _
    $region83: #{tpu_custom_call.1} parent=1 // pred_check_branch
      %160 = sbr.rel (0) target = $region85
    $region84: #{tpu_custom_call.1} parent=1 // pred_region
      %161 = dma.done [#allocation11], 256
    $region85: #{tpu_custom_call.1} parent=1 // pred_fallthru
      _
    // Predicated region
    $region86: #{tpu_custom_call.1} parent=1 // pred_check
      _
    $region87: #{tpu_custom_call.1} parent=1 // pred_check_branch
      %163 = sbr.rel (0) target = $region89
    $region88: #{tpu_custom_call.1} parent=1 // pred_region
      %164 = dma.done [#allocation11], 512
    $region89: #{tpu_custom_call.1} parent=1 // pred_fallthru
      _
    // Predicated region
    $region90: #{tpu_custom_call.1} parent=1 // pred_check
      _
    $region91: #{tpu_custom_call.1} parent=1 // pred_check_branch
      %166 = sbr.rel (0) target = $region93
    $region92: #{tpu_custom_call.1} parent=1 // pred_region
      %167 = dma.done [#allocation14], 512
    $region93: #{tpu_custom_call.1} parent=1 // pred_fallthru
      _
    // Predicated region
    $region94: #{tpu_custom_call.1} parent=1 // pred_check
      _
    $region95: #{tpu_custom_call.1} parent=1 // pred_check_branch
      %169 = sbr.rel (0) target = $region97
    $region96: #{tpu_custom_call.1} parent=1 // pred_region
      %170 = dma.done [#allocation14], 16
    $region97: #{tpu_custom_call.1} parent=1 // pred_fallthru
      _
    // Predicated region
    $region98: #{tpu_custom_call.1} parent=1 // pred_check
      _
    $region99: #{tpu_custom_call.1} parent=1 // pred_check_branch
      %172 = sbr.rel (0) target = $region101
    $region100: #{tpu_custom_call.1} parent=1 // pred_region
      %173 = dma.done [#allocation17], 512
    $region101: #{tpu_custom_call.1} parent=1 // pred_fallthru
      _
    // Predicated region
    $region102: #{tpu_custom_call.1} parent=1 // pred_check
      _
    $region103: #{tpu_custom_call.1} parent=1 // pred_check_branch
      %175 = sbr.rel (0) target = $region105
    $region104: #{tpu_custom_call.1} parent=1 // pred_region
      %176 = dma.done [#allocation17], 512
    $region105: #{tpu_custom_call.1} parent=1 // pred_fallthru
      _
    %v177 = vld [vmem:[#allocation4] sm:$0xff]
    %v178 = vld [vmem:[#allocation4 + $0x8] sm:$0xff]
    %v179 = vld [vmem:[#allocation7] sm:$0xff]
    %v180 = vld [vmem:[#allocation7 + $0x8] sm:$0xff]
    %v181 = vld [vmem:[%s3] sm:$0x1]
    %v183 = vlaneseq
    %v184 = vshrl.u32 %v183, 7
    %v185 = vsub.s32 0, %v184
    %v186 = vrot.slane %v181, %v185
    %vm188 = vcmask 130048
    %v190 = vsel %vm188, %v177, 0
    %v193 = vsel %vm188, %v178, 0
    %195 = vmatprep.subr.mxu0 0.0
    %196 = vmatpush1.msra.mxu0 %v179
    %197 = vmatprep.subr.mxu0 0.0
    %198 = vmatpush1.msra.mxu0 %v180
    %199 = vmatprep.subr.mxu0 0.0
    %200 = vmatpush1.msra.mxu0 0.0
    %201 = vmatprep.subr.mxu0 0.0
    %202 = vmatpush1.msra.mxu0 0.0
    %203 = vmatprep.subr.mxu0 0.0
    %204 = vmatpush1.msra.mxu0 0.0
    %205 = vmatprep.subr.mxu0 0.0
    %206 = vmatpush1.msra.mxu0 0.0
    %207 = vmatprep.subr.mxu0 0.0
    %208 = vmatpush1.msra.mxu0 0.0
    %209 = vmatprep.subr.mxu0 0.0
    %210 = vmatpush1.msra.mxu0 0.0
    %211 = vmatprep.subr.mxu0 0.0
    %212 = vmatpush1.msra.mxu0 0.0
    %213 = vmatprep.subr.mxu0 0.0
    %214 = vmatpush1.msra.mxu0 0.0
    %215 = vmatprep.subr.mxu0 0.0
    %216 = vmatpush1.msra.mxu0 0.0
    %217 = vmatprep.subr.mxu0 0.0
    %218 = vmatpush1.msra.mxu0 0.0
    %219 = vmatprep.subr.mxu0 0.0
    %220 = vmatpush1.msra.mxu0 0.0
    %221 = vmatprep.subr.mxu0 0.0
    %222 = vmatpush1.msra.mxu0 0.0
    %223 = vmatprep.subr.mxu0 0.0
    %224 = vmatpush1.msra.mxu0 0.0
    %225 = vmatprep.subr.mxu0 0.0
    %226 = vmatpush1.msra.mxu0 0.0
    %227 = vmatprep.subr.mxu0 0.0
    %228 = vmatpush1.msra.mxu0 0.0
    %229 = vmatprep.subr.mxu0 0.0
    %230 = vmatpush1.msra.mxu0 0.0
    %231 = vmatprep.subr.mxu0 0.0
    %232 = vmatpush1.msra.mxu0 0.0
    %233 = vmatprep.subr.mxu0 0.0
    %234 = vmatpush1.msra.mxu0 0.0
    %235 = vmatprep.subr.mxu0 0.0
    %236 = vmatpush1.msra.mxu0 0.0
    %237 = vmatprep.subr.mxu0 0.0
    %238 = vmatpush1.msra.mxu0 0.0
    %239 = vmatprep.subr.mxu0 0.0
    %240 = vmatpush1.msra.mxu0 0.0
    %241 = vmatprep.subr.mxu0 0.0
    %242 = vmatpush1.msra.mxu0 0.0
    %243 = vmatprep.subr.mxu0 0.0
    %244 = vmatpush1.msra.mxu0 0.0
    %245 = vmatprep.subr.mxu0 0.0
    %246 = vmatpush1.msra.mxu0 0.0
    %247 = vmatprep.subr.mxu0 0.0
    %248 = vmatpush1.msra.mxu0 0.0
    %249 = vmatprep.subr.mxu0 0.0
    %250 = vmatpush1.msra.mxu0 0.0
    %251 = vmatprep.subr.mxu0 0.0
    %252 = vmatpush1.msra.mxu0 0.0
    %253 = vmatprep.subr.mxu0 0.0
    %254 = vmatpush1.msra.mxu0 0.0
    %255 = vmatprep.subr.mxu0 0.0
    %256 = vmatpush1.msra.mxu0 0.0
    %257 = vmatprep.subr.mxu0 0.0
    %258 = vmatpush1.msra.mxu0 0.0
    %259 = vmatprep.mubr.f32.mxu0 0.0
    %260 = vmatmul.mubr.f32.gmra.mrb[0].mxu0 %v190
    %v261 = vpop.f32.mrb[0].mxu0
    %v262 = vadd.f32 %v186, %v261
    %v263 = vpop.f32.mrb[0].mxu0
    %264 = vmatprep.mubr.f32.mxu0 0.0
    %265 = vmatmul.mubr.f32.gmra.mrb[0].mxu0 %v193
    %v266 = vpop.f32.mrb[0].mxu0
    %v267 = vadd.f32 %v186, %v266
    %v268 = vpop.f32.mrb[0].mxu0
    %269 = vdwg.mxu0
    %v270 = vld [vmem:[#allocation10] sm:$0xff]
    %v271 = vld [vmem:[#allocation10 + $0x8] sm:$0xff]
    %v272 = vld [vmem:[%s6] sm:$0x1]
    %v274 = vlaneseq
    %v275 = vshrl.u32 %v274, 7
    %v276 = vsub.s32 0, %v275
    %v277 = vrot.slane %v272, %v276
    %279 = vmatprep.subr.mxu0 0.0
    %280 = vmatpush1.msra.mxu0 %v270
    %281 = vmatprep.subr.mxu0 0.0
    %282 = vmatpush1.msra.mxu0 %v271
    %283 = vmatprep.subr.mxu0 0.0
    %284 = vmatpush1.msra.mxu0 0.0
    %285 = vmatprep.subr.mxu0 0.0
    %286 = vmatpush1.msra.mxu0 0.0
    %287 = vmatprep.subr.mxu0 0.0
    %288 = vmatpush1.msra.mxu0 0.0
    %289 = vmatprep.subr.mxu0 0.0
    %290 = vmatpush1.msra.mxu0 0.0
    %291 = vmatprep.subr.mxu0 0.0
    %292 = vmatpush1.msra.mxu0 0.0
    %293 = vmatprep.subr.mxu0 0.0
    %294 = vmatpush1.msra.mxu0 0.0
    %295 = vmatprep.subr.mxu0 0.0
    %296 = vmatpush1.msra.mxu0 0.0
    %297 = vmatprep.subr.mxu0 0.0
    %298 = vmatpush1.msra.mxu0 0.0
    %299 = vmatprep.subr.mxu0 0.0
    %300 = vmatpush1.msra.mxu0 0.0
    %301 = vmatprep.subr.mxu0 0.0
    %302 = vmatpush1.msra.mxu0 0.0
    %303 = vmatprep.subr.mxu0 0.0
    %304 = vmatpush1.msra.mxu0 0.0
    %305 = vmatprep.subr.mxu0 0.0
    %306 = vmatpush1.msra.mxu0 0.0
    %307 = vmatprep.subr.mxu0 0.0
    %308 = vmatpush1.msra.mxu0 0.0
    %309 = vmatprep.subr.mxu0 0.0
    %310 = vmatpush1.msra.mxu0 0.0
    %311 = vmatprep.subr.mxu0 0.0
    %312 = vmatpush1.msra.mxu0 0.0
    %313 = vmatprep.subr.mxu0 0.0
    %314 = vmatpush1.msra.mxu0 0.0
    %315 = vmatprep.subr.mxu0 0.0
    %316 = vmatpush1.msra.mxu0 0.0
    %317 = vmatprep.subr.mxu0 0.0
    %318 = vmatpush1.msra.mxu0 0.0
    %319 = vmatprep.subr.mxu0 0.0
    %320 = vmatpush1.msra.mxu0 0.0
    %321 = vmatprep.subr.mxu0 0.0
    %322 = vmatpush1.msra.mxu0 0.0
    %323 = vmatprep.subr.mxu0 0.0
    %324 = vmatpush1.msra.mxu0 0.0
    %325 = vmatprep.subr.mxu0 0.0
    %326 = vmatpush1.msra.mxu0 0.0
    %327 = vmatprep.subr.mxu0 0.0
    %328 = vmatpush1.msra.mxu0 0.0
    %329 = vmatprep.subr.mxu0 0.0
    %330 = vmatpush1.msra.mxu0 0.0
    %331 = vmatprep.subr.mxu0 0.0
    %332 = vmatpush1.msra.mxu0 0.0
    %333 = vmatprep.subr.mxu0 0.0
    %334 = vmatpush1.msra.mxu0 0.0
    %335 = vmatprep.subr.mxu0 0.0
    %336 = vmatpush1.msra.mxu0 0.0
    %337 = vmatprep.subr.mxu0 0.0
    %338 = vmatpush1.msra.mxu0 0.0
    %339 = vmatprep.subr.mxu0 0.0
    %340 = vmatpush1.msra.mxu0 0.0
    %341 = vmatprep.subr.mxu0 0.0
    %342 = vmatpush1.msra.mxu0 0.0
    %343 = vmatprep.mubr.f32.mxu0 0.0
    %344 = vmatmul.mubr.f32.gmra.mrb[0].mxu0 %v190
    %v345 = vpop.f32.mrb[0].mxu0
    %v346 = vadd.f32 %v277, %v345
    %v347 = vpop.f32.mrb[0].mxu0
    %348 = vmatprep.mubr.f32.mxu0 0.0
    %349 = vmatmul.mubr.f32.gmra.mrb[0].mxu0 %v193
    %v350 = vpop.f32.mrb[0].mxu0
    %v351 = vadd.f32 %v277, %v350
    %v352 = vpop.f32.mrb[0].mxu0
    %353 = vdwg.mxu0
    %v354 = vld [vmem:[#allocation9] sm:$0xff]
    %v355 = vld [vmem:[#allocation9 + $0x8] sm:$0xff]
    %v356 = vld [vmem:[#allocation9 + $0x10] sm:$0xff]
    %v357 = vld [vmem:[#allocation9 + $0x18] sm:$0xff]
    %vm358 = vcmask 261120
    %v360 = vsel %vm358, 0.0, 0
    %362 = vmatprep.subr.mxu0 0.0
    %363 = vmatpush1.msra.mxu0 %v354
    %364 = vmatprep.subr.mxu0 0.0
    %365 = vmatpush1.msra.mxu0 %v355
    %366 = vmatprep.subr.mxu0 0.0
    %367 = vmatpush1.msra.mxu0 %v356
    %368 = vmatprep.subr.mxu0 0.0
    %369 = vmatpush1.msra.mxu0 %v357
    %370 = vmatprep.subr.mxu0 0.0
    %371 = vmatpush1.msra.mxu0 0.0
    %372 = vmatprep.subr.mxu0 0.0
    %373 = vmatpush1.msra.mxu0 0.0
    %374 = vmatprep.subr.mxu0 0.0
    %375 = vmatpush1.msra.mxu0 0.0
    %376 = vmatprep.subr.mxu0 0.0
    %377 = vmatpush1.msra.mxu0 0.0
    %378 = vmatprep.subr.mxu0 0.0
    %379 = vmatpush1.msra.mxu0 0.0
    %380 = vmatprep.subr.mxu0 0.0
    %381 = vmatpush1.msra.mxu0 0.0
    %382 = vmatprep.subr.mxu0 0.0
    %383 = vmatpush1.msra.mxu0 0.0
    %384 = vmatprep.subr.mxu0 0.0
    %385 = vmatpush1.msra.mxu0 0.0
    %386 = vmatprep.subr.mxu0 0.0
    %387 = vmatpush1.msra.mxu0 0.0
    %388 = vmatprep.subr.mxu0 0.0
    %389 = vmatpush1.msra.mxu0 0.0
    %390 = vmatprep.subr.mxu0 0.0
    %391 = vmatpush1.msra.mxu0 0.0
    %392 = vmatprep.subr.mxu0 0.0
    %393 = vmatpush1.msra.mxu0 0.0
    %394 = vmatprep.subr.mxu0 0.0
    %395 = vmatpush1.msra.mxu0 0.0
    %396 = vmatprep.subr.mxu0 0.0
    %397 = vmatpush1.msra.mxu0 0.0
    %398 = vmatprep.subr.mxu0 0.0
    %399 = vmatpush1.msra.mxu0 0.0
    %400 = vmatprep.subr.mxu0 0.0
    %401 = vmatpush1.msra.mxu0 0.0
    %402 = vmatprep.subr.mxu0 0.0
    %403 = vmatpush1.msra.mxu0 0.0
    %404 = vmatprep.subr.mxu0 0.0
    %405 = vmatpush1.msra.mxu0 0.0
    %406 = vmatprep.subr.mxu0 0.0
    %407 = vmatpush1.msra.mxu0 0.0
    %408 = vmatprep.subr.mxu0 0.0
    %409 = vmatpush1.msra.mxu0 0.0
    %410 = vmatprep.subr.mxu0 0.0
    %411 = vmatpush1.msra.mxu0 0.0
    %412 = vmatprep.subr.mxu0 0.0
    %413 = vmatpush1.msra.mxu0 0.0
    %414 = vmatprep.subr.mxu0 0.0
    %415 = vmatpush1.msra.mxu0 0.0
    %416 = vmatprep.subr.mxu0 0.0
    %417 = vmatpush1.msra.mxu0 0.0
    %418 = vmatprep.subr.mxu0 0.0
    %419 = vmatpush1.msra.mxu0 0.0
    %420 = vmatprep.subr.mxu0 0.0
    %421 = vmatpush1.msra.mxu0 0.0
    %422 = vmatprep.subr.mxu0 0.0
    %423 = vmatpush1.msra.mxu0 0.0
    %424 = vmatprep.subr.mxu0 0.0
    %425 = vmatpush1.msra.mxu0 0.0
    %426 = vmatprep.mubr.f32.mxu0 0.0
    %427 = vmatmul.mubr.f32.gmra.mrb[0].mxu0 %v360
    %v428 = vpop.f32.mrb[0].mxu0
    %v429 = vadd.f32 0.0, %v428
    %v430 = vpop.f32.mrb[0].mxu0
    %431 = vdwg.mxu0
    %v432 = vadd.f32 %v262, %v429
    %v433 = vxor.u32 %v432, 2147483648
    %v434 = vmul.f32 %v433, 1.442695
    %v435 = vpow.pop %v434
    %v436 = vadd.f32 %v435, 1.0
    %v437 = vrcp.pop %v436
    %v438 = vmul.f32 1.0, %v437
    %v439 = vtanh.pop %v432
    %v440 = vmul.f32 %v438, 0.0
    %442 = vrot.lane.b32.xlu0 %v439, 64
    %v443 = vpop.permute.xlu0 %442
    %v445 = vmul.f32 %v438, %v443
    %447 = vrot.lane.b32.xlu0 %v445, 32
    %v448 = vpop.permute.xlu0 %447
    %v450 = vadd.f32 %v440, %v448
    %v451 = vtanh.pop %v450
    %453 = vrot.lane.b32.xlu0 %v451, 64
    %v454 = vpop.permute.xlu0 %453
    %v456 = vmul.f32 %v438, %v454
    %458 = vrot.lane.b32.xlu0 %v456, 32
    %v459 = vpop.permute.xlu0 %458
    %vm461 = vcmask 254976
    %462 = vst.msk [vmem:[#allocation2] sm:$0x3] %vm461, %v459
    %v463 = vsel %vm358, %v459, 0
    %465 = vmatprep.subr.mxu0 0.0
    %466 = vmatpush1.msra.mxu0 %v354
    %467 = vmatprep.subr.mxu0 0.0
    %468 = vmatpush1.msra.mxu0 %v355
    %469 = vmatprep.subr.mxu0 0.0
    %470 = vmatpush1.msra.mxu0 %v356
    %471 = vmatprep.subr.mxu0 0.0
    %472 = vmatpush1.msra.mxu0 %v357
    %473 = vmatprep.subr.mxu0 0.0
    %474 = vmatpush1.msra.mxu0 0.0
    %475 = vmatprep.subr.mxu0 0.0
    %476 = vmatpush1.msra.mxu0 0.0
    %477 = vmatprep.subr.mxu0 0.0
    %478 = vmatpush1.msra.mxu0 0.0
    %479 = vmatprep.subr.mxu0 0.0
    %480 = vmatpush1.msra.mxu0 0.0
    %481 = vmatprep.subr.mxu0 0.0
    %482 = vmatpush1.msra.mxu0 0.0
    %483 = vmatprep.subr.mxu0 0.0
    %484 = vmatpush1.msra.mxu0 0.0
    %485 = vmatprep.subr.mxu0 0.0
    %486 = vmatpush1.msra.mxu0 0.0
    %487 = vmatprep.subr.mxu0 0.0
    %488 = vmatpush1.msra.mxu0 0.0
    %489 = vmatprep.subr.mxu0 0.0
    %490 = vmatpush1.msra.mxu0 0.0
    %491 = vmatprep.subr.mxu0 0.0
    %492 = vmatpush1.msra.mxu0 0.0
    %493 = vmatprep.subr.mxu0 0.0
    %494 = vmatpush1.msra.mxu0 0.0
    %495 = vmatprep.subr.mxu0 0.0
    %496 = vmatpush1.msra.mxu0 0.0
    %497 = vmatprep.subr.mxu0 0.0
    %498 = vmatpush1.msra.mxu0 0.0
    %499 = vmatprep.subr.mxu0 0.0
    %500 = vmatpush1.msra.mxu0 0.0
    %501 = vmatprep.subr.mxu0 0.0
    %502 = vmatpush1.msra.mxu0 0.0
    %503 = vmatprep.subr.mxu0 0.0
    %504 = vmatpush1.msra.mxu0 0.0
    %505 = vmatprep.subr.mxu0 0.0
    %506 = vmatpush1.msra.mxu0 0.0
    %507 = vmatprep.subr.mxu0 0.0
    %508 = vmatpush1.msra.mxu0 0.0
    %509 = vmatprep.subr.mxu0 0.0
    %510 = vmatpush1.msra.mxu0 0.0
    %511 = vmatprep.subr.mxu0 0.0
    %512 = vmatpush1.msra.mxu0 0.0
    %513 = vmatprep.subr.mxu0 0.0
    %514 = vmatpush1.msra.mxu0 0.0
    %515 = vmatprep.subr.mxu0 0.0
    %516 = vmatpush1.msra.mxu0 0.0
    %517 = vmatprep.subr.mxu0 0.0
    %518 = vmatpush1.msra.mxu0 0.0
    %519 = vmatprep.subr.mxu0 0.0
    %520 = vmatpush1.msra.mxu0 0.0
    %521 = vmatprep.subr.mxu0 0.0
    %522 = vmatpush1.msra.mxu0 0.0
    %523 = vmatprep.subr.mxu0 0.0
    %524 = vmatpush1.msra.mxu0 0.0
    %525 = vmatprep.subr.mxu0 0.0
    %526 = vmatpush1.msra.mxu0 0.0
    %527 = vmatprep.subr.mxu0 0.0
    %528 = vmatpush1.msra.mxu0 0.0
    %529 = vmatprep.mubr.f32.mxu0 0.0
    %530 = vmatmul.mubr.f32.gmra.mrb[0].mxu0 %v463
    %v531 = vpop.f32.mrb[0].mxu0
    %v532 = vadd.f32 0.0, %v531
    %v533 = vpop.f32.mrb[0].mxu0
    %534 = vdwg.mxu0
    %v536 = vrot.slane %v532, 6
    %v538 = vadd.f32 %v262, %v536
    %v539 = vxor.u32 %v538, 2147483648
    %v540 = vmul.f32 %v539, 1.442695
    %v541 = vpow.pop %v540
    %v542 = vadd.f32 %v541, 1.0
    %v543 = vrcp.pop %v542
    %v544 = vmul.f32 1.0, %v543
    %v545 = vtanh.pop %v538
    %v547 = vrot.slane %v450, 6
    %v549 = vmul.f32 %v544, %v547
    %551 = vrot.lane.b32.xlu0 %v545, 64
    %v552 = vpop.permute.xlu0 %551
    %v554 = vmul.f32 %v544, %v552
    %556 = vrot.lane.b32.xlu0 %v554, 32
    %v557 = vpop.permute.xlu0 %556
    %v559 = vadd.f32 %v549, %v557
    %v560 = vtanh.pop %v559
    %562 = vrot.lane.b32.xlu0 %v560, 64
    %v563 = vpop.permute.xlu0 %562
    %v565 = vmul.f32 %v544, %v563
    %567 = vrot.lane.b32.xlu0 %v565, 32
    %v568 = vpop.permute.xlu0 %567
    %vm570 = vcmask 257026
    %571 = vst.msk [vmem:[#allocation2] sm:$0xc] %vm570, %v568
    %v572 = vrot.slane %v565, 2
    %573 = vrot.lane.b32.xlu0 %v572, 32
    %v574 = vpop.permute.xlu0 %573
    %v575 = vsel %vm358, %v574, 0
    %577 = vmatprep.subr.mxu0 0.0
    %578 = vmatpush1.msra.mxu0 %v354
    %579 = vmatprep.subr.mxu0 0.0
    %580 = vmatpush1.msra.mxu0 %v355
    %581 = vmatprep.subr.mxu0 0.0
    %582 = vmatpush1.msra.mxu0 %v356
    %583 = vmatprep.subr.mxu0 0.0
    %584 = vmatpush1.msra.mxu0 %v357
    %585 = vmatprep.subr.mxu0 0.0
    %586 = vmatpush1.msra.mxu0 0.0
    %587 = vmatprep.subr.mxu0 0.0
    %588 = vmatpush1.msra.mxu0 0.0
    %589 = vmatprep.subr.mxu0 0.0
    %590 = vmatpush1.msra.mxu0 0.0
    %591 = vmatprep.subr.mxu0 0.0
    %592 = vmatpush1.msra.mxu0 0.0
    %593 = vmatprep.subr.mxu0 0.0
    %594 = vmatpush1.msra.mxu0 0.0
    %595 = vmatprep.subr.mxu0 0.0
    %596 = vmatpush1.msra.mxu0 0.0
    %597 = vmatprep.subr.mxu0 0.0
    %598 = vmatpush1.msra.mxu0 0.0
    %599 = vmatprep.subr.mxu0 0.0
    %600 = vmatpush1.msra.mxu0 0.0
    %601 = vmatprep.subr.mxu0 0.0
    %602 = vmatpush1.msra.mxu0 0.0
    %603 = vmatprep.subr.mxu0 0.0
    %604 = vmatpush1.msra.mxu0 0.0
    %605 = vmatprep.subr.mxu0 0.0
    %606 = vmatpush1.msra.mxu0 0.0
    %607 = vmatprep.subr.mxu0 0.0
    %608 = vmatpush1.msra.mxu0 0.0
    %609 = vmatprep.subr.mxu0 0.0
    %610 = vmatpush1.msra.mxu0 0.0
    %611 = vmatprep.subr.mxu0 0.0
    %612 = vmatpush1.msra.mxu0 0.0
    %613 = vmatprep.subr.mxu0 0.0
    %614 = vmatpush1.msra.mxu0 0.0
    %615 = vmatprep.subr.mxu0 0.0
    %616 = vmatpush1.msra.mxu0 0.0
    %617 = vmatprep.subr.mxu0 0.0
    %618 = vmatpush1.msra.mxu0 0.0
    %619 = vmatprep.subr.mxu0 0.0
    %620 = vmatpush1.msra.mxu0 0.0
    %621 = vmatprep.subr.mxu0 0.0
    %622 = vmatpush1.msra.mxu0 0.0
    %623 = vmatprep.subr.mxu0 0.0
    %624 = vmatpush1.msra.mxu0 0.0
    %625 = vmatprep.subr.mxu0 0.0
    %626 = vmatpush1.msra.mxu0 0.0
    %627 = vmatprep.subr.mxu0 0.0
    %628 = vmatpush1.msra.mxu0 0.0
    %629 = vmatprep.subr.mxu0 0.0
    %630 = vmatpush1.msra.mxu0 0.0
    %631 = vmatprep.subr.mxu0 0.0
    %632 = vmatpush1.msra.mxu0 0.0
    %633 = vmatprep.subr.mxu0 0.0
    %634 = vmatpush1.msra.mxu0 0.0
    %635 = vmatprep.subr.mxu0 0.0
    %636 = vmatpush1.msra.mxu0 0.0
    %637 = vmatprep.subr.mxu0 0.0
    %638 = vmatpush1.msra.mxu0 0.0
    %639 = vmatprep.subr.mxu0 0.0
    %640 = vmatpush1.msra.mxu0 0.0
    %641 = vmatprep.mubr.f32.mxu0 0.0
    %642 = vmatmul.mubr.f32.gmra.mrb[0].mxu0 %v575
    %v643 = vpop.f32.mrb[0].mxu0
    %v644 = vadd.f32 0.0, %v643
    %v645 = vpop.f32.mrb[0].mxu0
    %646 = vdwg.mxu0
    %v648 = vrot.slane %v644, 4
    %v650 = vadd.f32 %v262, %v648
    %v651 = vxor.u32 %v650, 2147483648
    %v652 = vmul.f32 %v651, 1.442695
    %v653 = vpow.pop %v652
    %v654 = vadd.f32 %v653, 1.0
    %v655 = vrcp.pop %v654
    %v656 = vmul.f32 1.0, %v655
    %v657 = vtanh.pop %v650
    %v659 = vrot.slane %v559, 6
    %v661 = vmul.f32 %v656, %v659
    %663 = vrot.lane.b32.xlu0 %v657, 64
    %v664 = vpop.permute.xlu0 %663
    %v666 = vmul.f32 %v656, %v664
    %668 = vrot.lane.b32.xlu0 %v666, 32
    %v669 = vpop.permute.xlu0 %668
    %v671 = vadd.f32 %v661, %v669
    %v672 = vtanh.pop %v671
    %674 = vrot.lane.b32.xlu0 %v672, 64
    %v675 = vpop.permute.xlu0 %674
    %v677 = vmul.f32 %v656, %v675
    %679 = vrot.lane.b32.xlu0 %v677, 32
    %v680 = vpop.permute.xlu0 %679
    %vm682 = vcmask 259076
    %683 = vst.msk [vmem:[#allocation2] sm:$0x30] %vm682, %v680
    %v684 = vrot.slane %v677, 4
    %685 = vrot.lane.b32.xlu0 %v684, 32
    %v686 = vpop.permute.xlu0 %685
    %v687 = vsel %vm358, %v686, 0
    %689 = vmatprep.subr.mxu0 0.0
    %690 = vmatpush1.msra.mxu0 %v354
    %691 = vmatprep.subr.mxu0 0.0
    %692 = vmatpush1.msra.mxu0 %v355
    %693 = vmatprep.subr.mxu0 0.0
    %694 = vmatpush1.msra.mxu0 %v356
    %695 = vmatprep.subr.mxu0 0.0
    %696 = vmatpush1.msra.mxu0 %v357
    %697 = vmatprep.subr.mxu0 0.0
    %698 = vmatpush1.msra.mxu0 0.0
    %699 = vmatprep.subr.mxu0 0.0
    %700 = vmatpush1.msra.mxu0 0.0
    %701 = vmatprep.subr.mxu0 0.0
    %702 = vmatpush1.msra.mxu0 0.0
    %703 = vmatprep.subr.mxu0 0.0
    %704 = vmatpush1.msra.mxu0 0.0
    %705 = vmatprep.subr.mxu0 0.0
    %706 = vmatpush1.msra.mxu0 0.0
    %707 = vmatprep.subr.mxu0 0.0
    %708 = vmatpush1.msra.mxu0 0.0
    %709 = vmatprep.subr.mxu0 0.0
    %710 = vmatpush1.msra.mxu0 0.0
    %711 = vmatprep.subr.mxu0 0.0
    %712 = vmatpush1.msra.mxu0 0.0
    %713 = vmatprep.subr.mxu0 0.0
    %714 = vmatpush1.msra.mxu0 0.0
    %715 = vmatprep.subr.mxu0 0.0
    %716 = vmatpush1.msra.mxu0 0.0
    %717 = vmatprep.subr.mxu0 0.0
    %718 = vmatpush1.msra.mxu0 0.0
    %719 = vmatprep.subr.mxu0 0.0
    %720 = vmatpush1.msra.mxu0 0.0
    %721 = vmatprep.subr.mxu0 0.0
    %722 = vmatpush1.msra.mxu0 0.0
    %723 = vmatprep.subr.mxu0 0.0
    %724 = vmatpush1.msra.mxu0 0.0
    %725 = vmatprep.subr.mxu0 0.0
    %726 = vmatpush1.msra.mxu0 0.0
    %727 = vmatprep.subr.mxu0 0.0
    %728 = vmatpush1.msra.mxu0 0.0
    %729 = vmatprep.subr.mxu0 0.0
    %730 = vmatpush1.msra.mxu0 0.0
    %731 = vmatprep.subr.mxu0 0.0
    %732 = vmatpush1.msra.mxu0 0.0
    %733 = vmatprep.subr.mxu0 0.0
    %734 = vmatpush1.msra.mxu0 0.0
    %735 = vmatprep.subr.mxu0 0.0
    %736 = vmatpush1.msra.mxu0 0.0
    %737 = vmatprep.subr.mxu0 0.0
    %738 = vmatpush1.msra.mxu0 0.0
    %739 = vmatprep.subr.mxu0 0.0
    %740 = vmatpush1.msra.mxu0 0.0
    %741 = vmatprep.subr.mxu0 0.0
    %742 = vmatpush1.msra.mxu0 0.0
    %743 = vmatprep.subr.mxu0 0.0
    %744 = vmatpush1.msra.mxu0 0.0
    %745 = vmatprep.subr.mxu0 0.0
    %746 = vmatpush1.msra.mxu0 0.0
    %747 = vmatprep.subr.mxu0 0.0
    %748 = vmatpush1.msra.mxu0 0.0
    %749 = vmatprep.subr.mxu0 0.0
    %750 = vmatpush1.msra.mxu0 0.0
    %751 = vmatprep.subr.mxu0 0.0
    %752 = vmatpush1.msra.mxu0 0.0
    %753 = vmatprep.mubr.f32.mxu0 0.0
    %754 = vmatmul.mubr.f32.gmra.mrb[0].mxu0 %v687
    %v755 = vpop.f32.mrb[0].mxu0
    %v756 = vadd.f32 0.0, %v755
    %v757 = vpop.f32.mrb[0].mxu0
    %758 = vdwg.mxu0
    %v760 = vrot.slane %v756, 2
    %v762 = vadd.f32 %v262, %v760
    %v763 = vxor.u32 %v762, 2147483648
    %v764 = vmul.f32 %v763, 1.442695
    %v765 = vpow.pop %v764
    %v766 = vadd.f32 %v765, 1.0
    %v767 = vrcp.pop %v766
    %v768 = vmul.f32 1.0, %v767
    %v769 = vtanh.pop %v762
    %v771 = vrot.slane %v671, 6
    %v773 = vmul.f32 %v768, %v771
    %775 = vrot.lane.b32.xlu0 %v769, 64
    %v776 = vpop.permute.xlu0 %775
    %v778 = vmul.f32 %v768, %v776
    %780 = vrot.lane.b32.xlu0 %v778, 32
    %v781 = vpop.permute.xlu0 %780
    %v783 = vadd.f32 %v773, %v781
    %v784 = vtanh.pop %v783
    %786 = vrot.lane.b32.xlu0 %v784, 64
    %v787 = vpop.permute.xlu0 %786
    %v789 = vmul.f32 %v768, %v787
    %791 = vrot.lane.b32.xlu0 %v789, 32
    %v792 = vpop.permute.xlu0 %791
    %vm794 = vcmask 261126
    %795 = vst.msk [vmem:[#allocation2] sm:$0xc0] %vm794, %v792
    %v796 = vrot.slane %v789, 6
    %797 = vrot.lane.b32.xlu0 %v796, 32
    %v798 = vpop.permute.xlu0 %797
    %v799 = vsel %vm358, %v798, 0
    %801 = vmatprep.subr.mxu0 0.0
    %802 = vmatpush1.msra.mxu0 %v354
    %803 = vmatprep.subr.mxu0 0.0
    %804 = vmatpush1.msra.mxu0 %v355
    %805 = vmatprep.subr.mxu0 0.0
    %806 = vmatpush1.msra.mxu0 %v356
    %807 = vmatprep.subr.mxu0 0.0
    %808 = vmatpush1.msra.mxu0 %v357
    %809 = vmatprep.subr.mxu0 0.0
    %810 = vmatpush1.msra.mxu0 0.0
    %811 = vmatprep.subr.mxu0 0.0
    %812 = vmatpush1.msra.mxu0 0.0
    %813 = vmatprep.subr.mxu0 0.0
    %814 = vmatpush1.msra.mxu0 0.0
    %815 = vmatprep.subr.mxu0 0.0
    %816 = vmatpush1.msra.mxu0 0.0
    %817 = vmatprep.subr.mxu0 0.0
    %818 = vmatpush1.msra.mxu0 0.0
    %819 = vmatprep.subr.mxu0 0.0
    %820 = vmatpush1.msra.mxu0 0.0
    %821 = vmatprep.subr.mxu0 0.0
    %822 = vmatpush1.msra.mxu0 0.0
    %823 = vmatprep.subr.mxu0 0.0
    %824 = vmatpush1.msra.mxu0 0.0
    %825 = vmatprep.subr.mxu0 0.0
    %826 = vmatpush1.msra.mxu0 0.0
    %827 = vmatprep.subr.mxu0 0.0
    %828 = vmatpush1.msra.mxu0 0.0
    %829 = vmatprep.subr.mxu0 0.0
    %830 = vmatpush1.msra.mxu0 0.0
    %831 = vmatprep.subr.mxu0 0.0
    %832 = vmatpush1.msra.mxu0 0.0
    %833 = vmatprep.subr.mxu0 0.0
    %834 = vmatpush1.msra.mxu0 0.0
    %835 = vmatprep.subr.mxu0 0.0
    %836 = vmatpush1.msra.mxu0 0.0
    %837 = vmatprep.subr.mxu0 0.0
    %838 = vmatpush1.msra.mxu0 0.0
    %839 = vmatprep.subr.mxu0 0.0
    %840 = vmatpush1.msra.mxu0 0.0
    %841 = vmatprep.subr.mxu0 0.0
    %842 = vmatpush1.msra.mxu0 0.0
    %843 = vmatprep.subr.mxu0 0.0
    %844 = vmatpush1.msra.mxu0 0.0
    %845 = vmatprep.subr.mxu0 0.0
    %846 = vmatpush1.msra.mxu0 0.0
    %847 = vmatprep.subr.mxu0 0.0
    %848 = vmatpush1.msra.mxu0 0.0
    %849 = vmatprep.subr.mxu0 0.0
    %850 = vmatpush1.msra.mxu0 0.0
    %851 = vmatprep.subr.mxu0 0.0
    %852 = vmatpush1.msra.mxu0 0.0
    %853 = vmatprep.subr.mxu0 0.0
    %854 = vmatpush1.msra.mxu0 0.0
    %855 = vmatprep.subr.mxu0 0.0
    %856 = vmatpush1.msra.mxu0 0.0
    %857 = vmatprep.subr.mxu0 0.0
    %858 = vmatpush1.msra.mxu0 0.0
    %859 = vmatprep.subr.mxu0 0.0
    %860 = vmatpush1.msra.mxu0 0.0
    %861 = vmatprep.subr.mxu0 0.0
    %862 = vmatpush1.msra.mxu0 0.0
    %863 = vmatprep.subr.mxu0 0.0
    %864 = vmatpush1.msra.mxu0 0.0
    %865 = vmatprep.mubr.f32.mxu0 0.0
    %866 = vmatmul.mubr.f32.gmra.mrb[0].mxu0 %v799
    %v867 = vpop.f32.mrb[0].mxu0
    %v868 = vadd.f32 0.0, %v867
    %v869 = vpop.f32.mrb[0].mxu0
    %870 = vdwg.mxu0
    %v871 = vadd.f32 %v267, %v868
    %v872 = vxor.u32 %v871, 2147483648
    %v873 = vmul.f32 %v872, 1.442695
    %v874 = vpow.pop %v873
    %v875 = vadd.f32 %v874, 1.0
    %v876 = vrcp.pop %v875
    %v877 = vmul.f32 1.0, %v876
    %v878 = vtanh.pop %v871
    %v880 = vrot.slane %v783, 6
    %v882 = vmul.f32 %v877, %v880
    %884 = vrot.lane.b32.xlu0 %v878, 64
    %v885 = vpop.permute.xlu0 %884
    %v887 = vmul.f32 %v877, %v885
    %889 = vrot.lane.b32.xlu0 %v887, 32
    %v890 = vpop.permute.xlu0 %889
    %v892 = vadd.f32 %v882, %v890
    %v893 = vtanh.pop %v892
    %895 = vrot.lane.b32.xlu0 %v893, 64
    %v896 = vpop.permute.xlu0 %895
    %v898 = vmul.f32 %v877, %v896
    %900 = vrot.lane.b32.xlu0 %v898, 32
    %v901 = vpop.permute.xlu0 %900
    %903 = vst.msk [vmem:[#allocation2 + $0x8] sm:$0x3] %vm461, %v901
    %v904 = vsel %vm358, %v901, 0
    %906 = vmatprep.subr.mxu0 0.0
    %907 = vmatpush1.msra.mxu0 %v354
    %908 = vmatprep.subr.mxu0 0.0
    %909 = vmatpush1.msra.mxu0 %v355
    %910 = vmatprep.subr.mxu0 0.0
    %911 = vmatpush1.msra.mxu0 %v356
    %912 = vmatprep.subr.mxu0 0.0
    %913 = vmatpush1.msra.mxu0 %v357
    %914 = vmatprep.subr.mxu0 0.0
    %915 = vmatpush1.msra.mxu0 0.0
    %916 = vmatprep.subr.mxu0 0.0
    %917 = vmatpush1.msra.mxu0 0.0
    %918 = vmatprep.subr.mxu0 0.0
    %919 = vmatpush1.msra.mxu0 0.0
    %920 = vmatprep.subr.mxu0 0.0
    %921 = vmatpush1.msra.mxu0 0.0
    %922 = vmatprep.subr.mxu0 0.0
    %923 = vmatpush1.msra.mxu0 0.0
    %924 = vmatprep.subr.mxu0 0.0
    %925 = vmatpush1.msra.mxu0 0.0
    %926 = vmatprep.subr.mxu0 0.0
    %927 = vmatpush1.msra.mxu0 0.0
    %928 = vmatprep.subr.mxu0 0.0
    %929 = vmatpush1.msra.mxu0 0.0
    %930 = vmatprep.subr.mxu0 0.0
    %931 = vmatpush1.msra.mxu0 0.0
    %932 = vmatprep.subr.mxu0 0.0
    %933 = vmatpush1.msra.mxu0 0.0
    %934 = vmatprep.subr.mxu0 0.0
    %935 = vmatpush1.msra.mxu0 0.0
    %936 = vmatprep.subr.mxu0 0.0
    %937 = vmatpush1.msra.mxu0 0.0
    %938 = vmatprep.subr.mxu0 0.0
    %939 = vmatpush1.msra.mxu0 0.0
    %940 = vmatprep.subr.mxu0 0.0
    %941 = vmatpush1.msra.mxu0 0.0
    %942 = vmatprep.subr.mxu0 0.0
    %943 = vmatpush1.msra.mxu0 0.0
    %944 = vmatprep.subr.mxu0 0.0
    %945 = vmatpush1.msra.mxu0 0.0
    %946 = vmatprep.subr.mxu0 0.0
    %947 = vmatpush1.msra.mxu0 0.0
    %948 = vmatprep.subr.mxu0 0.0
    %949 = vmatpush1.msra.mxu0 0.0
    %950 = vmatprep.subr.mxu0 0.0
    %951 = vmatpush1.msra.mxu0 0.0
    %952 = vmatprep.subr.mxu0 0.0
    %953 = vmatpush1.msra.mxu0 0.0
    %954 = vmatprep.subr.mxu0 0.0
    %955 = vmatpush1.msra.mxu0 0.0
    %956 = vmatprep.subr.mxu0 0.0
    %957 = vmatpush1.msra.mxu0 0.0
    %958 = vmatprep.subr.mxu0 0.0
    %959 = vmatpush1.msra.mxu0 0.0
    %960 = vmatprep.subr.mxu0 0.0
    %961 = vmatpush1.msra.mxu0 0.0
    %962 = vmatprep.subr.mxu0 0.0
    %963 = vmatpush1.msra.mxu0 0.0
    %964 = vmatprep.subr.mxu0 0.0
    %965 = vmatpush1.msra.mxu0 0.0
    %966 = vmatprep.subr.mxu0 0.0
    %967 = vmatpush1.msra.mxu0 0.0
    %968 = vmatprep.subr.mxu0 0.0
    %969 = vmatpush1.msra.mxu0 0.0
    %970 = vmatprep.mubr.f32.mxu0 0.0
    %971 = vmatmul.mubr.f32.gmra.mrb[0].mxu0 %v904
    %v972 = vpop.f32.mrb[0].mxu0
    %v973 = vadd.f32 0.0, %v972
    %v974 = vpop.f32.mrb[0].mxu0
    %975 = vdwg.mxu0
    %v977 = vrot.slane %v973, 6
    %v979 = vadd.f32 %v267, %v977
    %v980 = vxor.u32 %v979, 2147483648
    %v981 = vmul.f32 %v980, 1.442695
    %v982 = vpow.pop %v981
    %v983 = vadd.f32 %v982, 1.0
    %v984 = vrcp.pop %v983
    %v985 = vmul.f32 1.0, %v984
    %v986 = vtanh.pop %v979
    %v988 = vrot.slane %v892, 6
    %v990 = vmul.f32 %v985, %v988
    %992 = vrot.lane.b32.xlu0 %v986, 64
    %v993 = vpop.permute.xlu0 %992
    %v995 = vmul.f32 %v985, %v993
    %997 = vrot.lane.b32.xlu0 %v995, 32
    %v998 = vpop.permute.xlu0 %997
    %v1000 = vadd.f32 %v990, %v998
    %v1001 = vtanh.pop %v1000
    %1003 = vrot.lane.b32.xlu0 %v1001, 64
    %v1004 = vpop.permute.xlu0 %1003
    %v1006 = vmul.f32 %v985, %v1004
    %1008 = vrot.lane.b32.xlu0 %v1006, 32
    %v1009 = vpop.permute.xlu0 %1008
    %1011 = vst.msk [vmem:[#allocation2 + $0x8] sm:$0xc] %vm570, %v1009
    %v1012 = vrot.slane %v1006, 2
    %1013 = vrot.lane.b32.xlu0 %v1012, 32
    %v1014 = vpop.permute.xlu0 %1013
    %v1015 = vsel %vm358, %v1014, 0
    %1017 = vmatprep.subr.mxu0 0.0
    %1018 = vmatpush1.msra.mxu0 %v354
    %1019 = vmatprep.subr.mxu0 0.0
    %1020 = vmatpush1.msra.mxu0 %v355
    %1021 = vmatprep.subr.mxu0 0.0
    %1022 = vmatpush1.msra.mxu0 %v356
    %1023 = vmatprep.subr.mxu0 0.0
    %1024 = vmatpush1.msra.mxu0 %v357
    %1025 = vmatprep.subr.mxu0 0.0
    %1026 = vmatpush1.msra.mxu0 0.0
    %1027 = vmatprep.subr.mxu0 0.0
    %1028 = vmatpush1.msra.mxu0 0.0
    %1029 = vmatprep.subr.mxu0 0.0
    %1030 = vmatpush1.msra.mxu0 0.0
    %1031 = vmatprep.subr.mxu0 0.0
    %1032 = vmatpush1.msra.mxu0 0.0
    %1033 = vmatprep.subr.mxu0 0.0
    %1034 = vmatpush1.msra.mxu0 0.0
    %1035 = vmatprep.subr.mxu0 0.0
    %1036 = vmatpush1.msra.mxu0 0.0
    %1037 = vmatprep.subr.mxu0 0.0
    %1038 = vmatpush1.msra.mxu0 0.0
    %1039 = vmatprep.subr.mxu0 0.0
    %1040 = vmatpush1.msra.mxu0 0.0
    %1041 = vmatprep.subr.mxu0 0.0
    %1042 = vmatpush1.msra.mxu0 0.0
    %1043 = vmatprep.subr.mxu0 0.0
    %1044 = vmatpush1.msra.mxu0 0.0
    %1045 = vmatprep.subr.mxu0 0.0
    %1046 = vmatpush1.msra.mxu0 0.0
    %1047 = vmatprep.subr.mxu0 0.0
    %1048 = vmatpush1.msra.mxu0 0.0
    %1049 = vmatprep.subr.mxu0 0.0
    %1050 = vmatpush1.msra.mxu0 0.0
    %1051 = vmatprep.subr.mxu0 0.0
    %1052 = vmatpush1.msra.mxu0 0.0
    %1053 = vmatprep.subr.mxu0 0.0
    %1054 = vmatpush1.msra.mxu0 0.0
    %1055 = vmatprep.subr.mxu0 0.0
    %1056 = vmatpush1.msra.mxu0 0.0
    %1057 = vmatprep.subr.mxu0 0.0
    %1058 = vmatpush1.msra.mxu0 0.0
    %1059 = vmatprep.subr.mxu0 0.0
    %1060 = vmatpush1.msra.mxu0 0.0
    %1061 = vmatprep.subr.mxu0 0.0
    %1062 = vmatpush1.msra.mxu0 0.0
    %1063 = vmatprep.subr.mxu0 0.0
    %1064 = vmatpush1.msra.mxu0 0.0
    %1065 = vmatprep.subr.mxu0 0.0
    %1066 = vmatpush1.msra.mxu0 0.0
    %1067 = vmatprep.subr.mxu0 0.0
    %1068 = vmatpush1.msra.mxu0 0.0
    %1069 = vmatprep.subr.mxu0 0.0
    %1070 = vmatpush1.msra.mxu0 0.0
    %1071 = vmatprep.subr.mxu0 0.0
    %1072 = vmatpush1.msra.mxu0 0.0
    %1073 = vmatprep.subr.mxu0 0.0
    %1074 = vmatpush1.msra.mxu0 0.0
    %1075 = vmatprep.subr.mxu0 0.0
    %1076 = vmatpush1.msra.mxu0 0.0
    %1077 = vmatprep.subr.mxu0 0.0
    %1078 = vmatpush1.msra.mxu0 0.0
    %1079 = vmatprep.subr.mxu0 0.0
    %1080 = vmatpush1.msra.mxu0 0.0
    %1081 = vmatprep.mubr.f32.mxu0 0.0
    %1082 = vmatmul.mubr.f32.gmra.mrb[0].mxu0 %v1015
    %v1083 = vpop.f32.mrb[0].mxu0
    %v1084 = vadd.f32 0.0, %v1083
    %v1085 = vpop.f32.mrb[0].mxu0
    %1086 = vdwg.mxu0
    %v1088 = vrot.slane %v1084, 4
    %v1090 = vadd.f32 %v267, %v1088
    %v1091 = vxor.u32 %v1090, 2147483648
    %v1092 = vmul.f32 %v1091, 1.442695
    %v1093 = vpow.pop %v1092
    %v1094 = vadd.f32 %v1093, 1.0
    %v1095 = vrcp.pop %v1094
    %v1096 = vmul.f32 1.0, %v1095
    %v1097 = vtanh.pop %v1090
    %v1099 = vrot.slane %v1000, 6
    %v1101 = vmul.f32 %v1096, %v1099
    %1103 = vrot.lane.b32.xlu0 %v1097, 64
    %v1104 = vpop.permute.xlu0 %1103
    %v1106 = vmul.f32 %v1096, %v1104
    %1108 = vrot.lane.b32.xlu0 %v1106, 32
    %v1109 = vpop.permute.xlu0 %1108
    %v1111 = vadd.f32 %v1101, %v1109
    %v1112 = vtanh.pop %v1111
    %1114 = vrot.lane.b32.xlu0 %v1112, 64
    %v1115 = vpop.permute.xlu0 %1114
    %v1117 = vmul.f32 %v1096, %v1115
    %1119 = vrot.lane.b32.xlu0 %v1117, 32
    %v1120 = vpop.permute.xlu0 %1119
    %1122 = vst.msk [vmem:[#allocation2 + $0x8] sm:$0x30] %vm682, %v1120
    %v1123 = vrot.slane %v1117, 4
    %1124 = vrot.lane.b32.xlu0 %v1123, 32
    %v1125 = vpop.permute.xlu0 %1124
    %v1126 = vsel %vm358, %v1125, 0
    %1128 = vmatprep.subr.mxu0 0.0
    %1129 = vmatpush1.msra.mxu0 %v354
    %1130 = vmatprep.subr.mxu0 0.0
    %1131 = vmatpush1.msra.mxu0 %v355
    %1132 = vmatprep.subr.mxu0 0.0
    %1133 = vmatpush1.msra.mxu0 %v356
    %1134 = vmatprep.subr.mxu0 0.0
    %1135 = vmatpush1.msra.mxu0 %v357
    %1136 = vmatprep.subr.mxu0 0.0
    %1137 = vmatpush1.msra.mxu0 0.0
    %1138 = vmatprep.subr.mxu0 0.0
    %1139 = vmatpush1.msra.mxu0 0.0
    %1140 = vmatprep.subr.mxu0 0.0
    %1141 = vmatpush1.msra.mxu0 0.0
    %1142 = vmatprep.subr.mxu0 0.0
    %1143 = vmatpush1.msra.mxu0 0.0
    %1144 = vmatprep.subr.mxu0 0.0
    %1145 = vmatpush1.msra.mxu0 0.0
    %1146 = vmatprep.subr.mxu0 0.0
    %1147 = vmatpush1.msra.mxu0 0.0
    %1148 = vmatprep.subr.mxu0 0.0
    %1149 = vmatpush1.msra.mxu0 0.0
    %1150 = vmatprep.subr.mxu0 0.0
    %1151 = vmatpush1.msra.mxu0 0.0
    %1152 = vmatprep.subr.mxu0 0.0
    %1153 = vmatpush1.msra.mxu0 0.0
    %1154 = vmatprep.subr.mxu0 0.0
    %1155 = vmatpush1.msra.mxu0 0.0
    %1156 = vmatprep.subr.mxu0 0.0
    %1157 = vmatpush1.msra.mxu0 0.0
    %1158 = vmatprep.subr.mxu0 0.0
    %1159 = vmatpush1.msra.mxu0 0.0
    %1160 = vmatprep.subr.mxu0 0.0
    %1161 = vmatpush1.msra.mxu0 0.0
    %1162 = vmatprep.subr.mxu0 0.0
    %1163 = vmatpush1.msra.mxu0 0.0
    %1164 = vmatprep.subr.mxu0 0.0
    %1165 = vmatpush1.msra.mxu0 0.0
    %1166 = vmatprep.subr.mxu0 0.0
    %1167 = vmatpush1.msra.mxu0 0.0
    %1168 = vmatprep.subr.mxu0 0.0
    %1169 = vmatpush1.msra.mxu0 0.0
    %1170 = vmatprep.subr.mxu0 0.0
    %1171 = vmatpush1.msra.mxu0 0.0
    %1172 = vmatprep.subr.mxu0 0.0
    %1173 = vmatpush1.msra.mxu0 0.0
    %1174 = vmatprep.subr.mxu0 0.0
    %1175 = vmatpush1.msra.mxu0 0.0
    %1176 = vmatprep.subr.mxu0 0.0
    %1177 = vmatpush1.msra.mxu0 0.0
    %1178 = vmatprep.subr.mxu0 0.0
    %1179 = vmatpush1.msra.mxu0 0.0
    %1180 = vmatprep.subr.mxu0 0.0
    %1181 = vmatpush1.msra.mxu0 0.0
    %1182 = vmatprep.subr.mxu0 0.0
    %1183 = vmatpush1.msra.mxu0 0.0
    %1184 = vmatprep.subr.mxu0 0.0
    %1185 = vmatpush1.msra.mxu0 0.0
    %1186 = vmatprep.subr.mxu0 0.0
    %1187 = vmatpush1.msra.mxu0 0.0
    %1188 = vmatprep.subr.mxu0 0.0
    %1189 = vmatpush1.msra.mxu0 0.0
    %1190 = vmatprep.subr.mxu0 0.0
    %1191 = vmatpush1.msra.mxu0 0.0
    %1192 = vmatprep.mubr.f32.mxu0 0.0
    %1193 = vmatmul.mubr.f32.gmra.mrb[0].mxu0 %v1126
    %v1194 = vpop.f32.mrb[0].mxu0
    %v1195 = vadd.f32 0.0, %v1194
    %v1196 = vpop.f32.mrb[0].mxu0
    %1197 = vdwg.mxu0
    %v1199 = vrot.slane %v1195, 2
    %v1201 = vadd.f32 %v267, %v1199
    %v1202 = vxor.u32 %v1201, 2147483648
    %v1203 = vmul.f32 %v1202, 1.442695
    %v1204 = vpow.pop %v1203
    %v1205 = vadd.f32 %v1204, 1.0
    %v1206 = vrcp.pop %v1205
    %v1207 = vmul.f32 1.0, %v1206
    %v1208 = vtanh.pop %v1201
    %v1210 = vrot.slane %v1111, 6
    %v1212 = vmul.f32 %v1207, %v1210
    %1214 = vrot.lane.b32.xlu0 %v1208, 64
    %v1215 = vpop.permute.xlu0 %1214
    %v1217 = vmul.f32 %v1207, %v1215
    %1219 = vrot.lane.b32.xlu0 %v1217, 32
    %v1220 = vpop.permute.xlu0 %1219
    %v1222 = vadd.f32 %v1212, %v1220
    %v1223 = vtanh.pop %v1222
    %1225 = vrot.lane.b32.xlu0 %v1223, 64
    %v1226 = vpop.permute.xlu0 %1225
    %v1228 = vmul.f32 %v1207, %v1226
    %1230 = vrot.lane.b32.xlu0 %v1228, 32
    %v1231 = vpop.permute.xlu0 %1230
    %1233 = vst.msk [vmem:[#allocation2 + $0x8] sm:$0xc0] %vm794, %v1231
    %v1234 = vld [vmem:[#allocation12] sm:$0xff]
    %v1235 = vld [vmem:[#allocation12 + $0x8] sm:$0xff]
    %v1236 = vld [vmem:[#allocation12 + $0x10] sm:$0xff]
    %v1237 = vld [vmem:[#allocation12 + $0x18] sm:$0xff]
    %1238 = vmatprep.subr.mxu0 0.0
    %1239 = vmatpush1.msra.mxu0 %v1234
    %1240 = vmatprep.subr.mxu0 0.0
    %1241 = vmatpush1.msra.mxu0 %v1235
    %1242 = vmatprep.subr.mxu0 0.0
    %1243 = vmatpush1.msra.mxu0 %v1236
    %1244 = vmatprep.subr.mxu0 0.0
    %1245 = vmatpush1.msra.mxu0 %v1237
    %1246 = vmatprep.subr.mxu0 0.0
    %1247 = vmatpush1.msra.mxu0 0.0
    %1248 = vmatprep.subr.mxu0 0.0
    %1249 = vmatpush1.msra.mxu0 0.0
    %1250 = vmatprep.subr.mxu0 0.0
    %1251 = vmatpush1.msra.mxu0 0.0
    %1252 = vmatprep.subr.mxu0 0.0
    %1253 = vmatpush1.msra.mxu0 0.0
    %1254 = vmatprep.subr.mxu0 0.0
    %1255 = vmatpush1.msra.mxu0 0.0
    %1256 = vmatprep.subr.mxu0 0.0
    %1257 = vmatpush1.msra.mxu0 0.0
    %1258 = vmatprep.subr.mxu0 0.0
    %1259 = vmatpush1.msra.mxu0 0.0
    %1260 = vmatprep.subr.mxu0 0.0
    %1261 = vmatpush1.msra.mxu0 0.0
    %1262 = vmatprep.subr.mxu0 0.0
    %1263 = vmatpush1.msra.mxu0 0.0
    %1264 = vmatprep.subr.mxu0 0.0
    %1265 = vmatpush1.msra.mxu0 0.0
    %1266 = vmatprep.subr.mxu0 0.0
    %1267 = vmatpush1.msra.mxu0 0.0
    %1268 = vmatprep.subr.mxu0 0.0
    %1269 = vmatpush1.msra.mxu0 0.0
    %1270 = vmatprep.subr.mxu0 0.0
    %1271 = vmatpush1.msra.mxu0 0.0
    %1272 = vmatprep.subr.mxu0 0.0
    %1273 = vmatpush1.msra.mxu0 0.0
    %1274 = vmatprep.subr.mxu0 0.0
    %1275 = vmatpush1.msra.mxu0 0.0
    %1276 = vmatprep.subr.mxu0 0.0
    %1277 = vmatpush1.msra.mxu0 0.0
    %1278 = vmatprep.subr.mxu0 0.0
    %1279 = vmatpush1.msra.mxu0 0.0
    %1280 = vmatprep.subr.mxu0 0.0
    %1281 = vmatpush1.msra.mxu0 0.0
    %1282 = vmatprep.subr.mxu0 0.0
    %1283 = vmatpush1.msra.mxu0 0.0
    %1284 = vmatprep.subr.mxu0 0.0
    %1285 = vmatpush1.msra.mxu0 0.0
    %1286 = vmatprep.subr.mxu0 0.0
    %1287 = vmatpush1.msra.mxu0 0.0
    %1288 = vmatprep.subr.mxu0 0.0
    %1289 = vmatpush1.msra.mxu0 0.0
    %1290 = vmatprep.subr.mxu0 0.0
    %1291 = vmatpush1.msra.mxu0 0.0
    %1292 = vmatprep.subr.mxu0 0.0
    %1293 = vmatpush1.msra.mxu0 0.0
    %1294 = vmatprep.subr.mxu0 0.0
    %1295 = vmatpush1.msra.mxu0 0.0
    %1296 = vmatprep.subr.mxu0 0.0
    %1297 = vmatpush1.msra.mxu0 0.0
    %1298 = vmatprep.subr.mxu0 0.0
    %1299 = vmatpush1.msra.mxu0 0.0
    %1300 = vmatprep.subr.mxu0 0.0
    %1301 = vmatpush1.msra.mxu0 0.0
    %1302 = vmatprep.mubr.f32.mxu0 0.0
    %1303 = vmatmul.mubr.f32.gmra.mrb[0].mxu0 %v360
    %v1304 = vpop.f32.mrb[0].mxu0
    %v1305 = vadd.f32 0.0, %v1304
    %v1306 = vpop.f32.mrb[0].mxu0
    %1307 = vdwg.mxu0
    %v1309 = vrot.slane %v1305, 2
    %v1311 = vadd.f32 %v351, %v1309
    %v1312 = vxor.u32 %v1311, 2147483648
    %v1313 = vmul.f32 %v1312, 1.442695
    %v1314 = vpow.pop %v1313
    %v1315 = vadd.f32 %v1314, 1.0
    %v1316 = vrcp.pop %v1315
    %v1317 = vmul.f32 1.0, %v1316
    %v1318 = vtanh.pop %v1311
    %v1319 = vmul.f32 %v1317, 0.0
    %1321 = vrot.lane.b32.xlu0 %v1318, 64
    %v1322 = vpop.permute.xlu0 %1321
    %v1324 = vmul.f32 %v1317, %v1322
    %1326 = vrot.lane.b32.xlu0 %v1324, 32
    %v1327 = vpop.permute.xlu0 %1326
    %v1329 = vadd.f32 %v1319, %v1327
    %v1330 = vtanh.pop %v1329
    %1332 = vrot.lane.b32.xlu0 %v1330, 64
    %v1333 = vpop.permute.xlu0 %1332
    %v1335 = vmul.f32 %v1317, %v1333
    %1337 = vrot.lane.b32.xlu0 %v1335, 64
    %v1338 = vpop.permute.xlu0 %1337
    %vm1340 = vcmask 523526
    %1341 = vst.msk [vmem:[#allocation2 + $0x8] sm:$0xc0] %vm1340, %v1338
    %v1342 = vrot.slane %v1335, 6
    %1343 = vrot.lane.b32.xlu0 %v1342, 32
    %v1344 = vpop.permute.xlu0 %1343
    %v1345 = vsel %vm358, %v1344, 0
    %1347 = vmatprep.subr.mxu0 0.0
    %1348 = vmatpush1.msra.mxu0 %v1234
    %1349 = vmatprep.subr.mxu0 0.0
    %1350 = vmatpush1.msra.mxu0 %v1235
    %1351 = vmatprep.subr.mxu0 0.0
    %1352 = vmatpush1.msra.mxu0 %v1236
    %1353 = vmatprep.subr.mxu0 0.0
    %1354 = vmatpush1.msra.mxu0 %v1237
    %1355 = vmatprep.subr.mxu0 0.0
    %1356 = vmatpush1.msra.mxu0 0.0
    %1357 = vmatprep.subr.mxu0 0.0
    %1358 = vmatpush1.msra.mxu0 0.0
    %1359 = vmatprep.subr.mxu0 0.0
    %1360 = vmatpush1.msra.mxu0 0.0
    %1361 = vmatprep.subr.mxu0 0.0
    %1362 = vmatpush1.msra.mxu0 0.0
    %1363 = vmatprep.subr.mxu0 0.0
    %1364 = vmatpush1.msra.mxu0 0.0
    %1365 = vmatprep.subr.mxu0 0.0
    %1366 = vmatpush1.msra.mxu0 0.0
    %1367 = vmatprep.subr.mxu0 0.0
    %1368 = vmatpush1.msra.mxu0 0.0
    %1369 = vmatprep.subr.mxu0 0.0
    %1370 = vmatpush1.msra.mxu0 0.0
    %1371 = vmatprep.subr.mxu0 0.0
    %1372 = vmatpush1.msra.mxu0 0.0
    %1373 = vmatprep.subr.mxu0 0.0
    %1374 = vmatpush1.msra.mxu0 0.0
    %1375 = vmatprep.subr.mxu0 0.0
    %1376 = vmatpush1.msra.mxu0 0.0
    %1377 = vmatprep.subr.mxu0 0.0
    %1378 = vmatpush1.msra.mxu0 0.0
    %1379 = vmatprep.subr.mxu0 0.0
    %1380 = vmatpush1.msra.mxu0 0.0
    %1381 = vmatprep.subr.mxu0 0.0
    %1382 = vmatpush1.msra.mxu0 0.0
    %1383 = vmatprep.subr.mxu0 0.0
    %1384 = vmatpush1.msra.mxu0 0.0
    %1385 = vmatprep.subr.mxu0 0.0
    %1386 = vmatpush1.msra.mxu0 0.0
    %1387 = vmatprep.subr.mxu0 0.0
    %1388 = vmatpush1.msra.mxu0 0.0
    %1389 = vmatprep.subr.mxu0 0.0
    %1390 = vmatpush1.msra.mxu0 0.0
    %1391 = vmatprep.subr.mxu0 0.0
    %1392 = vmatpush1.msra.mxu0 0.0
    %1393 = vmatprep.subr.mxu0 0.0
    %1394 = vmatpush1.msra.mxu0 0.0
    %1395 = vmatprep.subr.mxu0 0.0
    %1396 = vmatpush1.msra.mxu0 0.0
    %1397 = vmatprep.subr.mxu0 0.0
    %1398 = vmatpush1.msra.mxu0 0.0
    %1399 = vmatprep.subr.mxu0 0.0
    %1400 = vmatpush1.msra.mxu0 0.0
    %1401 = vmatprep.subr.mxu0 0.0
    %1402 = vmatpush1.msra.mxu0 0.0
    %1403 = vmatprep.subr.mxu0 0.0
    %1404 = vmatpush1.msra.mxu0 0.0
    %1405 = vmatprep.subr.mxu0 0.0
    %1406 = vmatpush1.msra.mxu0 0.0
    %1407 = vmatprep.subr.mxu0 0.0
    %1408 = vmatpush1.msra.mxu0 0.0
    %1409 = vmatprep.subr.mxu0 0.0
    %1410 = vmatpush1.msra.mxu0 0.0
    %1411 = vmatprep.mubr.f32.mxu0 0.0
    %1412 = vmatmul.mubr.f32.gmra.mrb[0].mxu0 %v1345
    %v1413 = vpop.f32.mrb[0].mxu0
    %v1414 = vadd.f32 0.0, %v1413
    %v1415 = vpop.f32.mrb[0].mxu0
    %1416 = vdwg.mxu0
    %v1418 = vrot.slane %v1414, 4
    %v1420 = vadd.f32 %v351, %v1418
    %v1421 = vxor.u32 %v1420, 2147483648
    %v1422 = vmul.f32 %v1421, 1.442695
    %v1423 = vpow.pop %v1422
    %v1424 = vadd.f32 %v1423, 1.0
    %v1425 = vrcp.pop %v1424
    %v1426 = vmul.f32 1.0, %v1425
    %v1427 = vtanh.pop %v1420
    %v1429 = vrot.slane %v1329, 2
    %v1431 = vmul.f32 %v1426, %v1429
    %1433 = vrot.lane.b32.xlu0 %v1427, 64
    %v1434 = vpop.permute.xlu0 %1433
    %v1436 = vmul.f32 %v1426, %v1434
    %1438 = vrot.lane.b32.xlu0 %v1436, 32
    %v1439 = vpop.permute.xlu0 %1438
    %v1441 = vadd.f32 %v1431, %v1439
    %v1442 = vtanh.pop %v1441
    %1444 = vrot.lane.b32.xlu0 %v1442, 64
    %v1445 = vpop.permute.xlu0 %1444
    %v1447 = vmul.f32 %v1426, %v1445
    %1449 = vrot.lane.b32.xlu0 %v1447, 64
    %v1450 = vpop.permute.xlu0 %1449
    %vm1452 = vcmask 521476
    %1453 = vst.msk [vmem:[#allocation2 + $0x8] sm:$0x30] %vm1452, %v1450
    %v1454 = vrot.slane %v1447, 4
    %1455 = vrot.lane.b32.xlu0 %v1454, 32
    %v1456 = vpop.permute.xlu0 %1455
    %v1457 = vsel %vm358, %v1456, 0
    %1459 = vmatprep.subr.mxu0 0.0
    %1460 = vmatpush1.msra.mxu0 %v1234
    %1461 = vmatprep.subr.mxu0 0.0
    %1462 = vmatpush1.msra.mxu0 %v1235
    %1463 = vmatprep.subr.mxu0 0.0
    %1464 = vmatpush1.msra.mxu0 %v1236
    %1465 = vmatprep.subr.mxu0 0.0
    %1466 = vmatpush1.msra.mxu0 %v1237
    %1467 = vmatprep.subr.mxu0 0.0
    %1468 = vmatpush1.msra.mxu0 0.0
    %1469 = vmatprep.subr.mxu0 0.0
    %1470 = vmatpush1.msra.mxu0 0.0
    %1471 = vmatprep.subr.mxu0 0.0
    %1472 = vmatpush1.msra.mxu0 0.0
    %1473 = vmatprep.subr.mxu0 0.0
    %1474 = vmatpush1.msra.mxu0 0.0
    %1475 = vmatprep.subr.mxu0 0.0
    %1476 = vmatpush1.msra.mxu0 0.0
    %1477 = vmatprep.subr.mxu0 0.0
    %1478 = vmatpush1.msra.mxu0 0.0
    %1479 = vmatprep.subr.mxu0 0.0
    %1480 = vmatpush1.msra.mxu0 0.0
    %1481 = vmatprep.subr.mxu0 0.0
    %1482 = vmatpush1.msra.mxu0 0.0
    %1483 = vmatprep.subr.mxu0 0.0
    %1484 = vmatpush1.msra.mxu0 0.0
    %1485 = vmatprep.subr.mxu0 0.0
    %1486 = vmatpush1.msra.mxu0 0.0
    %1487 = vmatprep.subr.mxu0 0.0
    %1488 = vmatpush1.msra.mxu0 0.0
    %1489 = vmatprep.subr.mxu0 0.0
    %1490 = vmatpush1.msra.mxu0 0.0
    %1491 = vmatprep.subr.mxu0 0.0
    %1492 = vmatpush1.msra.mxu0 0.0
    %1493 = vmatprep.subr.mxu0 0.0
    %1494 = vmatpush1.msra.mxu0 0.0
    %1495 = vmatprep.subr.mxu0 0.0
    %1496 = vmatpush1.msra.mxu0 0.0
    %1497 = vmatprep.subr.mxu0 0.0
    %1498 = vmatpush1.msra.mxu0 0.0
    %1499 = vmatprep.subr.mxu0 0.0
    %1500 = vmatpush1.msra.mxu0 0.0
    %1501 = vmatprep.subr.mxu0 0.0
    %1502 = vmatpush1.msra.mxu0 0.0
    %1503 = vmatprep.subr.mxu0 0.0
    %1504 = vmatpush1.msra.mxu0 0.0
    %1505 = vmatprep.subr.mxu0 0.0
    %1506 = vmatpush1.msra.mxu0 0.0
    %1507 = vmatprep.subr.mxu0 0.0
    %1508 = vmatpush1.msra.mxu0 0.0
    %1509 = vmatprep.subr.mxu0 0.0
    %1510 = vmatpush1.msra.mxu0 0.0
    %1511 = vmatprep.subr.mxu0 0.0
    %1512 = vmatpush1.msra.mxu0 0.0
    %1513 = vmatprep.subr.mxu0 0.0
    %1514 = vmatpush1.msra.mxu0 0.0
    %1515 = vmatprep.subr.mxu0 0.0
    %1516 = vmatpush1.msra.mxu0 0.0
    %1517 = vmatprep.subr.mxu0 0.0
    %1518 = vmatpush1.msra.mxu0 0.0
    %1519 = vmatprep.subr.mxu0 0.0
    %1520 = vmatpush1.msra.mxu0 0.0
    %1521 = vmatprep.subr.mxu0 0.0
    %1522 = vmatpush1.msra.mxu0 0.0
    %1523 = vmatprep.mubr.f32.mxu0 0.0
    %1524 = vmatmul.mubr.f32.gmra.mrb[0].mxu0 %v1457
    %v1525 = vpop.f32.mrb[0].mxu0
    %v1526 = vadd.f32 0.0, %v1525
    %v1527 = vpop.f32.mrb[0].mxu0
    %1528 = vdwg.mxu0
    %v1530 = vrot.slane %v1526, 6
    %v1532 = vadd.f32 %v351, %v1530
    %v1533 = vxor.u32 %v1532, 2147483648
    %v1534 = vmul.f32 %v1533, 1.442695
    %v1535 = vpow.pop %v1534
    %v1536 = vadd.f32 %v1535, 1.0
    %v1537 = vrcp.pop %v1536
    %v1538 = vmul.f32 1.0, %v1537
    %v1539 = vtanh.pop %v1532
    %v1541 = vrot.slane %v1441, 2
    %v1543 = vmul.f32 %v1538, %v1541
    %1545 = vrot.lane.b32.xlu0 %v1539, 64
    %v1546 = vpop.permute.xlu0 %1545
    %v1548 = vmul.f32 %v1538, %v1546
    %1550 = vrot.lane.b32.xlu0 %v1548, 32
    %v1551 = vpop.permute.xlu0 %1550
    %v1553 = vadd.f32 %v1543, %v1551
    %v1554 = vtanh.pop %v1553
    %1556 = vrot.lane.b32.xlu0 %v1554, 64
    %v1557 = vpop.permute.xlu0 %1556
    %v1559 = vmul.f32 %v1538, %v1557
    %1561 = vrot.lane.b32.xlu0 %v1559, 64
    %v1562 = vpop.permute.xlu0 %1561
    %vm1564 = vcmask 519426
    %1565 = vst.msk [vmem:[#allocation2 + $0x8] sm:$0xc] %vm1564, %v1562
    %v1566 = vrot.slane %v1559, 2
    %1567 = vrot.lane.b32.xlu0 %v1566, 32
    %v1568 = vpop.permute.xlu0 %1567
    %v1569 = vsel %vm358, %v1568, 0
    %1571 = vmatprep.subr.mxu0 0.0
    %1572 = vmatpush1.msra.mxu0 %v1234
    %1573 = vmatprep.subr.mxu0 0.0
    %1574 = vmatpush1.msra.mxu0 %v1235
    %1575 = vmatprep.subr.mxu0 0.0
    %1576 = vmatpush1.msra.mxu0 %v1236
    %1577 = vmatprep.subr.mxu0 0.0
    %1578 = vmatpush1.msra.mxu0 %v1237
    %1579 = vmatprep.subr.mxu0 0.0
    %1580 = vmatpush1.msra.mxu0 0.0
    %1581 = vmatprep.subr.mxu0 0.0
    %1582 = vmatpush1.msra.mxu0 0.0
    %1583 = vmatprep.subr.mxu0 0.0
    %1584 = vmatpush1.msra.mxu0 0.0
    %1585 = vmatprep.subr.mxu0 0.0
    %1586 = vmatpush1.msra.mxu0 0.0
    %1587 = vmatprep.subr.mxu0 0.0
    %1588 = vmatpush1.msra.mxu0 0.0
    %1589 = vmatprep.subr.mxu0 0.0
    %1590 = vmatpush1.msra.mxu0 0.0
    %1591 = vmatprep.subr.mxu0 0.0
    %1592 = vmatpush1.msra.mxu0 0.0
    %1593 = vmatprep.subr.mxu0 0.0
    %1594 = vmatpush1.msra.mxu0 0.0
    %1595 = vmatprep.subr.mxu0 0.0
    %1596 = vmatpush1.msra.mxu0 0.0
    %1597 = vmatprep.subr.mxu0 0.0
    %1598 = vmatpush1.msra.mxu0 0.0
    %1599 = vmatprep.subr.mxu0 0.0
    %1600 = vmatpush1.msra.mxu0 0.0
    %1601 = vmatprep.subr.mxu0 0.0
    %1602 = vmatpush1.msra.mxu0 0.0
    %1603 = vmatprep.subr.mxu0 0.0
    %1604 = vmatpush1.msra.mxu0 0.0
    %1605 = vmatprep.subr.mxu0 0.0
    %1606 = vmatpush1.msra.mxu0 0.0
    %1607 = vmatprep.subr.mxu0 0.0
    %1608 = vmatpush1.msra.mxu0 0.0
    %1609 = vmatprep.subr.mxu0 0.0
    %1610 = vmatpush1.msra.mxu0 0.0
    %1611 = vmatprep.subr.mxu0 0.0
    %1612 = vmatpush1.msra.mxu0 0.0
    %1613 = vmatprep.subr.mxu0 0.0
    %1614 = vmatpush1.msra.mxu0 0.0
    %1615 = vmatprep.subr.mxu0 0.0
    %1616 = vmatpush1.msra.mxu0 0.0
    %1617 = vmatprep.subr.mxu0 0.0
    %1618 = vmatpush1.msra.mxu0 0.0
    %1619 = vmatprep.subr.mxu0 0.0
    %1620 = vmatpush1.msra.mxu0 0.0
    %1621 = vmatprep.subr.mxu0 0.0
    %1622 = vmatpush1.msra.mxu0 0.0
    %1623 = vmatprep.subr.mxu0 0.0
    %1624 = vmatpush1.msra.mxu0 0.0
    %1625 = vmatprep.subr.mxu0 0.0
    %1626 = vmatpush1.msra.mxu0 0.0
    %1627 = vmatprep.subr.mxu0 0.0
    %1628 = vmatpush1.msra.mxu0 0.0
    %1629 = vmatprep.subr.mxu0 0.0
    %1630 = vmatpush1.msra.mxu0 0.0
    %1631 = vmatprep.subr.mxu0 0.0
    %1632 = vmatpush1.msra.mxu0 0.0
    %1633 = vmatprep.subr.mxu0 0.0
    %1634 = vmatpush1.msra.mxu0 0.0
    %1635 = vmatprep.mubr.f32.mxu0 0.0
    %1636 = vmatmul.mubr.f32.gmra.mrb[0].mxu0 %v1569
    %v1637 = vpop.f32.mrb[0].mxu0
    %v1638 = vadd.f32 0.0, %v1637
    %v1639 = vpop.f32.mrb[0].mxu0
    %1640 = vdwg.mxu0
    %v1641 = vadd.f32 %v351, %v1638
    %v1642 = vxor.u32 %v1641, 2147483648
    %v1643 = vmul.f32 %v1642, 1.442695
    %v1644 = vpow.pop %v1643
    %v1645 = vadd.f32 %v1644, 1.0
    %v1646 = vrcp.pop %v1645
    %v1647 = vmul.f32 1.0, %v1646
    %v1648 = vtanh.pop %v1641
    %v1650 = vrot.slane %v1553, 2
    %v1652 = vmul.f32 %v1647, %v1650
    %1654 = vrot.lane.b32.xlu0 %v1648, 64
    %v1655 = vpop.permute.xlu0 %1654
    %v1657 = vmul.f32 %v1647, %v1655
    %1659 = vrot.lane.b32.xlu0 %v1657, 32
    %v1660 = vpop.permute.xlu0 %1659
    %v1662 = vadd.f32 %v1652, %v1660
    %v1663 = vtanh.pop %v1662
    %1665 = vrot.lane.b32.xlu0 %v1663, 64
    %v1666 = vpop.permute.xlu0 %1665
    %v1668 = vmul.f32 %v1647, %v1666
    %1670 = vrot.lane.b32.xlu0 %v1668, 64
    %v1671 = vpop.permute.xlu0 %1670
    %vm1673 = vcmask 517376
    %1674 = vst.msk [vmem:[#allocation2 + $0x8] sm:$0x3] %vm1673, %v1671
    %1675 = vrot.lane.b32.xlu0 %v1668, 32
    %v1676 = vpop.permute.xlu0 %1675
    %v1677 = vsel %vm358, %v1676, 0
    %1679 = vmatprep.subr.mxu0 0.0
    %1680 = vmatpush1.msra.mxu0 %v1234
    %1681 = vmatprep.subr.mxu0 0.0
    %1682 = vmatpush1.msra.mxu0 %v1235
    %1683 = vmatprep.subr.mxu0 0.0
    %1684 = vmatpush1.msra.mxu0 %v1236
    %1685 = vmatprep.subr.mxu0 0.0
    %1686 = vmatpush1.msra.mxu0 %v1237
    %1687 = vmatprep.subr.mxu0 0.0
    %1688 = vmatpush1.msra.mxu0 0.0
    %1689 = vmatprep.subr.mxu0 0.0
    %1690 = vmatpush1.msra.mxu0 0.0
    %1691 = vmatprep.subr.mxu0 0.0
    %1692 = vmatpush1.msra.mxu0 0.0
    %1693 = vmatprep.subr.mxu0 0.0
    %1694 = vmatpush1.msra.mxu0 0.0
    %1695 = vmatprep.subr.mxu0 0.0
    %1696 = vmatpush1.msra.mxu0 0.0
    %1697 = vmatprep.subr.mxu0 0.0
    %1698 = vmatpush1.msra.mxu0 0.0
    %1699 = vmatprep.subr.mxu0 0.0
    %1700 = vmatpush1.msra.mxu0 0.0
    %1701 = vmatprep.subr.mxu0 0.0
    %1702 = vmatpush1.msra.mxu0 0.0
    %1703 = vmatprep.subr.mxu0 0.0
    %1704 = vmatpush1.msra.mxu0 0.0
    %1705 = vmatprep.subr.mxu0 0.0
    %1706 = vmatpush1.msra.mxu0 0.0
    %1707 = vmatprep.subr.mxu0 0.0
    %1708 = vmatpush1.msra.mxu0 0.0
    %1709 = vmatprep.subr.mxu0 0.0
    %1710 = vmatpush1.msra.mxu0 0.0
    %1711 = vmatprep.subr.mxu0 0.0
    %1712 = vmatpush1.msra.mxu0 0.0
    %1713 = vmatprep.subr.mxu0 0.0
    %1714 = vmatpush1.msra.mxu0 0.0
    %1715 = vmatprep.subr.mxu0 0.0
    %1716 = vmatpush1.msra.mxu0 0.0
    %1717 = vmatprep.subr.mxu0 0.0
    %1718 = vmatpush1.msra.mxu0 0.0
    %1719 = vmatprep.subr.mxu0 0.0
    %1720 = vmatpush1.msra.mxu0 0.0
    %1721 = vmatprep.subr.mxu0 0.0
    %1722 = vmatpush1.msra.mxu0 0.0
    %1723 = vmatprep.subr.mxu0 0.0
    %1724 = vmatpush1.msra.mxu0 0.0
    %1725 = vmatprep.subr.mxu0 0.0
    %1726 = vmatpush1.msra.mxu0 0.0
    %1727 = vmatprep.subr.mxu0 0.0
    %1728 = vmatpush1.msra.mxu0 0.0
    %1729 = vmatprep.subr.mxu0 0.0
    %1730 = vmatpush1.msra.mxu0 0.0
    %1731 = vmatprep.subr.mxu0 0.0
    %1732 = vmatpush1.msra.mxu0 0.0
    %1733 = vmatprep.subr.mxu0 0.0
    %1734 = vmatpush1.msra.mxu0 0.0
    %1735 = vmatprep.subr.mxu0 0.0
    %1736 = vmatpush1.msra.mxu0 0.0
    %1737 = vmatprep.subr.mxu0 0.0
    %1738 = vmatpush1.msra.mxu0 0.0
    %1739 = vmatprep.subr.mxu0 0.0
    %1740 = vmatpush1.msra.mxu0 0.0
    %1741 = vmatprep.subr.mxu0 0.0
    %1742 = vmatpush1.msra.mxu0 0.0
    %1743 = vmatprep.mubr.f32.mxu0 0.0
    %1744 = vmatmul.mubr.f32.gmra.mrb[0].mxu0 %v1677
    %v1745 = vpop.f32.mrb[0].mxu0
    %v1746 = vadd.f32 0.0, %v1745
    %v1747 = vpop.f32.mrb[0].mxu0
    %1748 = vdwg.mxu0
    %v1750 = vrot.slane %v1746, 2
    %v1752 = vadd.f32 %v346, %v1750
    %v1753 = vxor.u32 %v1752, 2147483648
    %v1754 = vmul.f32 %v1753, 1.442695
    %v1755 = vpow.pop %v1754
    %v1756 = vadd.f32 %v1755, 1.0
    %v1757 = vrcp.pop %v1756
    %v1758 = vmul.f32 1.0, %v1757
    %v1759 = vtanh.pop %v1752
    %v1761 = vrot.slane %v1662, 2
    %v1763 = vmul.f32 %v1758, %v1761
    %1765 = vrot.lane.b32.xlu0 %v1759, 64
    %v1766 = vpop.permute.xlu0 %1765
    %v1768 = vmul.f32 %v1758, %v1766
    %1770 = vrot.lane.b32.xlu0 %v1768, 32
    %v1771 = vpop.permute.xlu0 %1770
    %v1773 = vadd.f32 %v1763, %v1771
    %v1774 = vtanh.pop %v1773
    %1776 = vrot.lane.b32.xlu0 %v1774, 64
    %v1777 = vpop.permute.xlu0 %1776
    %v1779 = vmul.f32 %v1758, %v1777
    %1781 = vrot.lane.b32.xlu0 %v1779, 64
    %v1782 = vpop.permute.xlu0 %1781
    %1784 = vst.msk [vmem:[#allocation2] sm:$0xc0] %vm1340, %v1782
    %v1785 = vrot.slane %v1779, 6
    %1786 = vrot.lane.b32.xlu0 %v1785, 32
    %v1787 = vpop.permute.xlu0 %1786
    %v1788 = vsel %vm358, %v1787, 0
    %1790 = vmatprep.subr.mxu0 0.0
    %1791 = vmatpush1.msra.mxu0 %v1234
    %1792 = vmatprep.subr.mxu0 0.0
    %1793 = vmatpush1.msra.mxu0 %v1235
    %1794 = vmatprep.subr.mxu0 0.0
    %1795 = vmatpush1.msra.mxu0 %v1236
    %1796 = vmatprep.subr.mxu0 0.0
    %1797 = vmatpush1.msra.mxu0 %v1237
    %1798 = vmatprep.subr.mxu0 0.0
    %1799 = vmatpush1.msra.mxu0 0.0
    %1800 = vmatprep.subr.mxu0 0.0
    %1801 = vmatpush1.msra.mxu0 0.0
    %1802 = vmatprep.subr.mxu0 0.0
    %1803 = vmatpush1.msra.mxu0 0.0
    %1804 = vmatprep.subr.mxu0 0.0
    %1805 = vmatpush1.msra.mxu0 0.0
    %1806 = vmatprep.subr.mxu0 0.0
    %1807 = vmatpush1.msra.mxu0 0.0
    %1808 = vmatprep.subr.mxu0 0.0
    %1809 = vmatpush1.msra.mxu0 0.0
    %1810 = vmatprep.subr.mxu0 0.0
    %1811 = vmatpush1.msra.mxu0 0.0
    %1812 = vmatprep.subr.mxu0 0.0
    %1813 = vmatpush1.msra.mxu0 0.0
    %1814 = vmatprep.subr.mxu0 0.0
    %1815 = vmatpush1.msra.mxu0 0.0
    %1816 = vmatprep.subr.mxu0 0.0
    %1817 = vmatpush1.msra.mxu0 0.0
    %1818 = vmatprep.subr.mxu0 0.0
    %1819 = vmatpush1.msra.mxu0 0.0
    %1820 = vmatprep.subr.mxu0 0.0
    %1821 = vmatpush1.msra.mxu0 0.0
    %1822 = vmatprep.subr.mxu0 0.0
    %1823 = vmatpush1.msra.mxu0 0.0
    %1824 = vmatprep.subr.mxu0 0.0
    %1825 = vmatpush1.msra.mxu0 0.0
    %1826 = vmatprep.subr.mxu0 0.0
    %1827 = vmatpush1.msra.mxu0 0.0
    %1828 = vmatprep.subr.mxu0 0.0
    %1829 = vmatpush1.msra.mxu0 0.0
    %1830 = vmatprep.subr.mxu0 0.0
    %1831 = vmatpush1.msra.mxu0 0.0
    %1832 = vmatprep.subr.mxu0 0.0
    %1833 = vmatpush1.msra.mxu0 0.0
    %1834 = vmatprep.subr.mxu0 0.0
    %1835 = vmatpush1.msra.mxu0 0.0
    %1836 = vmatprep.subr.mxu0 0.0
    %1837 = vmatpush1.msra.mxu0 0.0
    %1838 = vmatprep.subr.mxu0 0.0
    %1839 = vmatpush1.msra.mxu0 0.0
    %1840 = vmatprep.subr.mxu0 0.0
    %1841 = vmatpush1.msra.mxu0 0.0
    %1842 = vmatprep.subr.mxu0 0.0
    %1843 = vmatpush1.msra.mxu0 0.0
    %1844 = vmatprep.subr.mxu0 0.0
    %1845 = vmatpush1.msra.mxu0 0.0
    %1846 = vmatprep.subr.mxu0 0.0
    %1847 = vmatpush1.msra.mxu0 0.0
    %1848 = vmatprep.subr.mxu0 0.0
    %1849 = vmatpush1.msra.mxu0 0.0
    %1850 = vmatprep.subr.mxu0 0.0
    %1851 = vmatpush1.msra.mxu0 0.0
    %1852 = vmatprep.subr.mxu0 0.0
    %1853 = vmatpush1.msra.mxu0 0.0
    %1854 = vmatprep.mubr.f32.mxu0 0.0
    %1855 = vmatmul.mubr.f32.gmra.mrb[0].mxu0 %v1788
    %v1856 = vpop.f32.mrb[0].mxu0
    %v1857 = vadd.f32 0.0, %v1856
    %v1858 = vpop.f32.mrb[0].mxu0
    %1859 = vdwg.mxu0
    %v1861 = vrot.slane %v1857, 4
    %v1863 = vadd.f32 %v346, %v1861
    %v1864 = vxor.u32 %v1863, 2147483648
    %v1865 = vmul.f32 %v1864, 1.442695
    %v1866 = vpow.pop %v1865
    %v1867 = vadd.f32 %v1866, 1.0
    %v1868 = vrcp.pop %v1867
    %v1869 = vmul.f32 1.0, %v1868
    %v1870 = vtanh.pop %v1863
    %v1872 = vrot.slane %v1773, 2
    %v1874 = vmul.f32 %v1869, %v1872
    %1876 = vrot.lane.b32.xlu0 %v1870, 64
    %v1877 = vpop.permute.xlu0 %1876
    %v1879 = vmul.f32 %v1869, %v1877
    %1881 = vrot.lane.b32.xlu0 %v1879, 32
    %v1882 = vpop.permute.xlu0 %1881
    %v1884 = vadd.f32 %v1874, %v1882
    %v1885 = vtanh.pop %v1884
    %1887 = vrot.lane.b32.xlu0 %v1885, 64
    %v1888 = vpop.permute.xlu0 %1887
    %v1890 = vmul.f32 %v1869, %v1888
    %1892 = vrot.lane.b32.xlu0 %v1890, 64
    %v1893 = vpop.permute.xlu0 %1892
    %1895 = vst.msk [vmem:[#allocation2] sm:$0x30] %vm1452, %v1893
    %v1896 = vrot.slane %v1890, 4
    %1897 = vrot.lane.b32.xlu0 %v1896, 32
    %v1898 = vpop.permute.xlu0 %1897
    %v1899 = vsel %vm358, %v1898, 0
    %1901 = vmatprep.subr.mxu0 0.0
    %1902 = vmatpush1.msra.mxu0 %v1234
    %1903 = vmatprep.subr.mxu0 0.0
    %1904 = vmatpush1.msra.mxu0 %v1235
    %1905 = vmatprep.subr.mxu0 0.0
    %1906 = vmatpush1.msra.mxu0 %v1236
    %1907 = vmatprep.subr.mxu0 0.0
    %1908 = vmatpush1.msra.mxu0 %v1237
    %1909 = vmatprep.subr.mxu0 0.0
    %1910 = vmatpush1.msra.mxu0 0.0
    %1911 = vmatprep.subr.mxu0 0.0
    %1912 = vmatpush1.msra.mxu0 0.0
    %1913 = vmatprep.subr.mxu0 0.0
    %1914 = vmatpush1.msra.mxu0 0.0
    %1915 = vmatprep.subr.mxu0 0.0
    %1916 = vmatpush1.msra.mxu0 0.0
    %1917 = vmatprep.subr.mxu0 0.0
    %1918 = vmatpush1.msra.mxu0 0.0
    %1919 = vmatprep.subr.mxu0 0.0
    %1920 = vmatpush1.msra.mxu0 0.0
    %1921 = vmatprep.subr.mxu0 0.0
    %1922 = vmatpush1.msra.mxu0 0.0
    %1923 = vmatprep.subr.mxu0 0.0
    %1924 = vmatpush1.msra.mxu0 0.0
    %1925 = vmatprep.subr.mxu0 0.0
    %1926 = vmatpush1.msra.mxu0 0.0
    %1927 = vmatprep.subr.mxu0 0.0
    %1928 = vmatpush1.msra.mxu0 0.0
    %1929 = vmatprep.subr.mxu0 0.0
    %1930 = vmatpush1.msra.mxu0 0.0
    %1931 = vmatprep.subr.mxu0 0.0
    %1932 = vmatpush1.msra.mxu0 0.0
    %1933 = vmatprep.subr.mxu0 0.0
    %1934 = vmatpush1.msra.mxu0 0.0
    %1935 = vmatprep.subr.mxu0 0.0
    %1936 = vmatpush1.msra.mxu0 0.0
    %1937 = vmatprep.subr.mxu0 0.0
    %1938 = vmatpush1.msra.mxu0 0.0
    %1939 = vmatprep.subr.mxu0 0.0
    %1940 = vmatpush1.msra.mxu0 0.0
    %1941 = vmatprep.subr.mxu0 0.0
    %1942 = vmatpush1.msra.mxu0 0.0
    %1943 = vmatprep.subr.mxu0 0.0
    %1944 = vmatpush1.msra.mxu0 0.0
    %1945 = vmatprep.subr.mxu0 0.0
    %1946 = vmatpush1.msra.mxu0 0.0
    %1947 = vmatprep.subr.mxu0 0.0
    %1948 = vmatpush1.msra.mxu0 0.0
    %1949 = vmatprep.subr.mxu0 0.0
    %1950 = vmatpush1.msra.mxu0 0.0
    %1951 = vmatprep.subr.mxu0 0.0
    %1952 = vmatpush1.msra.mxu0 0.0
    %1953 = vmatprep.subr.mxu0 0.0
    %1954 = vmatpush1.msra.mxu0 0.0
    %1955 = vmatprep.subr.mxu0 0.0
    %1956 = vmatpush1.msra.mxu0 0.0
    %1957 = vmatprep.subr.mxu0 0.0
    %1958 = vmatpush1.msra.mxu0 0.0
    %1959 = vmatprep.subr.mxu0 0.0
    %1960 = vmatpush1.msra.mxu0 0.0
    %1961 = vmatprep.subr.mxu0 0.0
    %1962 = vmatpush1.msra.mxu0 0.0
    %1963 = vmatprep.subr.mxu0 0.0
    %1964 = vmatpush1.msra.mxu0 0.0
    %1965 = vmatprep.mubr.f32.mxu0 0.0
    %1966 = vmatmul.mubr.f32.gmra.mrb[0].mxu0 %v1899
    %v1967 = vpop.f32.mrb[0].mxu0
    %v1968 = vadd.f32 0.0, %v1967
    %v1969 = vpop.f32.mrb[0].mxu0
    %1970 = vdwg.mxu0
    %v1972 = vrot.slane %v1968, 6
    %v1974 = vadd.f32 %v346, %v1972
    %v1975 = vxor.u32 %v1974, 2147483648
    %v1976 = vmul.f32 %v1975, 1.442695
    %v1977 = vpow.pop %v1976
    %v1978 = vadd.f32 %v1977, 1.0
    %v1979 = vrcp.pop %v1978
    %v1980 = vmul.f32 1.0, %v1979
    %v1981 = vtanh.pop %v1974
    %v1983 = vrot.slane %v1884, 2
    %v1985 = vmul.f32 %v1980, %v1983
    %1987 = vrot.lane.b32.xlu0 %v1981, 64
    %v1988 = vpop.permute.xlu0 %1987
    %v1990 = vmul.f32 %v1980, %v1988
    %1992 = vrot.lane.b32.xlu0 %v1990, 32
    %v1993 = vpop.permute.xlu0 %1992
    %v1995 = vadd.f32 %v1985, %v1993
    %v1996 = vtanh.pop %v1995
    %1998 = vrot.lane.b32.xlu0 %v1996, 64
    %v1999 = vpop.permute.xlu0 %1998
    %v2001 = vmul.f32 %v1980, %v1999
    %2003 = vrot.lane.b32.xlu0 %v2001, 64
    %v2004 = vpop.permute.xlu0 %2003
    %2006 = vst.msk [vmem:[#allocation2] sm:$0xc] %vm1564, %v2004
    %v2007 = vrot.slane %v2001, 2
    %2008 = vrot.lane.b32.xlu0 %v2007, 32
    %v2009 = vpop.permute.xlu0 %2008
    %v2010 = vsel %vm358, %v2009, 0
    %2012 = vmatprep.subr.mxu0 0.0
    %2013 = vmatpush1.msra.mxu0 %v1234
    %2014 = vmatprep.subr.mxu0 0.0
    %2015 = vmatpush1.msra.mxu0 %v1235
    %2016 = vmatprep.subr.mxu0 0.0
    %2017 = vmatpush1.msra.mxu0 %v1236
    %2018 = vmatprep.subr.mxu0 0.0
    %2019 = vmatpush1.msra.mxu0 %v1237
    %2020 = vmatprep.subr.mxu0 0.0
    %2021 = vmatpush1.msra.mxu0 0.0
    %2022 = vmatprep.subr.mxu0 0.0
    %2023 = vmatpush1.msra.mxu0 0.0
    %2024 = vmatprep.subr.mxu0 0.0
    %2025 = vmatpush1.msra.mxu0 0.0
    %2026 = vmatprep.subr.mxu0 0.0
    %2027 = vmatpush1.msra.mxu0 0.0
    %2028 = vmatprep.subr.mxu0 0.0
    %2029 = vmatpush1.msra.mxu0 0.0
    %2030 = vmatprep.subr.mxu0 0.0
    %2031 = vmatpush1.msra.mxu0 0.0
    %2032 = vmatprep.subr.mxu0 0.0
    %2033 = vmatpush1.msra.mxu0 0.0
    %2034 = vmatprep.subr.mxu0 0.0
    %2035 = vmatpush1.msra.mxu0 0.0
    %2036 = vmatprep.subr.mxu0 0.0
    %2037 = vmatpush1.msra.mxu0 0.0
    %2038 = vmatprep.subr.mxu0 0.0
    %2039 = vmatpush1.msra.mxu0 0.0
    %2040 = vmatprep.subr.mxu0 0.0
    %2041 = vmatpush1.msra.mxu0 0.0
    %2042 = vmatprep.subr.mxu0 0.0
    %2043 = vmatpush1.msra.mxu0 0.0
    %2044 = vmatprep.subr.mxu0 0.0
    %2045 = vmatpush1.msra.mxu0 0.0
    %2046 = vmatprep.subr.mxu0 0.0
    %2047 = vmatpush1.msra.mxu0 0.0
    %2048 = vmatprep.subr.mxu0 0.0
    %2049 = vmatpush1.msra.mxu0 0.0
    %2050 = vmatprep.subr.mxu0 0.0
    %2051 = vmatpush1.msra.mxu0 0.0
    %2052 = vmatprep.subr.mxu0 0.0
    %2053 = vmatpush1.msra.mxu0 0.0
    %2054 = vmatprep.subr.mxu0 0.0
    %2055 = vmatpush1.msra.mxu0 0.0
    %2056 = vmatprep.subr.mxu0 0.0
    %2057 = vmatpush1.msra.mxu0 0.0
    %2058 = vmatprep.subr.mxu0 0.0
    %2059 = vmatpush1.msra.mxu0 0.0
    %2060 = vmatprep.subr.mxu0 0.0
    %2061 = vmatpush1.msra.mxu0 0.0
    %2062 = vmatprep.subr.mxu0 0.0
    %2063 = vmatpush1.msra.mxu0 0.0
    %2064 = vmatprep.subr.mxu0 0.0
    %2065 = vmatpush1.msra.mxu0 0.0
    %2066 = vmatprep.subr.mxu0 0.0
    %2067 = vmatpush1.msra.mxu0 0.0
    %2068 = vmatprep.subr.mxu0 0.0
    %2069 = vmatpush1.msra.mxu0 0.0
    %2070 = vmatprep.subr.mxu0 0.0
    %2071 = vmatpush1.msra.mxu0 0.0
    %2072 = vmatprep.subr.mxu0 0.0
    %2073 = vmatpush1.msra.mxu0 0.0
    %2074 = vmatprep.subr.mxu0 0.0
    %2075 = vmatpush1.msra.mxu0 0.0
    %2076 = vmatprep.mubr.f32.mxu0 0.0
    %2077 = vmatmul.mubr.f32.gmra.mrb[0].mxu0 %v2010
    %v2078 = vpop.f32.mrb[0].mxu0
    %v2079 = vadd.f32 0.0, %v2078
    %v2080 = vpop.f32.mrb[0].mxu0
    %2081 = vdwg.mxu0
    %v2082 = vadd.f32 %v346, %v2079
    %v2083 = vxor.u32 %v2082, 2147483648
    %v2084 = vmul.f32 %v2083, 1.442695
    %v2085 = vpow.pop %v2084
    %v2086 = vadd.f32 %v2085, 1.0
    %v2087 = vrcp.pop %v2086
    %v2088 = vmul.f32 1.0, %v2087
    %v2089 = vtanh.pop %v2082
    %v2091 = vrot.slane %v1995, 2
    %v2093 = vmul.f32 %v2088, %v2091
    %2095 = vrot.lane.b32.xlu0 %v2089, 64
    %v2096 = vpop.permute.xlu0 %2095
    %v2098 = vmul.f32 %v2088, %v2096
    %2100 = vrot.lane.b32.xlu0 %v2098, 32
    %v2101 = vpop.permute.xlu0 %2100
    %v2103 = vadd.f32 %v2093, %v2101
    %v2104 = vtanh.pop %v2103
    %2106 = vrot.lane.b32.xlu0 %v2104, 64
    %v2107 = vpop.permute.xlu0 %2106
    %v2109 = vmul.f32 %v2088, %v2107
    %2111 = vrot.lane.b32.xlu0 %v2109, 64
    %v2112 = vpop.permute.xlu0 %2111
    %2114 = vst.msk [vmem:[#allocation2] sm:$0x3] %vm1673, %v2112
    %v2115 = vld [vmem:[#allocation2] sm:$0xff]
    %v2116 = vld [vmem:[#allocation2 + $0x8] sm:$0xff]
    %v2117 = vld [vmem:[%s7] sm:$0xff]
    %v2118 = vld [vmem:[%s7 + $0x8] sm:$0xff]
    %v2119 = vld [vmem:[%s7 + $0x10] sm:$0xff]
    %v2120 = vld [vmem:[%s7 + $0x18] sm:$0xff]
    %v2121 = vld [vmem:[%s7 + $0x20] sm:$0xff]
    %v2122 = vld [vmem:[%s7 + $0x28] sm:$0xff]
    %v2123 = vld [vmem:[%s7 + $0x30] sm:$0xff]
    %v2124 = vld [vmem:[%s7 + $0x38] sm:$0xff]
    %v2125 = vld [vmem:[#allocation15] sm:$0x1]
    %v2127 = vlaneseq
    %v2128 = vshrl.u32 %v2127, 7
    %v2129 = vsub.s32 0, %v2128
    %v2130 = vrot.slane %v2125, %v2129
    %vm2132 = vcmask 523264
    %v2134 = vsel %vm2132, %v2115, 0
    %v2137 = vsel %vm2132, %v2116, 0
    %2139 = vmatprep.subr.mxu0 0.0
    %2140 = vmatpush1.msra.mxu0 %v2117
    %2141 = vmatprep.subr.mxu0 0.0
    %2142 = vmatpush1.msra.mxu0 %v2118
    %2143 = vmatprep.subr.mxu0 0.0
    %2144 = vmatpush1.msra.mxu0 %v2119
    %2145 = vmatprep.subr.mxu0 0.0
    %2146 = vmatpush1.msra.mxu0 %v2120
    %2147 = vmatprep.subr.mxu0 0.0
    %2148 = vmatpush1.msra.mxu0 %v2121
    %2149 = vmatprep.subr.mxu0 0.0
    %2150 = vmatpush1.msra.mxu0 %v2122
    %2151 = vmatprep.subr.mxu0 0.0
    %2152 = vmatpush1.msra.mxu0 %v2123
    %2153 = vmatprep.subr.mxu0 0.0
    %2154 = vmatpush1.msra.mxu0 %v2124
    %2155 = vmatprep.subr.mxu0 0.0
    %2156 = vmatpush1.msra.mxu0 0.0
    %2157 = vmatprep.subr.mxu0 0.0
    %2158 = vmatpush1.msra.mxu0 0.0
    %2159 = vmatprep.subr.mxu0 0.0
    %2160 = vmatpush1.msra.mxu0 0.0
    %2161 = vmatprep.subr.mxu0 0.0
    %2162 = vmatpush1.msra.mxu0 0.0
    %2163 = vmatprep.subr.mxu0 0.0
    %2164 = vmatpush1.msra.mxu0 0.0
    %2165 = vmatprep.subr.mxu0 0.0
    %2166 = vmatpush1.msra.mxu0 0.0
    %2167 = vmatprep.subr.mxu0 0.0
    %2168 = vmatpush1.msra.mxu0 0.0
    %2169 = vmatprep.subr.mxu0 0.0
    %2170 = vmatpush1.msra.mxu0 0.0
    %2171 = vmatprep.subr.mxu0 0.0
    %2172 = vmatpush1.msra.mxu0 0.0
    %2173 = vmatprep.subr.mxu0 0.0
    %2174 = vmatpush1.msra.mxu0 0.0
    %2175 = vmatprep.subr.mxu0 0.0
    %2176 = vmatpush1.msra.mxu0 0.0
    %2177 = vmatprep.subr.mxu0 0.0
    %2178 = vmatpush1.msra.mxu0 0.0
    %2179 = vmatprep.subr.mxu0 0.0
    %2180 = vmatpush1.msra.mxu0 0.0
    %2181 = vmatprep.subr.mxu0 0.0
    %2182 = vmatpush1.msra.mxu0 0.0
    %2183 = vmatprep.subr.mxu0 0.0
    %2184 = vmatpush1.msra.mxu0 0.0
    %2185 = vmatprep.subr.mxu0 0.0
    %2186 = vmatpush1.msra.mxu0 0.0
    %2187 = vmatprep.subr.mxu0 0.0
    %2188 = vmatpush1.msra.mxu0 0.0
    %2189 = vmatprep.subr.mxu0 0.0
    %2190 = vmatpush1.msra.mxu0 0.0
    %2191 = vmatprep.subr.mxu0 0.0
    %2192 = vmatpush1.msra.mxu0 0.0
    %2193 = vmatprep.subr.mxu0 0.0
    %2194 = vmatpush1.msra.mxu0 0.0
    %2195 = vmatprep.subr.mxu0 0.0
    %2196 = vmatpush1.msra.mxu0 0.0
    %2197 = vmatprep.subr.mxu0 0.0
    %2198 = vmatpush1.msra.mxu0 0.0
    %2199 = vmatprep.subr.mxu0 0.0
    %2200 = vmatpush1.msra.mxu0 0.0
    %2201 = vmatprep.subr.mxu0 0.0
    %2202 = vmatpush1.msra.mxu0 0.0
    %2203 = vmatprep.mubr.f32.mxu0 0.0
    %2204 = vmatmul.mubr.f32.gmra.mrb[0].mxu0 %v2134
    %v2205 = vpop.f32.mrb[0].mxu0
    %v2206 = vadd.f32 %v2130, %v2205
    %v2207 = vpop.f32.mrb[0].mxu0
    %2208 = vmatprep.mubr.f32.mxu0 0.0
    %2209 = vmatmul.mubr.f32.gmra.mrb[0].mxu0 %v2137
    %v2210 = vpop.f32.mrb[0].mxu0
    %v2211 = vadd.f32 %v2130, %v2210
    %v2212 = vpop.f32.mrb[0].mxu0
    %2213 = vdwg.mxu0
    %v2214 = vld [vmem:[%s10] sm:$0xff]
    %v2215 = vld [vmem:[%s10 + $0x8] sm:$0xff]
    %v2216 = vld [vmem:[%s10 + $0x10] sm:$0xff]
    %v2217 = vld [vmem:[%s10 + $0x18] sm:$0xff]
    %v2218 = vld [vmem:[%s10 + $0x20] sm:$0xff]
    %v2219 = vld [vmem:[%s10 + $0x28] sm:$0xff]
    %v2220 = vld [vmem:[%s10 + $0x30] sm:$0xff]
    %v2221 = vld [vmem:[%s10 + $0x38] sm:$0xff]
    %v2222 = vld [vmem:[%s12] sm:$0x1]
    %v2224 = vlaneseq
    %v2225 = vshrl.u32 %v2224, 7
    %v2226 = vsub.s32 0, %v2225
    %v2227 = vrot.slane %v2222, %v2226
    %2229 = vmatprep.subr.mxu0 0.0
    %2230 = vmatpush1.msra.mxu0 %v2214
    %2231 = vmatprep.subr.mxu0 0.0
    %2232 = vmatpush1.msra.mxu0 %v2215
    %2233 = vmatprep.subr.mxu0 0.0
    %2234 = vmatpush1.msra.mxu0 %v2216
    %2235 = vmatprep.subr.mxu0 0.0
    %2236 = vmatpush1.msra.mxu0 %v2217
    %2237 = vmatprep.subr.mxu0 0.0
    %2238 = vmatpush1.msra.mxu0 %v2218
    %2239 = vmatprep.subr.mxu0 0.0
    %2240 = vmatpush1.msra.mxu0 %v2219
    %2241 = vmatprep.subr.mxu0 0.0
    %2242 = vmatpush1.msra.mxu0 %v2220
    %2243 = vmatprep.subr.mxu0 0.0
    %2244 = vmatpush1.msra.mxu0 %v2221
    %2245 = vmatprep.subr.mxu0 0.0
    %2246 = vmatpush1.msra.mxu0 0.0
    %2247 = vmatprep.subr.mxu0 0.0
    %2248 = vmatpush1.msra.mxu0 0.0
    %2249 = vmatprep.subr.mxu0 0.0
    %2250 = vmatpush1.msra.mxu0 0.0
    %2251 = vmatprep.subr.mxu0 0.0
    %2252 = vmatpush1.msra.mxu0 0.0
    %2253 = vmatprep.subr.mxu0 0.0
    %2254 = vmatpush1.msra.mxu0 0.0
    %2255 = vmatprep.subr.mxu0 0.0
    %2256 = vmatpush1.msra.mxu0 0.0
    %2257 = vmatprep.subr.mxu0 0.0
    %2258 = vmatpush1.msra.mxu0 0.0
    %2259 = vmatprep.subr.mxu0 0.0
    %2260 = vmatpush1.msra.mxu0 0.0
    %2261 = vmatprep.subr.mxu0 0.0
    %2262 = vmatpush1.msra.mxu0 0.0
    %2263 = vmatprep.subr.mxu0 0.0
    %2264 = vmatpush1.msra.mxu0 0.0
    %2265 = vmatprep.subr.mxu0 0.0
    %2266 = vmatpush1.msra.mxu0 0.0
    %2267 = vmatprep.subr.mxu0 0.0
    %2268 = vmatpush1.msra.mxu0 0.0
    %2269 = vmatprep.subr.mxu0 0.0
    %2270 = vmatpush1.msra.mxu0 0.0
    %2271 = vmatprep.subr.mxu0 0.0
    %2272 = vmatpush1.msra.mxu0 0.0
    %2273 = vmatprep.subr.mxu0 0.0
    %2274 = vmatpush1.msra.mxu0 0.0
    %2275 = vmatprep.subr.mxu0 0.0
    %2276 = vmatpush1.msra.mxu0 0.0
    %2277 = vmatprep.subr.mxu0 0.0
    %2278 = vmatpush1.msra.mxu0 0.0
    %2279 = vmatprep.subr.mxu0 0.0
    %2280 = vmatpush1.msra.mxu0 0.0
    %2281 = vmatprep.subr.mxu0 0.0
    %2282 = vmatpush1.msra.mxu0 0.0
    %2283 = vmatprep.subr.mxu0 0.0
    %2284 = vmatpush1.msra.mxu0 0.0
    %2285 = vmatprep.subr.mxu0 0.0
    %2286 = vmatpush1.msra.mxu0 0.0
    %2287 = vmatprep.subr.mxu0 0.0
    %2288 = vmatpush1.msra.mxu0 0.0
    %2289 = vmatprep.subr.mxu0 0.0
    %2290 = vmatpush1.msra.mxu0 0.0
    %2291 = vmatprep.subr.mxu0 0.0
    %2292 = vmatpush1.msra.mxu0 0.0
    %2293 = vmatprep.mubr.f32.mxu0 0.0
    %2294 = vmatmul.mubr.f32.gmra.mrb[0].mxu0 %v2134
    %v2295 = vpop.f32.mrb[0].mxu0
    %v2296 = vadd.f32 %v2227, %v2295
    %v2297 = vpop.f32.mrb[0].mxu0
    %2298 = vmatprep.mubr.f32.mxu0 0.0
    %2299 = vmatmul.mubr.f32.gmra.mrb[0].mxu0 %v2137
    %v2300 = vpop.f32.mrb[0].mxu0
    %v2301 = vadd.f32 %v2227, %v2300
    %v2302 = vpop.f32.mrb[0].mxu0
    %2303 = vdwg.mxu0
    %v2304 = vld [vmem:[#allocation13] sm:$0xff]
    %v2305 = vld [vmem:[#allocation13 + $0x8] sm:$0xff]
    %v2306 = vld [vmem:[#allocation13 + $0x10] sm:$0xff]
    %v2307 = vld [vmem:[#allocation13 + $0x18] sm:$0xff]
    %2308 = vmatprep.subr.mxu0 0.0
    %2309 = vmatpush1.msra.mxu0 %v2304
    %2310 = vmatprep.subr.mxu0 0.0
    %2311 = vmatpush1.msra.mxu0 %v2305
    %2312 = vmatprep.subr.mxu0 0.0
    %2313 = vmatpush1.msra.mxu0 %v2306
    %2314 = vmatprep.subr.mxu0 0.0
    %2315 = vmatpush1.msra.mxu0 %v2307
    %2316 = vmatprep.subr.mxu0 0.0
    %2317 = vmatpush1.msra.mxu0 0.0
    %2318 = vmatprep.subr.mxu0 0.0
    %2319 = vmatpush1.msra.mxu0 0.0
    %2320 = vmatprep.subr.mxu0 0.0
    %2321 = vmatpush1.msra.mxu0 0.0
    %2322 = vmatprep.subr.mxu0 0.0
    %2323 = vmatpush1.msra.mxu0 0.0
    %2324 = vmatprep.subr.mxu0 0.0
    %2325 = vmatpush1.msra.mxu0 0.0
    %2326 = vmatprep.subr.mxu0 0.0
    %2327 = vmatpush1.msra.mxu0 0.0
    %2328 = vmatprep.subr.mxu0 0.0
    %2329 = vmatpush1.msra.mxu0 0.0
    %2330 = vmatprep.subr.mxu0 0.0
    %2331 = vmatpush1.msra.mxu0 0.0
    %2332 = vmatprep.subr.mxu0 0.0
    %2333 = vmatpush1.msra.mxu0 0.0
    %2334 = vmatprep.subr.mxu0 0.0
    %2335 = vmatpush1.msra.mxu0 0.0
    %2336 = vmatprep.subr.mxu0 0.0
    %2337 = vmatpush1.msra.mxu0 0.0
    %2338 = vmatprep.subr.mxu0 0.0
    %2339 = vmatpush1.msra.mxu0 0.0
    %2340 = vmatprep.subr.mxu0 0.0
    %2341 = vmatpush1.msra.mxu0 0.0
    %2342 = vmatprep.subr.mxu0 0.0
    %2343 = vmatpush1.msra.mxu0 0.0
    %2344 = vmatprep.subr.mxu0 0.0
    %2345 = vmatpush1.msra.mxu0 0.0
    %2346 = vmatprep.subr.mxu0 0.0
    %2347 = vmatpush1.msra.mxu0 0.0
    %2348 = vmatprep.subr.mxu0 0.0
    %2349 = vmatpush1.msra.mxu0 0.0
    %2350 = vmatprep.subr.mxu0 0.0
    %2351 = vmatpush1.msra.mxu0 0.0
    %2352 = vmatprep.subr.mxu0 0.0
    %2353 = vmatpush1.msra.mxu0 0.0
    %2354 = vmatprep.subr.mxu0 0.0
    %2355 = vmatpush1.msra.mxu0 0.0
    %2356 = vmatprep.subr.mxu0 0.0
    %2357 = vmatpush1.msra.mxu0 0.0
    %2358 = vmatprep.subr.mxu0 0.0
    %2359 = vmatpush1.msra.mxu0 0.0
    %2360 = vmatprep.subr.mxu0 0.0
    %2361 = vmatpush1.msra.mxu0 0.0
    %2362 = vmatprep.subr.mxu0 0.0
    %2363 = vmatpush1.msra.mxu0 0.0
    %2364 = vmatprep.subr.mxu0 0.0
    %2365 = vmatpush1.msra.mxu0 0.0
    %2366 = vmatprep.subr.mxu0 0.0
    %2367 = vmatpush1.msra.mxu0 0.0
    %2368 = vmatprep.subr.mxu0 0.0
    %2369 = vmatpush1.msra.mxu0 0.0
    %2370 = vmatprep.subr.mxu0 0.0
    %2371 = vmatpush1.msra.mxu0 0.0
    %2372 = vmatprep.mubr.f32.mxu0 0.0
    %2373 = vmatmul.mubr.f32.gmra.mrb[0].mxu0 %v360
    %v2374 = vpop.f32.mrb[0].mxu0
    %v2375 = vadd.f32 0.0, %v2374
    %v2376 = vpop.f32.mrb[0].mxu0
    %2377 = vdwg.mxu0
    %v2378 = vadd.f32 %v2206, %v2375
    %v2379 = vxor.u32 %v2378, 2147483648
    %v2380 = vmul.f32 %v2379, 1.442695
    %v2381 = vpow.pop %v2380
    %v2382 = vadd.f32 %v2381, 1.0
    %v2383 = vrcp.pop %v2382
    %v2384 = vmul.f32 1.0, %v2383
    %v2385 = vtanh.pop %v2378
    %v2386 = vmul.f32 %v2384, 0.0
    %2388 = vrot.lane.b32.xlu0 %v2385, 64
    %v2389 = vpop.permute.xlu0 %2388
    %v2391 = vmul.f32 %v2384, %v2389
    %2393 = vrot.lane.b32.xlu0 %v2391, 32
    %v2394 = vpop.permute.xlu0 %2393
    %v2396 = vadd.f32 %v2386, %v2394
    %v2397 = vtanh.pop %v2396
    %2399 = vrot.lane.b32.xlu0 %v2397, 64
    %v2400 = vpop.permute.xlu0 %2399
    %v2402 = vmul.f32 %v2384, %v2400
    %2404 = vrot.lane.b32.xlu0 %v2402, 32
    %v2405 = vpop.permute.xlu0 %2404
    %2407 = vst.msk [vmem:[#allocation3] sm:$0x3] %vm461, %v2405
    %v2408 = vsel %vm358, %v2405, 0
    %2410 = vmatprep.subr.mxu0 0.0
    %2411 = vmatpush1.msra.mxu0 %v2304
    %2412 = vmatprep.subr.mxu0 0.0
    %2413 = vmatpush1.msra.mxu0 %v2305
    %2414 = vmatprep.subr.mxu0 0.0
    %2415 = vmatpush1.msra.mxu0 %v2306
    %2416 = vmatprep.subr.mxu0 0.0
    %2417 = vmatpush1.msra.mxu0 %v2307
    %2418 = vmatprep.subr.mxu0 0.0
    %2419 = vmatpush1.msra.mxu0 0.0
    %2420 = vmatprep.subr.mxu0 0.0
    %2421 = vmatpush1.msra.mxu0 0.0
    %2422 = vmatprep.subr.mxu0 0.0
    %2423 = vmatpush1.msra.mxu0 0.0
    %2424 = vmatprep.subr.mxu0 0.0
    %2425 = vmatpush1.msra.mxu0 0.0
    %2426 = vmatprep.subr.mxu0 0.0
    %2427 = vmatpush1.msra.mxu0 0.0
    %2428 = vmatprep.subr.mxu0 0.0
    %2429 = vmatpush1.msra.mxu0 0.0
    %2430 = vmatprep.subr.mxu0 0.0
    %2431 = vmatpush1.msra.mxu0 0.0
    %2432 = vmatprep.subr.mxu0 0.0
    %2433 = vmatpush1.msra.mxu0 0.0
    %2434 = vmatprep.subr.mxu0 0.0
    %2435 = vmatpush1.msra.mxu0 0.0
    %2436 = vmatprep.subr.mxu0 0.0
    %2437 = vmatpush1.msra.mxu0 0.0
    %2438 = vmatprep.subr.mxu0 0.0
    %2439 = vmatpush1.msra.mxu0 0.0
    %2440 = vmatprep.subr.mxu0 0.0
    %2441 = vmatpush1.msra.mxu0 0.0
    %2442 = vmatprep.subr.mxu0 0.0
    %2443 = vmatpush1.msra.mxu0 0.0
    %2444 = vmatprep.subr.mxu0 0.0
    %2445 = vmatpush1.msra.mxu0 0.0
    %2446 = vmatprep.subr.mxu0 0.0
    %2447 = vmatpush1.msra.mxu0 0.0
    %2448 = vmatprep.subr.mxu0 0.0
    %2449 = vmatpush1.msra.mxu0 0.0
    %2450 = vmatprep.subr.mxu0 0.0
    %2451 = vmatpush1.msra.mxu0 0.0
    %2452 = vmatprep.subr.mxu0 0.0
    %2453 = vmatpush1.msra.mxu0 0.0
    %2454 = vmatprep.subr.mxu0 0.0
    %2455 = vmatpush1.msra.mxu0 0.0
    %2456 = vmatprep.subr.mxu0 0.0
    %2457 = vmatpush1.msra.mxu0 0.0
    %2458 = vmatprep.subr.mxu0 0.0
    %2459 = vmatpush1.msra.mxu0 0.0
    %2460 = vmatprep.subr.mxu0 0.0
    %2461 = vmatpush1.msra.mxu0 0.0
    %2462 = vmatprep.subr.mxu0 0.0
    %2463 = vmatpush1.msra.mxu0 0.0
    %2464 = vmatprep.subr.mxu0 0.0
    %2465 = vmatpush1.msra.mxu0 0.0
    %2466 = vmatprep.subr.mxu0 0.0
    %2467 = vmatpush1.msra.mxu0 0.0
    %2468 = vmatprep.subr.mxu0 0.0
    %2469 = vmatpush1.msra.mxu0 0.0
    %2470 = vmatprep.subr.mxu0 0.0
    %2471 = vmatpush1.msra.mxu0 0.0
    %2472 = vmatprep.subr.mxu0 0.0
    %2473 = vmatpush1.msra.mxu0 0.0
    %2474 = vmatprep.mubr.f32.mxu0 0.0
    %2475 = vmatmul.mubr.f32.gmra.mrb[0].mxu0 %v2408
    %v2476 = vpop.f32.mrb[0].mxu0
    %v2477 = vadd.f32 0.0, %v2476
    %v2478 = vpop.f32.mrb[0].mxu0
    %2479 = vdwg.mxu0
    %v2481 = vrot.slane %v2477, 6
    %v2483 = vadd.f32 %v2206, %v2481
    %v2484 = vxor.u32 %v2483, 2147483648
    %v2485 = vmul.f32 %v2484, 1.442695
    %v2486 = vpow.pop %v2485
    %v2487 = vadd.f32 %v2486, 1.0
    %v2488 = vrcp.pop %v2487
    %v2489 = vmul.f32 1.0, %v2488
    %v2490 = vtanh.pop %v2483
    %v2492 = vrot.slane %v2396, 6
    %v2494 = vmul.f32 %v2489, %v2492
    %2496 = vrot.lane.b32.xlu0 %v2490, 64
    %v2497 = vpop.permute.xlu0 %2496
    %v2499 = vmul.f32 %v2489, %v2497
    %2501 = vrot.lane.b32.xlu0 %v2499, 32
    %v2502 = vpop.permute.xlu0 %2501
    %v2504 = vadd.f32 %v2494, %v2502
    %v2505 = vtanh.pop %v2504
    %2507 = vrot.lane.b32.xlu0 %v2505, 64
    %v2508 = vpop.permute.xlu0 %2507
    %v2510 = vmul.f32 %v2489, %v2508
    %2512 = vrot.lane.b32.xlu0 %v2510, 32
    %v2513 = vpop.permute.xlu0 %2512
    %2515 = vst.msk [vmem:[#allocation3] sm:$0xc] %vm570, %v2513
    %v2516 = vrot.slane %v2510, 2
    %2517 = vrot.lane.b32.xlu0 %v2516, 32
    %v2518 = vpop.permute.xlu0 %2517
    %v2519 = vsel %vm358, %v2518, 0
    %2521 = vmatprep.subr.mxu0 0.0
    %2522 = vmatpush1.msra.mxu0 %v2304
    %2523 = vmatprep.subr.mxu0 0.0
    %2524 = vmatpush1.msra.mxu0 %v2305
    %2525 = vmatprep.subr.mxu0 0.0
    %2526 = vmatpush1.msra.mxu0 %v2306
    %2527 = vmatprep.subr.mxu0 0.0
    %2528 = vmatpush1.msra.mxu0 %v2307
    %2529 = vmatprep.subr.mxu0 0.0
    %2530 = vmatpush1.msra.mxu0 0.0
    %2531 = vmatprep.subr.mxu0 0.0
    %2532 = vmatpush1.msra.mxu0 0.0
    %2533 = vmatprep.subr.mxu0 0.0
    %2534 = vmatpush1.msra.mxu0 0.0
    %2535 = vmatprep.subr.mxu0 0.0
    %2536 = vmatpush1.msra.mxu0 0.0
    %2537 = vmatprep.subr.mxu0 0.0
    %2538 = vmatpush1.msra.mxu0 0.0
    %2539 = vmatprep.subr.mxu0 0.0
    %2540 = vmatpush1.msra.mxu0 0.0
    %2541 = vmatprep.subr.mxu0 0.0
    %2542 = vmatpush1.msra.mxu0 0.0
    %2543 = vmatprep.subr.mxu0 0.0
    %2544 = vmatpush1.msra.mxu0 0.0
    %2545 = vmatprep.subr.mxu0 0.0
    %2546 = vmatpush1.msra.mxu0 0.0
    %2547 = vmatprep.subr.mxu0 0.0
    %2548 = vmatpush1.msra.mxu0 0.0
    %2549 = vmatprep.subr.mxu0 0.0
    %2550 = vmatpush1.msra.mxu0 0.0
    %2551 = vmatprep.subr.mxu0 0.0
    %2552 = vmatpush1.msra.mxu0 0.0
    %2553 = vmatprep.subr.mxu0 0.0
    %2554 = vmatpush1.msra.mxu0 0.0
    %2555 = vmatprep.subr.mxu0 0.0
    %2556 = vmatpush1.msra.mxu0 0.0
    %2557 = vmatprep.subr.mxu0 0.0
    %2558 = vmatpush1.msra.mxu0 0.0
    %2559 = vmatprep.subr.mxu0 0.0
    %2560 = vmatpush1.msra.mxu0 0.0
    %2561 = vmatprep.subr.mxu0 0.0
    %2562 = vmatpush1.msra.mxu0 0.0
    %2563 = vmatprep.subr.mxu0 0.0
    %2564 = vmatpush1.msra.mxu0 0.0
    %2565 = vmatprep.subr.mxu0 0.0
    %2566 = vmatpush1.msra.mxu0 0.0
    %2567 = vmatprep.subr.mxu0 0.0
    %2568 = vmatpush1.msra.mxu0 0.0
    %2569 = vmatprep.subr.mxu0 0.0
    %2570 = vmatpush1.msra.mxu0 0.0
    %2571 = vmatprep.subr.mxu0 0.0
    %2572 = vmatpush1.msra.mxu0 0.0
    %2573 = vmatprep.subr.mxu0 0.0
    %2574 = vmatpush1.msra.mxu0 0.0
    %2575 = vmatprep.subr.mxu0 0.0
    %2576 = vmatpush1.msra.mxu0 0.0
    %2577 = vmatprep.subr.mxu0 0.0
    %2578 = vmatpush1.msra.mxu0 0.0
    %2579 = vmatprep.subr.mxu0 0.0
    %2580 = vmatpush1.msra.mxu0 0.0
    %2581 = vmatprep.subr.mxu0 0.0
    %2582 = vmatpush1.msra.mxu0 0.0
    %2583 = vmatprep.subr.mxu0 0.0
    %2584 = vmatpush1.msra.mxu0 0.0
    %2585 = vmatprep.mubr.f32.mxu0 0.0
    %2586 = vmatmul.mubr.f32.gmra.mrb[0].mxu0 %v2519
    %v2587 = vpop.f32.mrb[0].mxu0
    %v2588 = vadd.f32 0.0, %v2587
    %v2589 = vpop.f32.mrb[0].mxu0
    %2590 = vdwg.mxu0
    %v2592 = vrot.slane %v2588, 4
    %v2594 = vadd.f32 %v2206, %v2592
    %v2595 = vxor.u32 %v2594, 2147483648
    %v2596 = vmul.f32 %v2595, 1.442695
    %v2597 = vpow.pop %v2596
    %v2598 = vadd.f32 %v2597, 1.0
    %v2599 = vrcp.pop %v2598
    %v2600 = vmul.f32 1.0, %v2599
    %v2601 = vtanh.pop %v2594
    %v2603 = vrot.slane %v2504, 6
    %v2605 = vmul.f32 %v2600, %v2603
    %2607 = vrot.lane.b32.xlu0 %v2601, 64
    %v2608 = vpop.permute.xlu0 %2607
    %v2610 = vmul.f32 %v2600, %v2608
    %2612 = vrot.lane.b32.xlu0 %v2610, 32
    %v2613 = vpop.permute.xlu0 %2612
    %v2615 = vadd.f32 %v2605, %v2613
    %v2616 = vtanh.pop %v2615
    %2618 = vrot.lane.b32.xlu0 %v2616, 64
    %v2619 = vpop.permute.xlu0 %2618
    %v2621 = vmul.f32 %v2600, %v2619
    %2623 = vrot.lane.b32.xlu0 %v2621, 32
    %v2624 = vpop.permute.xlu0 %2623
    %2626 = vst.msk [vmem:[#allocation3] sm:$0x30] %vm682, %v2624
    %v2627 = vrot.slane %v2621, 4
    %2628 = vrot.lane.b32.xlu0 %v2627, 32
    %v2629 = vpop.permute.xlu0 %2628
    %v2630 = vsel %vm358, %v2629, 0
    %2632 = vmatprep.subr.mxu0 0.0
    %2633 = vmatpush1.msra.mxu0 %v2304
    %2634 = vmatprep.subr.mxu0 0.0
    %2635 = vmatpush1.msra.mxu0 %v2305
    %2636 = vmatprep.subr.mxu0 0.0
    %2637 = vmatpush1.msra.mxu0 %v2306
    %2638 = vmatprep.subr.mxu0 0.0
    %2639 = vmatpush1.msra.mxu0 %v2307
    %2640 = vmatprep.subr.mxu0 0.0
    %2641 = vmatpush1.msra.mxu0 0.0
    %2642 = vmatprep.subr.mxu0 0.0
    %2643 = vmatpush1.msra.mxu0 0.0
    %2644 = vmatprep.subr.mxu0 0.0
    %2645 = vmatpush1.msra.mxu0 0.0
    %2646 = vmatprep.subr.mxu0 0.0
    %2647 = vmatpush1.msra.mxu0 0.0
    %2648 = vmatprep.subr.mxu0 0.0
    %2649 = vmatpush1.msra.mxu0 0.0
    %2650 = vmatprep.subr.mxu0 0.0
    %2651 = vmatpush1.msra.mxu0 0.0
    %2652 = vmatprep.subr.mxu0 0.0
    %2653 = vmatpush1.msra.mxu0 0.0
    %2654 = vmatprep.subr.mxu0 0.0
    %2655 = vmatpush1.msra.mxu0 0.0
    %2656 = vmatprep.subr.mxu0 0.0
    %2657 = vmatpush1.msra.mxu0 0.0
    %2658 = vmatprep.subr.mxu0 0.0
    %2659 = vmatpush1.msra.mxu0 0.0
    %2660 = vmatprep.subr.mxu0 0.0
    %2661 = vmatpush1.msra.mxu0 0.0
    %2662 = vmatprep.subr.mxu0 0.0
    %2663 = vmatpush1.msra.mxu0 0.0
    %2664 = vmatprep.subr.mxu0 0.0
    %2665 = vmatpush1.msra.mxu0 0.0
    %2666 = vmatprep.subr.mxu0 0.0
    %2667 = vmatpush1.msra.mxu0 0.0
    %2668 = vmatprep.subr.mxu0 0.0
    %2669 = vmatpush1.msra.mxu0 0.0
    %2670 = vmatprep.subr.mxu0 0.0
    %2671 = vmatpush1.msra.mxu0 0.0
    %2672 = vmatprep.subr.mxu0 0.0
    %2673 = vmatpush1.msra.mxu0 0.0
    %2674 = vmatprep.subr.mxu0 0.0
    %2675 = vmatpush1.msra.mxu0 0.0
    %2676 = vmatprep.subr.mxu0 0.0
    %2677 = vmatpush1.msra.mxu0 0.0
    %2678 = vmatprep.subr.mxu0 0.0
    %2679 = vmatpush1.msra.mxu0 0.0
    %2680 = vmatprep.subr.mxu0 0.0
    %2681 = vmatpush1.msra.mxu0 0.0
    %2682 = vmatprep.subr.mxu0 0.0
    %2683 = vmatpush1.msra.mxu0 0.0
    %2684 = vmatprep.subr.mxu0 0.0
    %2685 = vmatpush1.msra.mxu0 0.0
    %2686 = vmatprep.subr.mxu0 0.0
    %2687 = vmatpush1.msra.mxu0 0.0
    %2688 = vmatprep.subr.mxu0 0.0
    %2689 = vmatpush1.msra.mxu0 0.0
    %2690 = vmatprep.subr.mxu0 0.0
    %2691 = vmatpush1.msra.mxu0 0.0
    %2692 = vmatprep.subr.mxu0 0.0
    %2693 = vmatpush1.msra.mxu0 0.0
    %2694 = vmatprep.subr.mxu0 0.0
    %2695 = vmatpush1.msra.mxu0 0.0
    %2696 = vmatprep.mubr.f32.mxu0 0.0
    %2697 = vmatmul.mubr.f32.gmra.mrb[0].mxu0 %v2630
    %v2698 = vpop.f32.mrb[0].mxu0
    %v2699 = vadd.f32 0.0, %v2698
    %v2700 = vpop.f32.mrb[0].mxu0
    %2701 = vdwg.mxu0
    %v2703 = vrot.slane %v2699, 2
    %v2705 = vadd.f32 %v2206, %v2703
    %v2706 = vxor.u32 %v2705, 2147483648
    %v2707 = vmul.f32 %v2706, 1.442695
    %v2708 = vpow.pop %v2707
    %v2709 = vadd.f32 %v2708, 1.0
    %v2710 = vrcp.pop %v2709
    %v2711 = vmul.f32 1.0, %v2710
    %v2712 = vtanh.pop %v2705
    %v2714 = vrot.slane %v2615, 6
    %v2716 = vmul.f32 %v2711, %v2714
    %2718 = vrot.lane.b32.xlu0 %v2712, 64
    %v2719 = vpop.permute.xlu0 %2718
    %v2721 = vmul.f32 %v2711, %v2719
    %2723 = vrot.lane.b32.xlu0 %v2721, 32
    %v2724 = vpop.permute.xlu0 %2723
    %v2726 = vadd.f32 %v2716, %v2724
    %v2727 = vtanh.pop %v2726
    %2729 = vrot.lane.b32.xlu0 %v2727, 64
    %v2730 = vpop.permute.xlu0 %2729
    %v2732 = vmul.f32 %v2711, %v2730
    %2734 = vrot.lane.b32.xlu0 %v2732, 32
    %v2735 = vpop.permute.xlu0 %2734
    %2737 = vst.msk [vmem:[#allocation3] sm:$0xc0] %vm794, %v2735
    %v2738 = vrot.slane %v2732, 6
    %2739 = vrot.lane.b32.xlu0 %v2738, 32
    %v2740 = vpop.permute.xlu0 %2739
    %v2741 = vsel %vm358, %v2740, 0
    %2743 = vmatprep.subr.mxu0 0.0
    %2744 = vmatpush1.msra.mxu0 %v2304
    %2745 = vmatprep.subr.mxu0 0.0
    %2746 = vmatpush1.msra.mxu0 %v2305
    %2747 = vmatprep.subr.mxu0 0.0
    %2748 = vmatpush1.msra.mxu0 %v2306
    %2749 = vmatprep.subr.mxu0 0.0
    %2750 = vmatpush1.msra.mxu0 %v2307
    %2751 = vmatprep.subr.mxu0 0.0
    %2752 = vmatpush1.msra.mxu0 0.0
    %2753 = vmatprep.subr.mxu0 0.0
    %2754 = vmatpush1.msra.mxu0 0.0
    %2755 = vmatprep.subr.mxu0 0.0
    %2756 = vmatpush1.msra.mxu0 0.0
    %2757 = vmatprep.subr.mxu0 0.0
    %2758 = vmatpush1.msra.mxu0 0.0
    %2759 = vmatprep.subr.mxu0 0.0
    %2760 = vmatpush1.msra.mxu0 0.0
    %2761 = vmatprep.subr.mxu0 0.0
    %2762 = vmatpush1.msra.mxu0 0.0
    %2763 = vmatprep.subr.mxu0 0.0
    %2764 = vmatpush1.msra.mxu0 0.0
    %2765 = vmatprep.subr.mxu0 0.0
    %2766 = vmatpush1.msra.mxu0 0.0
    %2767 = vmatprep.subr.mxu0 0.0
    %2768 = vmatpush1.msra.mxu0 0.0
    %2769 = vmatprep.subr.mxu0 0.0
    %2770 = vmatpush1.msra.mxu0 0.0
    %2771 = vmatprep.subr.mxu0 0.0
    %2772 = vmatpush1.msra.mxu0 0.0
    %2773 = vmatprep.subr.mxu0 0.0
    %2774 = vmatpush1.msra.mxu0 0.0
    %2775 = vmatprep.subr.mxu0 0.0
    %2776 = vmatpush1.msra.mxu0 0.0
    %2777 = vmatprep.subr.mxu0 0.0
    %2778 = vmatpush1.msra.mxu0 0.0
    %2779 = vmatprep.subr.mxu0 0.0
    %2780 = vmatpush1.msra.mxu0 0.0
    %2781 = vmatprep.subr.mxu0 0.0
    %2782 = vmatpush1.msra.mxu0 0.0
    %2783 = vmatprep.subr.mxu0 0.0
    %2784 = vmatpush1.msra.mxu0 0.0
    %2785 = vmatprep.subr.mxu0 0.0
    %2786 = vmatpush1.msra.mxu0 0.0
    %2787 = vmatprep.subr.mxu0 0.0
    %2788 = vmatpush1.msra.mxu0 0.0
    %2789 = vmatprep.subr.mxu0 0.0
    %2790 = vmatpush1.msra.mxu0 0.0
    %2791 = vmatprep.subr.mxu0 0.0
    %2792 = vmatpush1.msra.mxu0 0.0
    %2793 = vmatprep.subr.mxu0 0.0
    %2794 = vmatpush1.msra.mxu0 0.0
    %2795 = vmatprep.subr.mxu0 0.0
    %2796 = vmatpush1.msra.mxu0 0.0
    %2797 = vmatprep.subr.mxu0 0.0
    %2798 = vmatpush1.msra.mxu0 0.0
    %2799 = vmatprep.subr.mxu0 0.0
    %2800 = vmatpush1.msra.mxu0 0.0
    %2801 = vmatprep.subr.mxu0 0.0
    %2802 = vmatpush1.msra.mxu0 0.0
    %2803 = vmatprep.subr.mxu0 0.0
    %2804 = vmatpush1.msra.mxu0 0.0
    %2805 = vmatprep.subr.mxu0 0.0
    %2806 = vmatpush1.msra.mxu0 0.0
    %2807 = vmatprep.mubr.f32.mxu0 0.0
    %2808 = vmatmul.mubr.f32.gmra.mrb[0].mxu0 %v2741
    %v2809 = vpop.f32.mrb[0].mxu0
    %v2810 = vadd.f32 0.0, %v2809
    %v2811 = vpop.f32.mrb[0].mxu0
    %2812 = vdwg.mxu0
    %v2813 = vadd.f32 %v2211, %v2810
    %v2814 = vxor.u32 %v2813, 2147483648
    %v2815 = vmul.f32 %v2814, 1.442695
    %v2816 = vpow.pop %v2815
    %v2817 = vadd.f32 %v2816, 1.0
    %v2818 = vrcp.pop %v2817
    %v2819 = vmul.f32 1.0, %v2818
    %v2820 = vtanh.pop %v2813
    %v2822 = vrot.slane %v2726, 6
    %v2824 = vmul.f32 %v2819, %v2822
    %2826 = vrot.lane.b32.xlu0 %v2820, 64
    %v2827 = vpop.permute.xlu0 %2826
    %v2829 = vmul.f32 %v2819, %v2827
    %2831 = vrot.lane.b32.xlu0 %v2829, 32
    %v2832 = vpop.permute.xlu0 %2831
    %v2834 = vadd.f32 %v2824, %v2832
    %v2835 = vtanh.pop %v2834
    %2837 = vrot.lane.b32.xlu0 %v2835, 64
    %v2838 = vpop.permute.xlu0 %2837
    %v2840 = vmul.f32 %v2819, %v2838
    %2842 = vrot.lane.b32.xlu0 %v2840, 32
    %v2843 = vpop.permute.xlu0 %2842
    %2845 = vst.msk [vmem:[#allocation3 + $0x8] sm:$0x3] %vm461, %v2843
    %v2846 = vsel %vm358, %v2843, 0
    %2848 = vmatprep.subr.mxu0 0.0
    %2849 = vmatpush1.msra.mxu0 %v2304
    %2850 = vmatprep.subr.mxu0 0.0
    %2851 = vmatpush1.msra.mxu0 %v2305
    %2852 = vmatprep.subr.mxu0 0.0
    %2853 = vmatpush1.msra.mxu0 %v2306
    %2854 = vmatprep.subr.mxu0 0.0
    %2855 = vmatpush1.msra.mxu0 %v2307
    %2856 = vmatprep.subr.mxu0 0.0
    %2857 = vmatpush1.msra.mxu0 0.0
    %2858 = vmatprep.subr.mxu0 0.0
    %2859 = vmatpush1.msra.mxu0 0.0
    %2860 = vmatprep.subr.mxu0 0.0
    %2861 = vmatpush1.msra.mxu0 0.0
    %2862 = vmatprep.subr.mxu0 0.0
    %2863 = vmatpush1.msra.mxu0 0.0
    %2864 = vmatprep.subr.mxu0 0.0
    %2865 = vmatpush1.msra.mxu0 0.0
    %2866 = vmatprep.subr.mxu0 0.0
    %2867 = vmatpush1.msra.mxu0 0.0
    %2868 = vmatprep.subr.mxu0 0.0
    %2869 = vmatpush1.msra.mxu0 0.0
    %2870 = vmatprep.subr.mxu0 0.0
    %2871 = vmatpush1.msra.mxu0 0.0
    %2872 = vmatprep.subr.mxu0 0.0
    %2873 = vmatpush1.msra.mxu0 0.0
    %2874 = vmatprep.subr.mxu0 0.0
    %2875 = vmatpush1.msra.mxu0 0.0
    %2876 = vmatprep.subr.mxu0 0.0
    %2877 = vmatpush1.msra.mxu0 0.0
    %2878 = vmatprep.subr.mxu0 0.0
    %2879 = vmatpush1.msra.mxu0 0.0
    %2880 = vmatprep.subr.mxu0 0.0
    %2881 = vmatpush1.msra.mxu0 0.0
    %2882 = vmatprep.subr.mxu0 0.0
    %2883 = vmatpush1.msra.mxu0 0.0
    %2884 = vmatprep.subr.mxu0 0.0
    %2885 = vmatpush1.msra.mxu0 0.0
    %2886 = vmatprep.subr.mxu0 0.0
    %2887 = vmatpush1.msra.mxu0 0.0
    %2888 = vmatprep.subr.mxu0 0.0
    %2889 = vmatpush1.msra.mxu0 0.0
    %2890 = vmatprep.subr.mxu0 0.0
    %2891 = vmatpush1.msra.mxu0 0.0
    %2892 = vmatprep.subr.mxu0 0.0
    %2893 = vmatpush1.msra.mxu0 0.0
    %2894 = vmatprep.subr.mxu0 0.0
    %2895 = vmatpush1.msra.mxu0 0.0
    %2896 = vmatprep.subr.mxu0 0.0
    %2897 = vmatpush1.msra.mxu0 0.0
    %2898 = vmatprep.subr.mxu0 0.0
    %2899 = vmatpush1.msra.mxu0 0.0
    %2900 = vmatprep.subr.mxu0 0.0
    %2901 = vmatpush1.msra.mxu0 0.0
    %2902 = vmatprep.subr.mxu0 0.0
    %2903 = vmatpush1.msra.mxu0 0.0
    %2904 = vmatprep.subr.mxu0 0.0
    %2905 = vmatpush1.msra.mxu0 0.0
    %2906 = vmatprep.subr.mxu0 0.0
    %2907 = vmatpush1.msra.mxu0 0.0
    %2908 = vmatprep.subr.mxu0 0.0
    %2909 = vmatpush1.msra.mxu0 0.0
    %2910 = vmatprep.subr.mxu0 0.0
    %2911 = vmatpush1.msra.mxu0 0.0
    %2912 = vmatprep.mubr.f32.mxu0 0.0
    %2913 = vmatmul.mubr.f32.gmra.mrb[0].mxu0 %v2846
    %v2914 = vpop.f32.mrb[0].mxu0
    %v2915 = vadd.f32 0.0, %v2914
    %v2916 = vpop.f32.mrb[0].mxu0
    %2917 = vdwg.mxu0
    %v2919 = vrot.slane %v2915, 6
    %v2921 = vadd.f32 %v2211, %v2919
    %v2922 = vxor.u32 %v2921, 2147483648
    %v2923 = vmul.f32 %v2922, 1.442695
    %v2924 = vpow.pop %v2923
    %v2925 = vadd.f32 %v2924, 1.0
    %v2926 = vrcp.pop %v2925
    %v2927 = vmul.f32 1.0, %v2926
    %v2928 = vtanh.pop %v2921
    %v2930 = vrot.slane %v2834, 6
    %v2932 = vmul.f32 %v2927, %v2930
    %2934 = vrot.lane.b32.xlu0 %v2928, 64
    %v2935 = vpop.permute.xlu0 %2934
    %v2937 = vmul.f32 %v2927, %v2935
    %2939 = vrot.lane.b32.xlu0 %v2937, 32
    %v2940 = vpop.permute.xlu0 %2939
    %v2942 = vadd.f32 %v2932, %v2940
    %v2943 = vtanh.pop %v2942
    %2945 = vrot.lane.b32.xlu0 %v2943, 64
    %v2946 = vpop.permute.xlu0 %2945
    %v2948 = vmul.f32 %v2927, %v2946
    %2950 = vrot.lane.b32.xlu0 %v2948, 32
    %v2951 = vpop.permute.xlu0 %2950
    %2953 = vst.msk [vmem:[#allocation3 + $0x8] sm:$0xc] %vm570, %v2951
    %v2954 = vrot.slane %v2948, 2
    %2955 = vrot.lane.b32.xlu0 %v2954, 32
    %v2956 = vpop.permute.xlu0 %2955
    %v2957 = vsel %vm358, %v2956, 0
    %2959 = vmatprep.subr.mxu0 0.0
    %2960 = vmatpush1.msra.mxu0 %v2304
    %2961 = vmatprep.subr.mxu0 0.0
    %2962 = vmatpush1.msra.mxu0 %v2305
    %2963 = vmatprep.subr.mxu0 0.0
    %2964 = vmatpush1.msra.mxu0 %v2306
    %2965 = vmatprep.subr.mxu0 0.0
    %2966 = vmatpush1.msra.mxu0 %v2307
    %2967 = vmatprep.subr.mxu0 0.0
    %2968 = vmatpush1.msra.mxu0 0.0
    %2969 = vmatprep.subr.mxu0 0.0
    %2970 = vmatpush1.msra.mxu0 0.0
    %2971 = vmatprep.subr.mxu0 0.0
    %2972 = vmatpush1.msra.mxu0 0.0
    %2973 = vmatprep.subr.mxu0 0.0
    %2974 = vmatpush1.msra.mxu0 0.0
    %2975 = vmatprep.subr.mxu0 0.0
    %2976 = vmatpush1.msra.mxu0 0.0
    %2977 = vmatprep.subr.mxu0 0.0
    %2978 = vmatpush1.msra.mxu0 0.0
    %2979 = vmatprep.subr.mxu0 0.0
    %2980 = vmatpush1.msra.mxu0 0.0
    %2981 = vmatprep.subr.mxu0 0.0
    %2982 = vmatpush1.msra.mxu0 0.0
    %2983 = vmatprep.subr.mxu0 0.0
    %2984 = vmatpush1.msra.mxu0 0.0
    %2985 = vmatprep.subr.mxu0 0.0
    %2986 = vmatpush1.msra.mxu0 0.0
    %2987 = vmatprep.subr.mxu0 0.0
    %2988 = vmatpush1.msra.mxu0 0.0
    %2989 = vmatprep.subr.mxu0 0.0
    %2990 = vmatpush1.msra.mxu0 0.0
    %2991 = vmatprep.subr.mxu0 0.0
    %2992 = vmatpush1.msra.mxu0 0.0
    %2993 = vmatprep.subr.mxu0 0.0
    %2994 = vmatpush1.msra.mxu0 0.0
    %2995 = vmatprep.subr.mxu0 0.0
    %2996 = vmatpush1.msra.mxu0 0.0
    %2997 = vmatprep.subr.mxu0 0.0
    %2998 = vmatpush1.msra.mxu0 0.0
    %2999 = vmatprep.subr.mxu0 0.0
    %3000 = vmatpush1.msra.mxu0 0.0
    %3001 = vmatprep.subr.mxu0 0.0
    %3002 = vmatpush1.msra.mxu0 0.0
    %3003 = vmatprep.subr.mxu0 0.0
    %3004 = vmatpush1.msra.mxu0 0.0
    %3005 = vmatprep.subr.mxu0 0.0
    %3006 = vmatpush1.msra.mxu0 0.0
    %3007 = vmatprep.subr.mxu0 0.0
    %3008 = vmatpush1.msra.mxu0 0.0
    %3009 = vmatprep.subr.mxu0 0.0
    %3010 = vmatpush1.msra.mxu0 0.0
    %3011 = vmatprep.subr.mxu0 0.0
    %3012 = vmatpush1.msra.mxu0 0.0
    %3013 = vmatprep.subr.mxu0 0.0
    %3014 = vmatpush1.msra.mxu0 0.0
    %3015 = vmatprep.subr.mxu0 0.0
    %3016 = vmatpush1.msra.mxu0 0.0
    %3017 = vmatprep.subr.mxu0 0.0
    %3018 = vmatpush1.msra.mxu0 0.0
    %3019 = vmatprep.subr.mxu0 0.0
    %3020 = vmatpush1.msra.mxu0 0.0
    %3021 = vmatprep.subr.mxu0 0.0
    %3022 = vmatpush1.msra.mxu0 0.0
    %3023 = vmatprep.mubr.f32.mxu0 0.0
    %3024 = vmatmul.mubr.f32.gmra.mrb[0].mxu0 %v2957
    %v3025 = vpop.f32.mrb[0].mxu0
    %v3026 = vadd.f32 0.0, %v3025
    %v3027 = vpop.f32.mrb[0].mxu0
    %3028 = vdwg.mxu0
    %v3030 = vrot.slane %v3026, 4
    %v3032 = vadd.f32 %v2211, %v3030
    %v3033 = vxor.u32 %v3032, 2147483648
    %v3034 = vmul.f32 %v3033, 1.442695
    %v3035 = vpow.pop %v3034
    %v3036 = vadd.f32 %v3035, 1.0
    %v3037 = vrcp.pop %v3036
    %v3038 = vmul.f32 1.0, %v3037
    %v3039 = vtanh.pop %v3032
    %v3041 = vrot.slane %v2942, 6
    %v3043 = vmul.f32 %v3038, %v3041
    %3045 = vrot.lane.b32.xlu0 %v3039, 64
    %v3046 = vpop.permute.xlu0 %3045
    %v3048 = vmul.f32 %v3038, %v3046
    %3050 = vrot.lane.b32.xlu0 %v3048, 32
    %v3051 = vpop.permute.xlu0 %3050
    %v3053 = vadd.f32 %v3043, %v3051
    %v3054 = vtanh.pop %v3053
    %3056 = vrot.lane.b32.xlu0 %v3054, 64
    %v3057 = vpop.permute.xlu0 %3056
    %v3059 = vmul.f32 %v3038, %v3057
    %3061 = vrot.lane.b32.xlu0 %v3059, 32
    %v3062 = vpop.permute.xlu0 %3061
    %3064 = vst.msk [vmem:[#allocation3 + $0x8] sm:$0x30] %vm682, %v3062
    %v3065 = vrot.slane %v3059, 4
    %3066 = vrot.lane.b32.xlu0 %v3065, 32
    %v3067 = vpop.permute.xlu0 %3066
    %v3068 = vsel %vm358, %v3067, 0
    %3070 = vmatprep.subr.mxu0 0.0
    %3071 = vmatpush1.msra.mxu0 %v2304
    %3072 = vmatprep.subr.mxu0 0.0
    %3073 = vmatpush1.msra.mxu0 %v2305
    %3074 = vmatprep.subr.mxu0 0.0
    %3075 = vmatpush1.msra.mxu0 %v2306
    %3076 = vmatprep.subr.mxu0 0.0
    %3077 = vmatpush1.msra.mxu0 %v2307
    %3078 = vmatprep.subr.mxu0 0.0
    %3079 = vmatpush1.msra.mxu0 0.0
    %3080 = vmatprep.subr.mxu0 0.0
    %3081 = vmatpush1.msra.mxu0 0.0
    %3082 = vmatprep.subr.mxu0 0.0
    %3083 = vmatpush1.msra.mxu0 0.0
    %3084 = vmatprep.subr.mxu0 0.0
    %3085 = vmatpush1.msra.mxu0 0.0
    %3086 = vmatprep.subr.mxu0 0.0
    %3087 = vmatpush1.msra.mxu0 0.0
    %3088 = vmatprep.subr.mxu0 0.0
    %3089 = vmatpush1.msra.mxu0 0.0
    %3090 = vmatprep.subr.mxu0 0.0
    %3091 = vmatpush1.msra.mxu0 0.0
    %3092 = vmatprep.subr.mxu0 0.0
    %3093 = vmatpush1.msra.mxu0 0.0
    %3094 = vmatprep.subr.mxu0 0.0
    %3095 = vmatpush1.msra.mxu0 0.0
    %3096 = vmatprep.subr.mxu0 0.0
    %3097 = vmatpush1.msra.mxu0 0.0
    %3098 = vmatprep.subr.mxu0 0.0
    %3099 = vmatpush1.msra.mxu0 0.0
    %3100 = vmatprep.subr.mxu0 0.0
    %3101 = vmatpush1.msra.mxu0 0.0
    %3102 = vmatprep.subr.mxu0 0.0
    %3103 = vmatpush1.msra.mxu0 0.0
    %3104 = vmatprep.subr.mxu0 0.0
    %3105 = vmatpush1.msra.mxu0 0.0
    %3106 = vmatprep.subr.mxu0 0.0
    %3107 = vmatpush1.msra.mxu0 0.0
    %3108 = vmatprep.subr.mxu0 0.0
    %3109 = vmatpush1.msra.mxu0 0.0
    %3110 = vmatprep.subr.mxu0 0.0
    %3111 = vmatpush1.msra.mxu0 0.0
    %3112 = vmatprep.subr.mxu0 0.0
    %3113 = vmatpush1.msra.mxu0 0.0
    %3114 = vmatprep.subr.mxu0 0.0
    %3115 = vmatpush1.msra.mxu0 0.0
    %3116 = vmatprep.subr.mxu0 0.0
    %3117 = vmatpush1.msra.mxu0 0.0
    %3118 = vmatprep.subr.mxu0 0.0
    %3119 = vmatpush1.msra.mxu0 0.0
    %3120 = vmatprep.subr.mxu0 0.0
    %3121 = vmatpush1.msra.mxu0 0.0
    %3122 = vmatprep.subr.mxu0 0.0
    %3123 = vmatpush1.msra.mxu0 0.0
    %3124 = vmatprep.subr.mxu0 0.0
    %3125 = vmatpush1.msra.mxu0 0.0
    %3126 = vmatprep.subr.mxu0 0.0
    %3127 = vmatpush1.msra.mxu0 0.0
    %3128 = vmatprep.subr.mxu0 0.0
    %3129 = vmatpush1.msra.mxu0 0.0
    %3130 = vmatprep.subr.mxu0 0.0
    %3131 = vmatpush1.msra.mxu0 0.0
    %3132 = vmatprep.subr.mxu0 0.0
    %3133 = vmatpush1.msra.mxu0 0.0
    %3134 = vmatprep.mubr.f32.mxu0 0.0
    %3135 = vmatmul.mubr.f32.gmra.mrb[0].mxu0 %v3068
    %v3136 = vpop.f32.mrb[0].mxu0
    %v3137 = vadd.f32 0.0, %v3136
    %v3138 = vpop.f32.mrb[0].mxu0
    %3139 = vdwg.mxu0
    %v3141 = vrot.slane %v3137, 2
    %v3143 = vadd.f32 %v2211, %v3141
    %v3144 = vxor.u32 %v3143, 2147483648
    %v3145 = vmul.f32 %v3144, 1.442695
    %v3146 = vpow.pop %v3145
    %v3147 = vadd.f32 %v3146, 1.0
    %v3148 = vrcp.pop %v3147
    %v3149 = vmul.f32 1.0, %v3148
    %v3150 = vtanh.pop %v3143
    %v3152 = vrot.slane %v3053, 6
    %v3154 = vmul.f32 %v3149, %v3152
    %3156 = vrot.lane.b32.xlu0 %v3150, 64
    %v3157 = vpop.permute.xlu0 %3156
    %v3159 = vmul.f32 %v3149, %v3157
    %3161 = vrot.lane.b32.xlu0 %v3159, 32
    %v3162 = vpop.permute.xlu0 %3161
    %v3164 = vadd.f32 %v3154, %v3162
    %v3165 = vtanh.pop %v3164
    %3167 = vrot.lane.b32.xlu0 %v3165, 64
    %v3168 = vpop.permute.xlu0 %3167
    %v3170 = vmul.f32 %v3149, %v3168
    %3172 = vrot.lane.b32.xlu0 %v3170, 32
    %v3173 = vpop.permute.xlu0 %3172
    %3175 = vst.msk [vmem:[#allocation3 + $0x8] sm:$0xc0] %vm794, %v3173
    %v3176 = vld [vmem:[#allocation16] sm:$0xff]
    %v3177 = vld [vmem:[#allocation16 + $0x8] sm:$0xff]
    %v3178 = vld [vmem:[#allocation16 + $0x10] sm:$0xff]
    %v3179 = vld [vmem:[#allocation16 + $0x18] sm:$0xff]
    %3180 = vmatprep.subr.mxu0 0.0
    %3181 = vmatpush1.msra.mxu0 %v3176
    %3182 = vmatprep.subr.mxu0 0.0
    %3183 = vmatpush1.msra.mxu0 %v3177
    %3184 = vmatprep.subr.mxu0 0.0
    %3185 = vmatpush1.msra.mxu0 %v3178
    %3186 = vmatprep.subr.mxu0 0.0
    %3187 = vmatpush1.msra.mxu0 %v3179
    %3188 = vmatprep.subr.mxu0 0.0
    %3189 = vmatpush1.msra.mxu0 0.0
    %3190 = vmatprep.subr.mxu0 0.0
    %3191 = vmatpush1.msra.mxu0 0.0
    %3192 = vmatprep.subr.mxu0 0.0
    %3193 = vmatpush1.msra.mxu0 0.0
    %3194 = vmatprep.subr.mxu0 0.0
    %3195 = vmatpush1.msra.mxu0 0.0
    %3196 = vmatprep.subr.mxu0 0.0
    %3197 = vmatpush1.msra.mxu0 0.0
    %3198 = vmatprep.subr.mxu0 0.0
    %3199 = vmatpush1.msra.mxu0 0.0
    %3200 = vmatprep.subr.mxu0 0.0
    %3201 = vmatpush1.msra.mxu0 0.0
    %3202 = vmatprep.subr.mxu0 0.0
    %3203 = vmatpush1.msra.mxu0 0.0
    %3204 = vmatprep.subr.mxu0 0.0
    %3205 = vmatpush1.msra.mxu0 0.0
    %3206 = vmatprep.subr.mxu0 0.0
    %3207 = vmatpush1.msra.mxu0 0.0
    %3208 = vmatprep.subr.mxu0 0.0
    %3209 = vmatpush1.msra.mxu0 0.0
    %3210 = vmatprep.subr.mxu0 0.0
    %3211 = vmatpush1.msra.mxu0 0.0
    %3212 = vmatprep.subr.mxu0 0.0
    %3213 = vmatpush1.msra.mxu0 0.0
    %3214 = vmatprep.subr.mxu0 0.0
    %3215 = vmatpush1.msra.mxu0 0.0
    %3216 = vmatprep.subr.mxu0 0.0
    %3217 = vmatpush1.msra.mxu0 0.0
    %3218 = vmatprep.subr.mxu0 0.0
    %3219 = vmatpush1.msra.mxu0 0.0
    %3220 = vmatprep.subr.mxu0 0.0
    %3221 = vmatpush1.msra.mxu0 0.0
    %3222 = vmatprep.subr.mxu0 0.0
    %3223 = vmatpush1.msra.mxu0 0.0
    %3224 = vmatprep.subr.mxu0 0.0
    %3225 = vmatpush1.msra.mxu0 0.0
    %3226 = vmatprep.subr.mxu0 0.0
    %3227 = vmatpush1.msra.mxu0 0.0
    %3228 = vmatprep.subr.mxu0 0.0
    %3229 = vmatpush1.msra.mxu0 0.0
    %3230 = vmatprep.subr.mxu0 0.0
    %3231 = vmatpush1.msra.mxu0 0.0
    %3232 = vmatprep.subr.mxu0 0.0
    %3233 = vmatpush1.msra.mxu0 0.0
    %3234 = vmatprep.subr.mxu0 0.0
    %3235 = vmatpush1.msra.mxu0 0.0
    %3236 = vmatprep.subr.mxu0 0.0
    %3237 = vmatpush1.msra.mxu0 0.0
    %3238 = vmatprep.subr.mxu0 0.0
    %3239 = vmatpush1.msra.mxu0 0.0
    %3240 = vmatprep.subr.mxu0 0.0
    %3241 = vmatpush1.msra.mxu0 0.0
    %3242 = vmatprep.subr.mxu0 0.0
    %3243 = vmatpush1.msra.mxu0 0.0
    %3244 = vmatprep.mubr.f32.mxu0 0.0
    %3245 = vmatmul.mubr.f32.gmra.mrb[0].mxu0 %v360
    %v3246 = vpop.f32.mrb[0].mxu0
    %v3247 = vadd.f32 0.0, %v3246
    %v3248 = vpop.f32.mrb[0].mxu0
    %3249 = vdwg.mxu0
    %v3251 = vrot.slane %v3247, 2
    %v3253 = vadd.f32 %v2301, %v3251
    %v3254 = vxor.u32 %v3253, 2147483648
    %v3255 = vmul.f32 %v3254, 1.442695
    %v3256 = vpow.pop %v3255
    %v3257 = vadd.f32 %v3256, 1.0
    %v3258 = vrcp.pop %v3257
    %v3259 = vmul.f32 1.0, %v3258
    %v3260 = vtanh.pop %v3253
    %v3261 = vmul.f32 %v3259, 0.0
    %3263 = vrot.lane.b32.xlu0 %v3260, 64
    %v3264 = vpop.permute.xlu0 %3263
    %v3266 = vmul.f32 %v3259, %v3264
    %3268 = vrot.lane.b32.xlu0 %v3266, 32
    %v3269 = vpop.permute.xlu0 %3268
    %v3271 = vadd.f32 %v3261, %v3269
    %v3272 = vtanh.pop %v3271
    %3274 = vrot.lane.b32.xlu0 %v3272, 64
    %v3275 = vpop.permute.xlu0 %3274
    %v3277 = vmul.f32 %v3259, %v3275
    %3279 = vrot.lane.b32.xlu0 %v3277, 64
    %v3280 = vpop.permute.xlu0 %3279
    %3282 = vst.msk [vmem:[#allocation3 + $0x8] sm:$0xc0] %vm1340, %v3280
    %v3283 = vrot.slane %v3277, 6
    %3284 = vrot.lane.b32.xlu0 %v3283, 32
    %v3285 = vpop.permute.xlu0 %3284
    %v3286 = vsel %vm358, %v3285, 0
    %3288 = vmatprep.subr.mxu0 0.0
    %3289 = vmatpush1.msra.mxu0 %v3176
    %3290 = vmatprep.subr.mxu0 0.0
    %3291 = vmatpush1.msra.mxu0 %v3177
    %3292 = vmatprep.subr.mxu0 0.0
    %3293 = vmatpush1.msra.mxu0 %v3178
    %3294 = vmatprep.subr.mxu0 0.0
    %3295 = vmatpush1.msra.mxu0 %v3179
    %3296 = vmatprep.subr.mxu0 0.0
    %3297 = vmatpush1.msra.mxu0 0.0
    %3298 = vmatprep.subr.mxu0 0.0
    %3299 = vmatpush1.msra.mxu0 0.0
    %3300 = vmatprep.subr.mxu0 0.0
    %3301 = vmatpush1.msra.mxu0 0.0
    %3302 = vmatprep.subr.mxu0 0.0
    %3303 = vmatpush1.msra.mxu0 0.0
    %3304 = vmatprep.subr.mxu0 0.0
    %3305 = vmatpush1.msra.mxu0 0.0
    %3306 = vmatprep.subr.mxu0 0.0
    %3307 = vmatpush1.msra.mxu0 0.0
    %3308 = vmatprep.subr.mxu0 0.0
    %3309 = vmatpush1.msra.mxu0 0.0
    %3310 = vmatprep.subr.mxu0 0.0
    %3311 = vmatpush1.msra.mxu0 0.0
    %3312 = vmatprep.subr.mxu0 0.0
    %3313 = vmatpush1.msra.mxu0 0.0
    %3314 = vmatprep.subr.mxu0 0.0
    %3315 = vmatpush1.msra.mxu0 0.0
    %3316 = vmatprep.subr.mxu0 0.0
    %3317 = vmatpush1.msra.mxu0 0.0
    %3318 = vmatprep.subr.mxu0 0.0
    %3319 = vmatpush1.msra.mxu0 0.0
    %3320 = vmatprep.subr.mxu0 0.0
    %3321 = vmatpush1.msra.mxu0 0.0
    %3322 = vmatprep.subr.mxu0 0.0
    %3323 = vmatpush1.msra.mxu0 0.0
    %3324 = vmatprep.subr.mxu0 0.0
    %3325 = vmatpush1.msra.mxu0 0.0
    %3326 = vmatprep.subr.mxu0 0.0
    %3327 = vmatpush1.msra.mxu0 0.0
    %3328 = vmatprep.subr.mxu0 0.0
    %3329 = vmatpush1.msra.mxu0 0.0
    %3330 = vmatprep.subr.mxu0 0.0
    %3331 = vmatpush1.msra.mxu0 0.0
    %3332 = vmatprep.subr.mxu0 0.0
    %3333 = vmatpush1.msra.mxu0 0.0
    %3334 = vmatprep.subr.mxu0 0.0
    %3335 = vmatpush1.msra.mxu0 0.0
    %3336 = vmatprep.subr.mxu0 0.0
    %3337 = vmatpush1.msra.mxu0 0.0
    %3338 = vmatprep.subr.mxu0 0.0
    %3339 = vmatpush1.msra.mxu0 0.0
    %3340 = vmatprep.subr.mxu0 0.0
    %3341 = vmatpush1.msra.mxu0 0.0
    %3342 = vmatprep.subr.mxu0 0.0
    %3343 = vmatpush1.msra.mxu0 0.0
    %3344 = vmatprep.subr.mxu0 0.0
    %3345 = vmatpush1.msra.mxu0 0.0
    %3346 = vmatprep.subr.mxu0 0.0
    %3347 = vmatpush1.msra.mxu0 0.0
    %3348 = vmatprep.subr.mxu0 0.0
    %3349 = vmatpush1.msra.mxu0 0.0
    %3350 = vmatprep.subr.mxu0 0.0
    %3351 = vmatpush1.msra.mxu0 0.0
    %3352 = vmatprep.mubr.f32.mxu0 0.0
    %3353 = vmatmul.mubr.f32.gmra.mrb[0].mxu0 %v3286
    %v3354 = vpop.f32.mrb[0].mxu0
    %v3355 = vadd.f32 0.0, %v3354
    %v3356 = vpop.f32.mrb[0].mxu0
    %3357 = vdwg.mxu0
    %v3359 = vrot.slane %v3355, 4
    %v3361 = vadd.f32 %v2301, %v3359
    %v3362 = vxor.u32 %v3361, 2147483648
    %v3363 = vmul.f32 %v3362, 1.442695
    %v3364 = vpow.pop %v3363
    %v3365 = vadd.f32 %v3364, 1.0
    %v3366 = vrcp.pop %v3365
    %v3367 = vmul.f32 1.0, %v3366
    %v3368 = vtanh.pop %v3361
    %v3370 = vrot.slane %v3271, 2
    %v3372 = vmul.f32 %v3367, %v3370
    %3374 = vrot.lane.b32.xlu0 %v3368, 64
    %v3375 = vpop.permute.xlu0 %3374
    %v3377 = vmul.f32 %v3367, %v3375
    %3379 = vrot.lane.b32.xlu0 %v3377, 32
    %v3380 = vpop.permute.xlu0 %3379
    %v3382 = vadd.f32 %v3372, %v3380
    %v3383 = vtanh.pop %v3382
    %3385 = vrot.lane.b32.xlu0 %v3383, 64
    %v3386 = vpop.permute.xlu0 %3385
    %v3388 = vmul.f32 %v3367, %v3386
    %3390 = vrot.lane.b32.xlu0 %v3388, 64
    %v3391 = vpop.permute.xlu0 %3390
    %3393 = vst.msk [vmem:[#allocation3 + $0x8] sm:$0x30] %vm1452, %v3391
    %v3394 = vrot.slane %v3388, 4
    %3395 = vrot.lane.b32.xlu0 %v3394, 32
    %v3396 = vpop.permute.xlu0 %3395
    %v3397 = vsel %vm358, %v3396, 0
    %3399 = vmatprep.subr.mxu0 0.0
    %3400 = vmatpush1.msra.mxu0 %v3176
    %3401 = vmatprep.subr.mxu0 0.0
    %3402 = vmatpush1.msra.mxu0 %v3177
    %3403 = vmatprep.subr.mxu0 0.0
    %3404 = vmatpush1.msra.mxu0 %v3178
    %3405 = vmatprep.subr.mxu0 0.0
    %3406 = vmatpush1.msra.mxu0 %v3179
    %3407 = vmatprep.subr.mxu0 0.0
    %3408 = vmatpush1.msra.mxu0 0.0
    %3409 = vmatprep.subr.mxu0 0.0
    %3410 = vmatpush1.msra.mxu0 0.0
    %3411 = vmatprep.subr.mxu0 0.0
    %3412 = vmatpush1.msra.mxu0 0.0
    %3413 = vmatprep.subr.mxu0 0.0
    %3414 = vmatpush1.msra.mxu0 0.0
    %3415 = vmatprep.subr.mxu0 0.0
    %3416 = vmatpush1.msra.mxu0 0.0
    %3417 = vmatprep.subr.mxu0 0.0
    %3418 = vmatpush1.msra.mxu0 0.0
    %3419 = vmatprep.subr.mxu0 0.0
    %3420 = vmatpush1.msra.mxu0 0.0
    %3421 = vmatprep.subr.mxu0 0.0
    %3422 = vmatpush1.msra.mxu0 0.0
    %3423 = vmatprep.subr.mxu0 0.0
    %3424 = vmatpush1.msra.mxu0 0.0
    %3425 = vmatprep.subr.mxu0 0.0
    %3426 = vmatpush1.msra.mxu0 0.0
    %3427 = vmatprep.subr.mxu0 0.0
    %3428 = vmatpush1.msra.mxu0 0.0
    %3429 = vmatprep.subr.mxu0 0.0
    %3430 = vmatpush1.msra.mxu0 0.0
    %3431 = vmatprep.subr.mxu0 0.0
    %3432 = vmatpush1.msra.mxu0 0.0
    %3433 = vmatprep.subr.mxu0 0.0
    %3434 = vmatpush1.msra.mxu0 0.0
    %3435 = vmatprep.subr.mxu0 0.0
    %3436 = vmatpush1.msra.mxu0 0.0
    %3437 = vmatprep.subr.mxu0 0.0
    %3438 = vmatpush1.msra.mxu0 0.0
    %3439 = vmatprep.subr.mxu0 0.0
    %3440 = vmatpush1.msra.mxu0 0.0
    %3441 = vmatprep.subr.mxu0 0.0
    %3442 = vmatpush1.msra.mxu0 0.0
    %3443 = vmatprep.subr.mxu0 0.0
    %3444 = vmatpush1.msra.mxu0 0.0
    %3445 = vmatprep.subr.mxu0 0.0
    %3446 = vmatpush1.msra.mxu0 0.0
    %3447 = vmatprep.subr.mxu0 0.0
    %3448 = vmatpush1.msra.mxu0 0.0
    %3449 = vmatprep.subr.mxu0 0.0
    %3450 = vmatpush1.msra.mxu0 0.0
    %3451 = vmatprep.subr.mxu0 0.0
    %3452 = vmatpush1.msra.mxu0 0.0
    %3453 = vmatprep.subr.mxu0 0.0
    %3454 = vmatpush1.msra.mxu0 0.0
    %3455 = vmatprep.subr.mxu0 0.0
    %3456 = vmatpush1.msra.mxu0 0.0
    %3457 = vmatprep.subr.mxu0 0.0
    %3458 = vmatpush1.msra.mxu0 0.0
    %3459 = vmatprep.subr.mxu0 0.0
    %3460 = vmatpush1.msra.mxu0 0.0
    %3461 = vmatprep.subr.mxu0 0.0
    %3462 = vmatpush1.msra.mxu0 0.0
    %3463 = vmatprep.mubr.f32.mxu0 0.0
    %3464 = vmatmul.mubr.f32.gmra.mrb[0].mxu0 %v3397
    %v3465 = vpop.f32.mrb[0].mxu0
    %v3466 = vadd.f32 0.0, %v3465
    %v3467 = vpop.f32.mrb[0].mxu0
    %3468 = vdwg.mxu0
    %v3470 = vrot.slane %v3466, 6
    %v3472 = vadd.f32 %v2301, %v3470
    %v3473 = vxor.u32 %v3472, 2147483648
    %v3474 = vmul.f32 %v3473, 1.442695
    %v3475 = vpow.pop %v3474
    %v3476 = vadd.f32 %v3475, 1.0
    %v3477 = vrcp.pop %v3476
    %v3478 = vmul.f32 1.0, %v3477
    %v3479 = vtanh.pop %v3472
    %v3481 = vrot.slane %v3382, 2
    %v3483 = vmul.f32 %v3478, %v3481
    %3485 = vrot.lane.b32.xlu0 %v3479, 64
    %v3486 = vpop.permute.xlu0 %3485
    %v3488 = vmul.f32 %v3478, %v3486
    %3490 = vrot.lane.b32.xlu0 %v3488, 32
    %v3491 = vpop.permute.xlu0 %3490
    %v3493 = vadd.f32 %v3483, %v3491
    %v3494 = vtanh.pop %v3493
    %3496 = vrot.lane.b32.xlu0 %v3494, 64
    %v3497 = vpop.permute.xlu0 %3496
    %v3499 = vmul.f32 %v3478, %v3497
    %3501 = vrot.lane.b32.xlu0 %v3499, 64
    %v3502 = vpop.permute.xlu0 %3501
    %3504 = vst.msk [vmem:[#allocation3 + $0x8] sm:$0xc] %vm1564, %v3502
    %v3505 = vrot.slane %v3499, 2
    %3506 = vrot.lane.b32.xlu0 %v3505, 32
    %v3507 = vpop.permute.xlu0 %3506
    %v3508 = vsel %vm358, %v3507, 0
    %3510 = vmatprep.subr.mxu0 0.0
    %3511 = vmatpush1.msra.mxu0 %v3176
    %3512 = vmatprep.subr.mxu0 0.0
    %3513 = vmatpush1.msra.mxu0 %v3177
    %3514 = vmatprep.subr.mxu0 0.0
    %3515 = vmatpush1.msra.mxu0 %v3178
    %3516 = vmatprep.subr.mxu0 0.0
    %3517 = vmatpush1.msra.mxu0 %v3179
    %3518 = vmatprep.subr.mxu0 0.0
    %3519 = vmatpush1.msra.mxu0 0.0
    %3520 = vmatprep.subr.mxu0 0.0
    %3521 = vmatpush1.msra.mxu0 0.0
    %3522 = vmatprep.subr.mxu0 0.0
    %3523 = vmatpush1.msra.mxu0 0.0
    %3524 = vmatprep.subr.mxu0 0.0
    %3525 = vmatpush1.msra.mxu0 0.0
    %3526 = vmatprep.subr.mxu0 0.0
    %3527 = vmatpush1.msra.mxu0 0.0
    %3528 = vmatprep.subr.mxu0 0.0
    %3529 = vmatpush1.msra.mxu0 0.0
    %3530 = vmatprep.subr.mxu0 0.0
    %3531 = vmatpush1.msra.mxu0 0.0
    %3532 = vmatprep.subr.mxu0 0.0
    %3533 = vmatpush1.msra.mxu0 0.0
    %3534 = vmatprep.subr.mxu0 0.0
    %3535 = vmatpush1.msra.mxu0 0.0
    %3536 = vmatprep.subr.mxu0 0.0
    %3537 = vmatpush1.msra.mxu0 0.0
    %3538 = vmatprep.subr.mxu0 0.0
    %3539 = vmatpush1.msra.mxu0 0.0
    %3540 = vmatprep.subr.mxu0 0.0
    %3541 = vmatpush1.msra.mxu0 0.0
    %3542 = vmatprep.subr.mxu0 0.0
    %3543 = vmatpush1.msra.mxu0 0.0
    %3544 = vmatprep.subr.mxu0 0.0
    %3545 = vmatpush1.msra.mxu0 0.0
    %3546 = vmatprep.subr.mxu0 0.0
    %3547 = vmatpush1.msra.mxu0 0.0
    %3548 = vmatprep.subr.mxu0 0.0
    %3549 = vmatpush1.msra.mxu0 0.0
    %3550 = vmatprep.subr.mxu0 0.0
    %3551 = vmatpush1.msra.mxu0 0.0
    %3552 = vmatprep.subr.mxu0 0.0
    %3553 = vmatpush1.msra.mxu0 0.0
    %3554 = vmatprep.subr.mxu0 0.0
    %3555 = vmatpush1.msra.mxu0 0.0
    %3556 = vmatprep.subr.mxu0 0.0
    %3557 = vmatpush1.msra.mxu0 0.0
    %3558 = vmatprep.subr.mxu0 0.0
    %3559 = vmatpush1.msra.mxu0 0.0
    %3560 = vmatprep.subr.mxu0 0.0
    %3561 = vmatpush1.msra.mxu0 0.0
    %3562 = vmatprep.subr.mxu0 0.0
    %3563 = vmatpush1.msra.mxu0 0.0
    %3564 = vmatprep.subr.mxu0 0.0
    %3565 = vmatpush1.msra.mxu0 0.0
    %3566 = vmatprep.subr.mxu0 0.0
    %3567 = vmatpush1.msra.mxu0 0.0
    %3568 = vmatprep.subr.mxu0 0.0
    %3569 = vmatpush1.msra.mxu0 0.0
    %3570 = vmatprep.subr.mxu0 0.0
    %3571 = vmatpush1.msra.mxu0 0.0
    %3572 = vmatprep.subr.mxu0 0.0
    %3573 = vmatpush1.msra.mxu0 0.0
    %3574 = vmatprep.mubr.f32.mxu0 0.0
    %3575 = vmatmul.mubr.f32.gmra.mrb[0].mxu0 %v3508
    %v3576 = vpop.f32.mrb[0].mxu0
    %v3577 = vadd.f32 0.0, %v3576
    %v3578 = vpop.f32.mrb[0].mxu0
    %3579 = vdwg.mxu0
    %v3580 = vadd.f32 %v2301, %v3577
    %v3581 = vxor.u32 %v3580, 2147483648
    %v3582 = vmul.f32 %v3581, 1.442695
    %v3583 = vpow.pop %v3582
    %v3584 = vadd.f32 %v3583, 1.0
    %v3585 = vrcp.pop %v3584
    %v3586 = vmul.f32 1.0, %v3585
    %v3587 = vtanh.pop %v3580
    %v3589 = vrot.slane %v3493, 2
    %v3591 = vmul.f32 %v3586, %v3589
    %3593 = vrot.lane.b32.xlu0 %v3587, 64
    %v3594 = vpop.permute.xlu0 %3593
    %v3596 = vmul.f32 %v3586, %v3594
    %3598 = vrot.lane.b32.xlu0 %v3596, 32
    %v3599 = vpop.permute.xlu0 %3598
    %v3601 = vadd.f32 %v3591, %v3599
    %v3602 = vtanh.pop %v3601
    %3604 = vrot.lane.b32.xlu0 %v3602, 64
    %v3605 = vpop.permute.xlu0 %3604
    %v3607 = vmul.f32 %v3586, %v3605
    %3609 = vrot.lane.b32.xlu0 %v3607, 64
    %v3610 = vpop.permute.xlu0 %3609
    %3612 = vst.msk [vmem:[#allocation3 + $0x8] sm:$0x3] %vm1673, %v3610
    %3613 = vrot.lane.b32.xlu0 %v3607, 32
    %v3614 = vpop.permute.xlu0 %3613
    %v3615 = vsel %vm358, %v3614, 0
    %3617 = vmatprep.subr.mxu0 0.0
    %3618 = vmatpush1.msra.mxu0 %v3176
    %3619 = vmatprep.subr.mxu0 0.0
    %3620 = vmatpush1.msra.mxu0 %v3177
    %3621 = vmatprep.subr.mxu0 0.0
    %3622 = vmatpush1.msra.mxu0 %v3178
    %3623 = vmatprep.subr.mxu0 0.0
    %3624 = vmatpush1.msra.mxu0 %v3179
    %3625 = vmatprep.subr.mxu0 0.0
    %3626 = vmatpush1.msra.mxu0 0.0
    %3627 = vmatprep.subr.mxu0 0.0
    %3628 = vmatpush1.msra.mxu0 0.0
    %3629 = vmatprep.subr.mxu0 0.0
    %3630 = vmatpush1.msra.mxu0 0.0
    %3631 = vmatprep.subr.mxu0 0.0
    %3632 = vmatpush1.msra.mxu0 0.0
    %3633 = vmatprep.subr.mxu0 0.0
    %3634 = vmatpush1.msra.mxu0 0.0
    %3635 = vmatprep.subr.mxu0 0.0
    %3636 = vmatpush1.msra.mxu0 0.0
    %3637 = vmatprep.subr.mxu0 0.0
    %3638 = vmatpush1.msra.mxu0 0.0
    %3639 = vmatprep.subr.mxu0 0.0
    %3640 = vmatpush1.msra.mxu0 0.0
    %3641 = vmatprep.subr.mxu0 0.0
    %3642 = vmatpush1.msra.mxu0 0.0
    %3643 = vmatprep.subr.mxu0 0.0
    %3644 = vmatpush1.msra.mxu0 0.0
    %3645 = vmatprep.subr.mxu0 0.0
    %3646 = vmatpush1.msra.mxu0 0.0
    %3647 = vmatprep.subr.mxu0 0.0
    %3648 = vmatpush1.msra.mxu0 0.0
    %3649 = vmatprep.subr.mxu0 0.0
    %3650 = vmatpush1.msra.mxu0 0.0
    %3651 = vmatprep.subr.mxu0 0.0
    %3652 = vmatpush1.msra.mxu0 0.0
    %3653 = vmatprep.subr.mxu0 0.0
    %3654 = vmatpush1.msra.mxu0 0.0
    %3655 = vmatprep.subr.mxu0 0.0
    %3656 = vmatpush1.msra.mxu0 0.0
    %3657 = vmatprep.subr.mxu0 0.0
    %3658 = vmatpush1.msra.mxu0 0.0
    %3659 = vmatprep.subr.mxu0 0.0
    %3660 = vmatpush1.msra.mxu0 0.0
    %3661 = vmatprep.subr.mxu0 0.0
    %3662 = vmatpush1.msra.mxu0 0.0
    %3663 = vmatprep.subr.mxu0 0.0
    %3664 = vmatpush1.msra.mxu0 0.0
    %3665 = vmatprep.subr.mxu0 0.0
    %3666 = vmatpush1.msra.mxu0 0.0
    %3667 = vmatprep.subr.mxu0 0.0
    %3668 = vmatpush1.msra.mxu0 0.0
    %3669 = vmatprep.subr.mxu0 0.0
    %3670 = vmatpush1.msra.mxu0 0.0
    %3671 = vmatprep.subr.mxu0 0.0
    %3672 = vmatpush1.msra.mxu0 0.0
    %3673 = vmatprep.subr.mxu0 0.0
    %3674 = vmatpush1.msra.mxu0 0.0
    %3675 = vmatprep.subr.mxu0 0.0
    %3676 = vmatpush1.msra.mxu0 0.0
    %3677 = vmatprep.subr.mxu0 0.0
    %3678 = vmatpush1.msra.mxu0 0.0
    %3679 = vmatprep.subr.mxu0 0.0
    %3680 = vmatpush1.msra.mxu0 0.0
    %3681 = vmatprep.mubr.f32.mxu0 0.0
    %3682 = vmatmul.mubr.f32.gmra.mrb[0].mxu0 %v3615
    %v3683 = vpop.f32.mrb[0].mxu0
    %v3684 = vadd.f32 0.0, %v3683
    %v3685 = vpop.f32.mrb[0].mxu0
    %3686 = vdwg.mxu0
    %v3688 = vrot.slane %v3684, 2
    %v3690 = vadd.f32 %v2296, %v3688
    %v3691 = vxor.u32 %v3690, 2147483648
    %v3692 = vmul.f32 %v3691, 1.442695
    %v3693 = vpow.pop %v3692
    %v3694 = vadd.f32 %v3693, 1.0
    %v3695 = vrcp.pop %v3694
    %v3696 = vmul.f32 1.0, %v3695
    %v3697 = vtanh.pop %v3690
    %v3699 = vrot.slane %v3601, 2
    %v3701 = vmul.f32 %v3696, %v3699
    %3703 = vrot.lane.b32.xlu0 %v3697, 64
    %v3704 = vpop.permute.xlu0 %3703
    %v3706 = vmul.f32 %v3696, %v3704
    %3708 = vrot.lane.b32.xlu0 %v3706, 32
    %v3709 = vpop.permute.xlu0 %3708
    %v3711 = vadd.f32 %v3701, %v3709
    %v3712 = vtanh.pop %v3711
    %3714 = vrot.lane.b32.xlu0 %v3712, 64
    %v3715 = vpop.permute.xlu0 %3714
    %v3717 = vmul.f32 %v3696, %v3715
    %3719 = vrot.lane.b32.xlu0 %v3717, 64
    %v3720 = vpop.permute.xlu0 %3719
    %3722 = vst.msk [vmem:[#allocation3] sm:$0xc0] %vm1340, %v3720
    %v3723 = vrot.slane %v3717, 6
    %3724 = vrot.lane.b32.xlu0 %v3723, 32
    %v3725 = vpop.permute.xlu0 %3724
    %v3726 = vsel %vm358, %v3725, 0
    %3728 = vmatprep.subr.mxu0 0.0
    %3729 = vmatpush1.msra.mxu0 %v3176
    %3730 = vmatprep.subr.mxu0 0.0
    %3731 = vmatpush1.msra.mxu0 %v3177
    %3732 = vmatprep.subr.mxu0 0.0
    %3733 = vmatpush1.msra.mxu0 %v3178
    %3734 = vmatprep.subr.mxu0 0.0
    %3735 = vmatpush1.msra.mxu0 %v3179
    %3736 = vmatprep.subr.mxu0 0.0
    %3737 = vmatpush1.msra.mxu0 0.0
    %3738 = vmatprep.subr.mxu0 0.0
    %3739 = vmatpush1.msra.mxu0 0.0
    %3740 = vmatprep.subr.mxu0 0.0
    %3741 = vmatpush1.msra.mxu0 0.0
    %3742 = vmatprep.subr.mxu0 0.0
    %3743 = vmatpush1.msra.mxu0 0.0
    %3744 = vmatprep.subr.mxu0 0.0
    %3745 = vmatpush1.msra.mxu0 0.0
    %3746 = vmatprep.subr.mxu0 0.0
    %3747 = vmatpush1.msra.mxu0 0.0
    %3748 = vmatprep.subr.mxu0 0.0
    %3749 = vmatpush1.msra.mxu0 0.0
    %3750 = vmatprep.subr.mxu0 0.0
    %3751 = vmatpush1.msra.mxu0 0.0
    %3752 = vmatprep.subr.mxu0 0.0
    %3753 = vmatpush1.msra.mxu0 0.0
    %3754 = vmatprep.subr.mxu0 0.0
    %3755 = vmatpush1.msra.mxu0 0.0
    %3756 = vmatprep.subr.mxu0 0.0
    %3757 = vmatpush1.msra.mxu0 0.0
    %3758 = vmatprep.subr.mxu0 0.0
    %3759 = vmatpush1.msra.mxu0 0.0
    %3760 = vmatprep.subr.mxu0 0.0
    %3761 = vmatpush1.msra.mxu0 0.0
    %3762 = vmatprep.subr.mxu0 0.0
    %3763 = vmatpush1.msra.mxu0 0.0
    %3764 = vmatprep.subr.mxu0 0.0
    %3765 = vmatpush1.msra.mxu0 0.0
    %3766 = vmatprep.subr.mxu0 0.0
    %3767 = vmatpush1.msra.mxu0 0.0
    %3768 = vmatprep.subr.mxu0 0.0
    %3769 = vmatpush1.msra.mxu0 0.0
    %3770 = vmatprep.subr.mxu0 0.0
    %3771 = vmatpush1.msra.mxu0 0.0
    %3772 = vmatprep.subr.mxu0 0.0
    %3773 = vmatpush1.msra.mxu0 0.0
    %3774 = vmatprep.subr.mxu0 0.0
    %3775 = vmatpush1.msra.mxu0 0.0
    %3776 = vmatprep.subr.mxu0 0.0
    %3777 = vmatpush1.msra.mxu0 0.0
    %3778 = vmatprep.subr.mxu0 0.0
    %3779 = vmatpush1.msra.mxu0 0.0
    %3780 = vmatprep.subr.mxu0 0.0
    %3781 = vmatpush1.msra.mxu0 0.0
    %3782 = vmatprep.subr.mxu0 0.0
    %3783 = vmatpush1.msra.mxu0 0.0
    %3784 = vmatprep.subr.mxu0 0.0
    %3785 = vmatpush1.msra.mxu0 0.0
    %3786 = vmatprep.subr.mxu0 0.0
    %3787 = vmatpush1.msra.mxu0 0.0
    %3788 = vmatprep.subr.mxu0 0.0
    %3789 = vmatpush1.msra.mxu0 0.0
    %3790 = vmatprep.subr.mxu0 0.0
    %3791 = vmatpush1.msra.mxu0 0.0
    %3792 = vmatprep.mubr.f32.mxu0 0.0
    %3793 = vmatmul.mubr.f32.gmra.mrb[0].mxu0 %v3726
    %v3794 = vpop.f32.mrb[0].mxu0
    %v3795 = vadd.f32 0.0, %v3794
    %v3796 = vpop.f32.mrb[0].mxu0
    %3797 = vdwg.mxu0
    %v3799 = vrot.slane %v3795, 4
    %v3801 = vadd.f32 %v2296, %v3799
    %v3802 = vxor.u32 %v3801, 2147483648
    %v3803 = vmul.f32 %v3802, 1.442695
    %v3804 = vpow.pop %v3803
    %v3805 = vadd.f32 %v3804, 1.0
    %v3806 = vrcp.pop %v3805
    %v3807 = vmul.f32 1.0, %v3806
    %v3808 = vtanh.pop %v3801
    %v3810 = vrot.slane %v3711, 2
    %v3812 = vmul.f32 %v3807, %v3810
    %3814 = vrot.lane.b32.xlu0 %v3808, 64
    %v3815 = vpop.permute.xlu0 %3814
    %v3817 = vmul.f32 %v3807, %v3815
    %3819 = vrot.lane.b32.xlu0 %v3817, 32
    %v3820 = vpop.permute.xlu0 %3819
    %v3822 = vadd.f32 %v3812, %v3820
    %v3823 = vtanh.pop %v3822
    %3825 = vrot.lane.b32.xlu0 %v3823, 64
    %v3826 = vpop.permute.xlu0 %3825
    %v3828 = vmul.f32 %v3807, %v3826
    %3830 = vrot.lane.b32.xlu0 %v3828, 64
    %v3831 = vpop.permute.xlu0 %3830
    %3833 = vst.msk [vmem:[#allocation3] sm:$0x30] %vm1452, %v3831
    %v3834 = vrot.slane %v3828, 4
    %3835 = vrot.lane.b32.xlu0 %v3834, 32
    %v3836 = vpop.permute.xlu0 %3835
    %v3837 = vsel %vm358, %v3836, 0
    %3839 = vmatprep.subr.mxu0 0.0
    %3840 = vmatpush1.msra.mxu0 %v3176
    %3841 = vmatprep.subr.mxu0 0.0
    %3842 = vmatpush1.msra.mxu0 %v3177
    %3843 = vmatprep.subr.mxu0 0.0
    %3844 = vmatpush1.msra.mxu0 %v3178
    %3845 = vmatprep.subr.mxu0 0.0
    %3846 = vmatpush1.msra.mxu0 %v3179
    %3847 = vmatprep.subr.mxu0 0.0
    %3848 = vmatpush1.msra.mxu0 0.0
    %3849 = vmatprep.subr.mxu0 0.0
    %3850 = vmatpush1.msra.mxu0 0.0
    %3851 = vmatprep.subr.mxu0 0.0
    %3852 = vmatpush1.msra.mxu0 0.0
    %3853 = vmatprep.subr.mxu0 0.0
    %3854 = vmatpush1.msra.mxu0 0.0
    %3855 = vmatprep.subr.mxu0 0.0
    %3856 = vmatpush1.msra.mxu0 0.0
    %3857 = vmatprep.subr.mxu0 0.0
    %3858 = vmatpush1.msra.mxu0 0.0
    %3859 = vmatprep.subr.mxu0 0.0
    %3860 = vmatpush1.msra.mxu0 0.0
    %3861 = vmatprep.subr.mxu0 0.0
    %3862 = vmatpush1.msra.mxu0 0.0
    %3863 = vmatprep.subr.mxu0 0.0
    %3864 = vmatpush1.msra.mxu0 0.0
    %3865 = vmatprep.subr.mxu0 0.0
    %3866 = vmatpush1.msra.mxu0 0.0
    %3867 = vmatprep.subr.mxu0 0.0
    %3868 = vmatpush1.msra.mxu0 0.0
    %3869 = vmatprep.subr.mxu0 0.0
    %3870 = vmatpush1.msra.mxu0 0.0
    %3871 = vmatprep.subr.mxu0 0.0
    %3872 = vmatpush1.msra.mxu0 0.0
    %3873 = vmatprep.subr.mxu0 0.0
    %3874 = vmatpush1.msra.mxu0 0.0
    %3875 = vmatprep.subr.mxu0 0.0
    %3876 = vmatpush1.msra.mxu0 0.0
    %3877 = vmatprep.subr.mxu0 0.0
    %3878 = vmatpush1.msra.mxu0 0.0
    %3879 = vmatprep.subr.mxu0 0.0
    %3880 = vmatpush1.msra.mxu0 0.0
    %3881 = vmatprep.subr.mxu0 0.0
    %3882 = vmatpush1.msra.mxu0 0.0
    %3883 = vmatprep.subr.mxu0 0.0
    %3884 = vmatpush1.msra.mxu0 0.0
    %3885 = vmatprep.subr.mxu0 0.0
    %3886 = vmatpush1.msra.mxu0 0.0
    %3887 = vmatprep.subr.mxu0 0.0
    %3888 = vmatpush1.msra.mxu0 0.0
    %3889 = vmatprep.subr.mxu0 0.0
    %3890 = vmatpush1.msra.mxu0 0.0
    %3891 = vmatprep.subr.mxu0 0.0
    %3892 = vmatpush1.msra.mxu0 0.0
    %3893 = vmatprep.subr.mxu0 0.0
    %3894 = vmatpush1.msra.mxu0 0.0
    %3895 = vmatprep.subr.mxu0 0.0
    %3896 = vmatpush1.msra.mxu0 0.0
    %3897 = vmatprep.subr.mxu0 0.0
    %3898 = vmatpush1.msra.mxu0 0.0
    %3899 = vmatprep.subr.mxu0 0.0
    %3900 = vmatpush1.msra.mxu0 0.0
    %3901 = vmatprep.subr.mxu0 0.0
    %3902 = vmatpush1.msra.mxu0 0.0
    %3903 = vmatprep.mubr.f32.mxu0 0.0
    %3904 = vmatmul.mubr.f32.gmra.mrb[0].mxu0 %v3837
    %v3905 = vpop.f32.mrb[0].mxu0
    %v3906 = vadd.f32 0.0, %v3905
    %v3907 = vpop.f32.mrb[0].mxu0
    %3908 = vdwg.mxu0
    %v3910 = vrot.slane %v3906, 6
    %v3912 = vadd.f32 %v2296, %v3910
    %v3913 = vxor.u32 %v3912, 2147483648
    %v3914 = vmul.f32 %v3913, 1.442695
    %v3915 = vpow.pop %v3914
    %v3916 = vadd.f32 %v3915, 1.0
    %v3917 = vrcp.pop %v3916
    %v3918 = vmul.f32 1.0, %v3917
    %v3919 = vtanh.pop %v3912
    %v3921 = vrot.slane %v3822, 2
    %v3923 = vmul.f32 %v3918, %v3921
    %3925 = vrot.lane.b32.xlu0 %v3919, 64
    %v3926 = vpop.permute.xlu0 %3925
    %v3928 = vmul.f32 %v3918, %v3926
    %3930 = vrot.lane.b32.xlu0 %v3928, 32
    %v3931 = vpop.permute.xlu0 %3930
    %v3933 = vadd.f32 %v3923, %v3931
    %v3934 = vtanh.pop %v3933
    %3936 = vrot.lane.b32.xlu0 %v3934, 64
    %v3937 = vpop.permute.xlu0 %3936
    %v3939 = vmul.f32 %v3918, %v3937
    %3941 = vrot.lane.b32.xlu0 %v3939, 64
    %v3942 = vpop.permute.xlu0 %3941
    %3944 = vst.msk [vmem:[#allocation3] sm:$0xc] %vm1564, %v3942
    %v3945 = vrot.slane %v3939, 2
    %3946 = vrot.lane.b32.xlu0 %v3945, 32
    %v3947 = vpop.permute.xlu0 %3946
    %v3948 = vsel %vm358, %v3947, 0
    %3950 = vmatprep.subr.mxu0 0.0
    %3951 = vmatpush1.msra.mxu0 %v3176
    %3952 = vmatprep.subr.mxu0 0.0
    %3953 = vmatpush1.msra.mxu0 %v3177
    %3954 = vmatprep.subr.mxu0 0.0
    %3955 = vmatpush1.msra.mxu0 %v3178
    %3956 = vmatprep.subr.mxu0 0.0
    %3957 = vmatpush1.msra.mxu0 %v3179
    %3958 = vmatprep.subr.mxu0 0.0
    %3959 = vmatpush1.msra.mxu0 0.0
    %3960 = vmatprep.subr.mxu0 0.0
    %3961 = vmatpush1.msra.mxu0 0.0
    %3962 = vmatprep.subr.mxu0 0.0
    %3963 = vmatpush1.msra.mxu0 0.0
    %3964 = vmatprep.subr.mxu0 0.0
    %3965 = vmatpush1.msra.mxu0 0.0
    %3966 = vmatprep.subr.mxu0 0.0
    %3967 = vmatpush1.msra.mxu0 0.0
    %3968 = vmatprep.subr.mxu0 0.0
    %3969 = vmatpush1.msra.mxu0 0.0
    %3970 = vmatprep.subr.mxu0 0.0
    %3971 = vmatpush1.msra.mxu0 0.0
    %3972 = vmatprep.subr.mxu0 0.0
    %3973 = vmatpush1.msra.mxu0 0.0
    %3974 = vmatprep.subr.mxu0 0.0
    %3975 = vmatpush1.msra.mxu0 0.0
    %3976 = vmatprep.subr.mxu0 0.0
    %3977 = vmatpush1.msra.mxu0 0.0
    %3978 = vmatprep.subr.mxu0 0.0
    %3979 = vmatpush1.msra.mxu0 0.0
    %3980 = vmatprep.subr.mxu0 0.0
    %3981 = vmatpush1.msra.mxu0 0.0
    %3982 = vmatprep.subr.mxu0 0.0
    %3983 = vmatpush1.msra.mxu0 0.0
    %3984 = vmatprep.subr.mxu0 0.0
    %3985 = vmatpush1.msra.mxu0 0.0
    %3986 = vmatprep.subr.mxu0 0.0
    %3987 = vmatpush1.msra.mxu0 0.0
    %3988 = vmatprep.subr.mxu0 0.0
    %3989 = vmatpush1.msra.mxu0 0.0
    %3990 = vmatprep.subr.mxu0 0.0
    %3991 = vmatpush1.msra.mxu0 0.0
    %3992 = vmatprep.subr.mxu0 0.0
    %3993 = vmatpush1.msra.mxu0 0.0
    %3994 = vmatprep.subr.mxu0 0.0
    %3995 = vmatpush1.msra.mxu0 0.0
    %3996 = vmatprep.subr.mxu0 0.0
    %3997 = vmatpush1.msra.mxu0 0.0
    %3998 = vmatprep.subr.mxu0 0.0
    %3999 = vmatpush1.msra.mxu0 0.0
    %4000 = vmatprep.subr.mxu0 0.0
    %4001 = vmatpush1.msra.mxu0 0.0
    %4002 = vmatprep.subr.mxu0 0.0
    %4003 = vmatpush1.msra.mxu0 0.0
    %4004 = vmatprep.subr.mxu0 0.0
    %4005 = vmatpush1.msra.mxu0 0.0
    %4006 = vmatprep.subr.mxu0 0.0
    %4007 = vmatpush1.msra.mxu0 0.0
    %4008 = vmatprep.subr.mxu0 0.0
    %4009 = vmatpush1.msra.mxu0 0.0
    %4010 = vmatprep.subr.mxu0 0.0
    %4011 = vmatpush1.msra.mxu0 0.0
    %4012 = vmatprep.subr.mxu0 0.0
    %4013 = vmatpush1.msra.mxu0 0.0
    %4014 = vmatprep.mubr.f32.mxu0 0.0
    %4015 = vmatmul.mubr.f32.gmra.mrb[0].mxu0 %v3948
    %v4016 = vpop.f32.mrb[0].mxu0
    %v4017 = vadd.f32 0.0, %v4016
    %v4018 = vpop.f32.mrb[0].mxu0
    %4019 = vdwg.mxu0
    %v4020 = vadd.f32 %v2296, %v4017
    %v4021 = vxor.u32 %v4020, 2147483648
    %v4022 = vmul.f32 %v4021, 1.442695
    %v4023 = vpow.pop %v4022
    %v4024 = vadd.f32 %v4023, 1.0
    %v4025 = vrcp.pop %v4024
    %v4026 = vmul.f32 1.0, %v4025
    %v4027 = vtanh.pop %v4020
    %v4029 = vrot.slane %v3933, 2
    %v4031 = vmul.f32 %v4026, %v4029
    %4033 = vrot.lane.b32.xlu0 %v4027, 64
    %v4034 = vpop.permute.xlu0 %4033
    %v4036 = vmul.f32 %v4026, %v4034
    %4038 = vrot.lane.b32.xlu0 %v4036, 32
    %v4039 = vpop.permute.xlu0 %4038
    %v4041 = vadd.f32 %v4031, %v4039
    %v4042 = vtanh.pop %v4041
    %4044 = vrot.lane.b32.xlu0 %v4042, 64
    %v4045 = vpop.permute.xlu0 %4044
    %v4047 = vmul.f32 %v4026, %v4045
    %4049 = vrot.lane.b32.xlu0 %v4047, 64
    %v4050 = vpop.permute.xlu0 %4049
    %4052 = vst.msk [vmem:[#allocation3] sm:$0x3] %vm1673, %v4050
    %v4053 = vld [vmem:[#allocation3] sm:$0xff]
    %v4054 = vld [vmem:[#allocation3 + $0x8] sm:$0xff]
    %v4055 = vld [vmem:[%s13] sm:$0xff]
    %v4056 = vld [vmem:[%s13 + $0x8] sm:$0xff]
    %v4057 = vld [vmem:[%s13 + $0x10] sm:$0xff]
    %v4058 = vld [vmem:[%s13 + $0x18] sm:$0xff]
    %v4059 = vld [vmem:[%s13 + $0x20] sm:$0xff]
    %v4060 = vld [vmem:[%s13 + $0x28] sm:$0xff]
    %v4061 = vld [vmem:[%s13 + $0x30] sm:$0xff]
    %v4062 = vld [vmem:[%s13 + $0x38] sm:$0xff]
    %v4063 = vld [vmem:[%s14] sm:$0x1]
    %v4065 = vlaneseq
    %v4066 = vshrl.u32 %v4065, 7
    %v4067 = vsub.s32 0, %v4066
    %v4068 = vrot.slane %v4063, %v4067
    %v4071 = vsel %vm2132, %v4053, 0
    %v4074 = vsel %vm2132, %v4054, 0
    %4076 = vmatprep.subr.mxu0 0.0
    %4077 = vmatpush1.msra.mxu0 %v4055
    %4078 = vmatprep.subr.mxu0 0.0
    %4079 = vmatpush1.msra.mxu0 %v4056
    %4080 = vmatprep.subr.mxu0 0.0
    %4081 = vmatpush1.msra.mxu0 %v4057
    %4082 = vmatprep.subr.mxu0 0.0
    %4083 = vmatpush1.msra.mxu0 %v4058
    %4084 = vmatprep.subr.mxu0 0.0
    %4085 = vmatpush1.msra.mxu0 %v4059
    %4086 = vmatprep.subr.mxu0 0.0
    %4087 = vmatpush1.msra.mxu0 %v4060
    %4088 = vmatprep.subr.mxu0 0.0
    %4089 = vmatpush1.msra.mxu0 %v4061
    %4090 = vmatprep.subr.mxu0 0.0
    %4091 = vmatpush1.msra.mxu0 %v4062
    %4092 = vmatprep.subr.mxu0 0.0
    %4093 = vmatpush1.msra.mxu0 0.0
    %4094 = vmatprep.subr.mxu0 0.0
    %4095 = vmatpush1.msra.mxu0 0.0
    %4096 = vmatprep.subr.mxu0 0.0
    %4097 = vmatpush1.msra.mxu0 0.0
    %4098 = vmatprep.subr.mxu0 0.0
    %4099 = vmatpush1.msra.mxu0 0.0
    %4100 = vmatprep.subr.mxu0 0.0
    %4101 = vmatpush1.msra.mxu0 0.0
    %4102 = vmatprep.subr.mxu0 0.0
    %4103 = vmatpush1.msra.mxu0 0.0
    %4104 = vmatprep.subr.mxu0 0.0
    %4105 = vmatpush1.msra.mxu0 0.0
    %4106 = vmatprep.subr.mxu0 0.0
    %4107 = vmatpush1.msra.mxu0 0.0
    %4108 = vmatprep.subr.mxu0 0.0
    %4109 = vmatpush1.msra.mxu0 0.0
    %4110 = vmatprep.subr.mxu0 0.0
    %4111 = vmatpush1.msra.mxu0 0.0
    %4112 = vmatprep.subr.mxu0 0.0
    %4113 = vmatpush1.msra.mxu0 0.0
    %4114 = vmatprep.subr.mxu0 0.0
    %4115 = vmatpush1.msra.mxu0 0.0
    %4116 = vmatprep.subr.mxu0 0.0
    %4117 = vmatpush1.msra.mxu0 0.0
    %4118 = vmatprep.subr.mxu0 0.0
    %4119 = vmatpush1.msra.mxu0 0.0
    %4120 = vmatprep.subr.mxu0 0.0
    %4121 = vmatpush1.msra.mxu0 0.0
    %4122 = vmatprep.subr.mxu0 0.0
    %4123 = vmatpush1.msra.mxu0 0.0
    %4124 = vmatprep.subr.mxu0 0.0
    %4125 = vmatpush1.msra.mxu0 0.0
    %4126 = vmatprep.subr.mxu0 0.0
    %4127 = vmatpush1.msra.mxu0 0.0
    %4128 = vmatprep.subr.mxu0 0.0
    %4129 = vmatpush1.msra.mxu0 0.0
    %4130 = vmatprep.subr.mxu0 0.0
    %4131 = vmatpush1.msra.mxu0 0.0
    %4132 = vmatprep.subr.mxu0 0.0
    %4133 = vmatpush1.msra.mxu0 0.0
    %4134 = vmatprep.subr.mxu0 0.0
    %4135 = vmatpush1.msra.mxu0 0.0
    %4136 = vmatprep.subr.mxu0 0.0
    %4137 = vmatpush1.msra.mxu0 0.0
    %4138 = vmatprep.subr.mxu0 0.0
    %4139 = vmatpush1.msra.mxu0 0.0
    %4140 = vmatprep.mubr.f32.mxu0 0.0
    %4141 = vmatmul.mubr.f32.gmra.mrb[0].mxu0 %v4071
    %v4142 = vpop.f32.mrb[0].mxu0
    %v4143 = vadd.f32 %v4068, %v4142
    %v4144 = vpop.f32.mrb[0].mxu0
    %4145 = vmatprep.mubr.f32.mxu0 0.0
    %4146 = vmatmul.mubr.f32.gmra.mrb[0].mxu0 %v4074
    %v4147 = vpop.f32.mrb[0].mxu0
    %v4148 = vadd.f32 %v4068, %v4147
    %v4149 = vpop.f32.mrb[0].mxu0
    %4150 = vdwg.mxu0
    %v4151 = vmax.f32 %v4143, 0.0
    %v4152 = vmax.f32 %v4148, 0.0
    %v4154 = vrot.slane %v4151, 2
    %v4156 = vadd.f32 %v4151, %v4154
    %v4157 = vrot.slane %v4151, 4
    %v4159 = vadd.f32 %v4156, %v4157
    %v4160 = vrot.slane %v4151, 6
    %v4162 = vadd.f32 %v4159, %v4160
    %v4163 = vadd.f32 %v4162, %v4152
    %v4165 = vrot.slane %v4152, 2
    %v4167 = vadd.f32 %v4163, %v4165
    %v4168 = vrot.slane %v4152, 4
    %v4170 = vadd.f32 %v4167, %v4168
    %v4171 = vrot.slane %v4152, 6
    %v4173 = vadd.f32 %v4170, %v4171
    %v4174 = vmul.f32 %v4173, 0.125
    %v4175 = vld [vmem:[#allocation18] sm:$0xff]
    %v4176 = vld [vmem:[#allocation18 + $0x8] sm:$0xff]
    %v4177 = vld [vmem:[#allocation18 + $0x10] sm:$0xff]
    %v4178 = vld [vmem:[#allocation18 + $0x18] sm:$0xff]
    %v4179 = vld [vmem:[%s16] sm:$0x1]
    %v4181 = vlaneseq
    %v4182 = vshrl.u32 %v4181, 7
    %v4183 = vsub.s32 0, %v4182
    %v4184 = vrot.slane %v4179, %v4183
    %v4187 = vsel %vm358, %v4174, 0
    %4189 = vmatprep.subr.mxu0 0.0
    %4190 = vmatpush1.msra.mxu0 %v4175
    %4191 = vmatprep.subr.mxu0 0.0
    %4192 = vmatpush1.msra.mxu0 %v4176
    %4193 = vmatprep.subr.mxu0 0.0
    %4194 = vmatpush1.msra.mxu0 %v4177
    %4195 = vmatprep.subr.mxu0 0.0
    %4196 = vmatpush1.msra.mxu0 %v4178
    %4197 = vmatprep.subr.mxu0 0.0
    %4198 = vmatpush1.msra.mxu0 0.0
    %4199 = vmatprep.subr.mxu0 0.0
    %4200 = vmatpush1.msra.mxu0 0.0
    %4201 = vmatprep.subr.mxu0 0.0
    %4202 = vmatpush1.msra.mxu0 0.0
    %4203 = vmatprep.subr.mxu0 0.0
    %4204 = vmatpush1.msra.mxu0 0.0
    %4205 = vmatprep.subr.mxu0 0.0
    %4206 = vmatpush1.msra.mxu0 0.0
    %4207 = vmatprep.subr.mxu0 0.0
    %4208 = vmatpush1.msra.mxu0 0.0
    %4209 = vmatprep.subr.mxu0 0.0
    %4210 = vmatpush1.msra.mxu0 0.0
    %4211 = vmatprep.subr.mxu0 0.0
    %4212 = vmatpush1.msra.mxu0 0.0
    %4213 = vmatprep.subr.mxu0 0.0
    %4214 = vmatpush1.msra.mxu0 0.0
    %4215 = vmatprep.subr.mxu0 0.0
    %4216 = vmatpush1.msra.mxu0 0.0
    %4217 = vmatprep.subr.mxu0 0.0
    %4218 = vmatpush1.msra.mxu0 0.0
    %4219 = vmatprep.subr.mxu0 0.0
    %4220 = vmatpush1.msra.mxu0 0.0
    %4221 = vmatprep.subr.mxu0 0.0
    %4222 = vmatpush1.msra.mxu0 0.0
    %4223 = vmatprep.subr.mxu0 0.0
    %4224 = vmatpush1.msra.mxu0 0.0
    %4225 = vmatprep.subr.mxu0 0.0
    %4226 = vmatpush1.msra.mxu0 0.0
    %4227 = vmatprep.subr.mxu0 0.0
    %4228 = vmatpush1.msra.mxu0 0.0
    %4229 = vmatprep.subr.mxu0 0.0
    %4230 = vmatpush1.msra.mxu0 0.0
    %4231 = vmatprep.subr.mxu0 0.0
    %4232 = vmatpush1.msra.mxu0 0.0
    %4233 = vmatprep.subr.mxu0 0.0
    %4234 = vmatpush1.msra.mxu0 0.0
    %4235 = vmatprep.subr.mxu0 0.0
    %4236 = vmatpush1.msra.mxu0 0.0
    %4237 = vmatprep.subr.mxu0 0.0
    %4238 = vmatpush1.msra.mxu0 0.0
    %4239 = vmatprep.subr.mxu0 0.0
    %4240 = vmatpush1.msra.mxu0 0.0
    %4241 = vmatprep.subr.mxu0 0.0
    %4242 = vmatpush1.msra.mxu0 0.0
    %4243 = vmatprep.subr.mxu0 0.0
    %4244 = vmatpush1.msra.mxu0 0.0
    %4245 = vmatprep.subr.mxu0 0.0
    %4246 = vmatpush1.msra.mxu0 0.0
    %4247 = vmatprep.subr.mxu0 0.0
    %4248 = vmatpush1.msra.mxu0 0.0
    %4249 = vmatprep.subr.mxu0 0.0
    %4250 = vmatpush1.msra.mxu0 0.0
    %4251 = vmatprep.subr.mxu0 0.0
    %4252 = vmatpush1.msra.mxu0 0.0
    %4253 = vmatprep.mubr.f32.mxu0 0.0
    %4254 = vmatmul.mubr.f32.gmra.mrb[0].mxu0 %v4187
    %v4255 = vpop.f32.mrb[0].mxu0
    %v4256 = vadd.f32 %v4184, %v4255
    %v4257 = vpop.f32.mrb[0].mxu0
    %4258 = vdwg.mxu0
    %4259 = vst [vmem:[#allocation19] sm:$0x3] %v4256
    // Predicated region
    $region106: #{tpu_custom_call.1} parent=1 // pred_check
      _
    $region107: #{tpu_custom_call.1} parent=1 // pred_check_branch
      %4261 = sbr.rel (0) target = $region109
    $region108: #{tpu_custom_call.1} parent=1 // pred_region
      %s4263 = ssub.s32 32, 32
      %4264 = vsyncadd [#allocation6], %s4263
      %s4266 = sshll.u32 [#allocation19], 4
      %s4267 = int_to_ptr.vmem [resolvable:$true] %s4266
      %4269 = dma.vmem_to_hbm [thread:$0]  %s4267, 32, %s17, [#allocation6]
    $region109: #{tpu_custom_call.1} parent=1 // pred_fallthru
      _
    // Predicated region
    $region110: #{tpu_custom_call.1} parent=1 // pred_check
      _
    $region111: #{tpu_custom_call.1} parent=1 // pred_check_branch
      %4271 = sbr.rel (0) target = $region113
    $region112: #{tpu_custom_call.1} parent=1 // pred_region
      %4272 = dma.done [#allocation6], 32
    $region113: #{tpu_custom_call.1} parent=1 // pred_fallthru
      _
    %4273 = vsyncpa [#allocation5], 1
    %4274 = vsyncpa [#allocation8], 1
    %4275 = vsyncpa [#allocation11], 1
    %4276 = vsyncpa [#allocation14], 1
    %4277 = vsyncpa [#allocation17], 1
    %4278 = vsyncpa [#allocation6], 1

</llo_original>
